<compile_context>
chip_gen: v5e
topology: v5e:2x2
jax: 0.10.0
libtpu: 0.0.40
codegen_flags: <defaults>
</compile_context>

<pallas_src>
from functools import partial

import jax
import jax.numpy as jnp
from jax.experimental import pallas as pl
from jax.experimental.pallas import tpu as pltpu


def _layernorm(v, g, b, eps=1e-5):
    # one-pass stats: E[x^2] - E[x]^2 (halves XLU reduction traffic vs two-pass)
    d_inv = 1.0 / v.shape[-1]
    s1 = jnp.sum(v, axis=-1, keepdims=True)
    s2 = jnp.sum(v * v, axis=-1, keepdims=True)
    mu = s1 * d_inv
    var = s2 * d_inv - mu * mu
    return (v - mu) * jax.lax.rsqrt(var + eps) * g + b


def sas_block_kernel(x_ref, ln1g_ref, ln1b_ref, wqkv_ref, woutr_ref, bout_ref,
                     abg_ref, ln2g_ref, ln2b_ref, w1_ref, b1_ref, w2_ref,
                     b2_ref, o_ref, *, dim, heads):
    """Fused: LN1 -> shaped attention -> residual -> LN2 -> MLP -> residual."""
    n = x_ref.shape[1]
    hd = dim // heads
    f32 = jnp.float32
    bf16 = jnp.bfloat16

    # shaped-attention scalars: one SMEM read each, gamma/n precomputed (hoisted)
    alpha = abg_ref[0]
    beta = abg_ref[1]
    gamma_over_n = abg_ref[2] * (1.0 / n)
    scale = dim ** (-0.5)          # PyTorch module scales by dim, not head_dim

    x = x_ref[0].astype(f32)                                        # (n, dim)

    # ---- attention branch ----------------------------------------------------
    h1 = _layernorm(x, ln1g_ref[0], ln1b_ref[0])
    qkv = jnp.dot(h1.astype(bf16), wqkv_ref[...],                   # bf16 x bf16 -> f32
                  preferred_element_type=f32)                       # (n, 3*dim)

    # Split q/k/v into batched-head operands ONCE (heads on the leading/major axis).
    # All lane slicing happens here, outside the MXU sequence, so the batched
    # einsums below run back-to-back with no per-head relayout in between.
    def split(base):
        return jnp.stack(
            [qkv[:, base + h * hd: base + (h + 1) * hd] for h in range(heads)],
            axis=0)                                                 # (heads, n, hd)

    q3 = split(0) * scale          # scale folded into q once (f32)
    k3 = split(dim)
    v3 = split(2 * dim)

    # batched QK^T: contraction on the last dim of both operands -> K transpose
    # folded into the MXU operand feed (no k.T materialized).
    dots = jnp.einsum("hqd,hkd->hqk", q3.astype(bf16), k3.astype(bf16),
                      preferred_element_type=f32)                   # (heads, n, n)
    dots = dots - jnp.max(dots, axis=-1, keepdims=True)             # f32 softmax
    e = jnp.exp(dots)
    attn = e * pl.reciprocal(jnp.sum(e, axis=-1, keepdims=True), approx=True)

    pv = jnp.einsum("hqk,hkd->hqd", attn.astype(bf16), v3.astype(bf16),
                    preferred_element_type=f32)                     # (heads, n, hd)

    # shaped attention, algebraically (no eye / shaped map materialized):
    #   (alpha*I + beta*softmax - gamma/n) @ V
    #     == alpha*V + beta*(softmax@V) - (gamma/n) * colsum(V)
    head_out = (alpha * v3 + beta * pv
                - gamma_over_n * jnp.sum(v3, axis=1, keepdims=True))

    # batched output projection, then reduce over heads:
    #   concat_h(out_h) @ w_out == sum_h out_h @ w_out[h*hd:(h+1)*hd, :]
    proj = jnp.einsum("hnk,hkd->hnd", head_out.astype(bf16), woutr_ref[...],
                      preferred_element_type=f32)                   # (heads, n, dim)
    x2 = x + jnp.sum(proj, axis=0) + bout_ref[0]

    # ---- MLP branch ------------------------------------------------------------
    h2 = _layernorm(x2, ln2g_ref[0], ln2b_ref[0])
    hm = jnp.dot(h2.astype(bf16), w1_ref[...], preferred_element_type=f32) + b1_ref[0]
    hm = jax.nn.gelu(hm, approximate=True)       # tanh -> EUP slot (erf = VALU poly)
    hm = jnp.dot(hm.astype(bf16), w2_ref[...], preferred_element_type=f32) + b2_ref[0]

    o_ref[0] = (x2 + hm).astype(o_ref.dtype)


def sas_block(x, p, *, heads):
    B, N, D = x.shape
    mlp_dim = p["w1"].shape[1]
    hd = D // heads
    bf16 = jnp.bfloat16

    # MXU-fed weights stored bf16 (halves weight DMA + VMEM); LN params, biases and
    # the shaped-attention scalars stay f32 (they feed f32 VALU/EUP math).
    w_qkv = p["w_qkv"].astype(bf16)                        # (D, 3D)
    w_out_r = p["w_out"].reshape(heads, hd, D).astype(bf16)  # head-major rows -> (h, hd, D)
    w1 = p["w1"].astype(bf16)
    w2 = p["w2"].astype(bf16)

    def full(shape):
        nd = len(shape)
        return pl.BlockSpec(shape, lambda i, _nd=nd: (0,) * _nd)

    kernel = partial(sas_block_kernel, dim=D, heads=heads)

    # advisory cost estimate for XLA's scheduler
    flops = 2 * B * N * (3 * D * D        # qkv projection
                         + 2 * N * D      # qk^T + attn@v (summed over heads)
                         + D * D          # output projection
                         + 2 * D * mlp_dim)   # MLP
    transcendentals = B * N * (heads * N + mlp_dim)          # softmax exp + gelu tanh
    weight_bytes = 2 * (3 * D * D + D * D + 2 * D * mlp_dim) \
        + 4 * (6 * D + mlp_dim + 3)
    bytes_accessed = 4 * 2 * B * N * D + weight_bytes

    # generation-aware scoped-VMEM limit: ~75% of physical capacity
    # (48 MiB on v7x's 64 MiB VMEM, 96 MiB on v5e/v6e's 128 MiB).
    try:
        vmem_cap = pltpu.get_tpu_info().vmem_capacity_bytes
    except Exception:
        vmem_cap = 64 << 20          # conservative (v7x) fallback
    vmem_limit = max(32 << 20, int(0.75 * vmem_cap))

    return pl.pallas_call(
        kernel,
        out_shape=jax.ShapeDtypeStruct((B, N, D), x.dtype),
        grid=(B,),
        in_specs=[
            pl.BlockSpec((1, N, D), lambda i: (i, 0, 0)),   # x
            full((1, D)), full((1, D)),                     # ln1 gamma / beta
            full((D, 3 * D)),                               # w_qkv (bf16, pre-transposed)
            full((heads, hd, D)), full((1, D)),             # w_out (head-major), b_out
            pl.BlockSpec(memory_space=pltpu.MemorySpace.SMEM),  # [alpha, beta, gamma]
            full((1, D)), full((1, D)),                     # ln2 gamma / beta
            full((D, mlp_dim)), full((1, mlp_dim)),         # mlp w1, b1
            full((mlp_dim, D)), full((1, D)),               # mlp w2, b2
        ],
        out_specs=pl.BlockSpec((1, N, D), lambda i: (i, 0, 0)),
        compiler_params=pltpu.CompilerParams(
            dimension_semantics=("parallel",),              # 2 programs -> 2 TCs on v7x
            vmem_limit_bytes=vmem_limit),
        cost_estimate=pl.CostEstimate(flops=int(flops),
                                      transcendentals=int(transcendentals),
                                      bytes_accessed=int(bytes_accessed)),
    )(x, p["ln1_g"], p["ln1_b"], w_qkv, w_out_r, p["b_out"], p["abg"],
      p["ln2_g"], p["ln2_b"], w1, p["b1"], w2, p["b2"])


# ---------------------------- pure-JAX reference -----------------------------
# Faithful f32 / exact-erf reference matching the PyTorch module (matmuls at
# HIGHEST precision). The kernel deviates only by bf16 MXU operands, tanh GELU
# and the approx softmax reciprocal.
def sas_block_ref(x, p, *, heads):
    B, N, D = x.shape
    hd = D // heads
    hp = jax.lax.Precision.HIGHEST

    def ln(v, g, b, eps=1e-5):
        mu = v.mean(-1, keepdims=True)
        var = ((v - mu) ** 2).mean(-1, keepdims=True)
        return (v - mu) / jnp.sqrt(var + eps) * g + b

    h1 = ln(x, p["ln1_g"][0], p["ln1_b"][0])
    qkv = jnp.einsum("bnd,df->bnf", h1, p["w_qkv"], precision=hp)
    q, k, v = jnp.split(qkv, 3, axis=-1)
    split_heads = lambda t: t.reshape(B, N, heads, hd).transpose(0, 2, 1, 3)
    q, k, v = map(split_heads, (q, k, v))
    dots = jnp.einsum("bhnd,bhmd->bhnm", q, k, precision=hp) * (D ** -0.5)
    attn = jax.nn.softmax(dots, axis=-1)
    alpha, beta, gamma = p["abg"]
    shaped = alpha * jnp.eye(N) + beta * attn - gamma * (1.0 / N)
    out = jnp.einsum("bhnm,bhmd->bhnd", shaped, v, precision=hp)
    out = out.transpose(0, 2, 1, 3).reshape(B, N, D)
    out = jnp.einsum("bnd,df->bnf", out, p["w_out"], precision=hp) + p["b_out"][0]
    x2 = x + out
    h2 = ln(x2, p["ln2_g"][0], p["ln2_b"][0])
    hm = jax.nn.gelu(jnp.einsum("bnd,df->bnf", h2, p["w1"], precision=hp)
                     + p["b1"][0], approximate=False)
    hm = jnp.einsum("bnf,fd->bnd", hm, p["w2"], precision=hp) + p["b2"][0]
    return x2 + hm


if __name__ == "__main__":
    # small but lane-dense demo dims; N=64 so each matmul sees 64 MXU rows
    B, N, D, HEADS, MLP = 2, 64, 128, 4, 256

    key = jax.random.PRNGKey(0)
    keys = jax.random.split(key, 12)
    f32 = jnp.float32

    params = {
        # LayerNorm params (stored as (1, D) for clean VMEM layout)
        "ln1_g": 1.0 + 0.05 * jax.random.normal(keys[0], (1, D), f32),
        "ln1_b": 0.05 * jax.random.normal(keys[1], (1, D), f32),
        "ln2_g": 1.0 + 0.05 * jax.random.normal(keys[2], (1, D), f32),
        "ln2_b": 0.05 * jax.random.normal(keys[3], (1, D), f32),
        # to_qkv: PyTorch weight is (3D, D); we store the transpose (D, 3D)
        "w_qkv": 0.1 * jax.random.normal(keys[4], (D, 3 * D), f32),
        # to_out
        "w_out": 0.1 * jax.random.normal(keys[5], (D, D), f32),
        "b_out": 0.05 * jax.random.normal(keys[6], (1, D), f32),
        # shaped-attention scalars [alpha, beta, gamma] (module inits 1, 0, 0;
        # use nonzero beta/gamma here to exercise all terms)
        "abg": jnp.array([1.0, 0.5, 0.25], f32),
        # MLP
        "w1": 0.1 * jax.random.normal(keys[7], (D, MLP), f32),
        "b1": 0.05 * jax.random.normal(keys[8], (1, MLP), f32),
        "w2": 0.1 * jax.random.normal(keys[9], (MLP, D), f32),
        "b2": 0.05 * jax.random.normal(keys[10], (1, D), f32),
    }

    x = jax.random.normal(keys[11], (B, N, D), f32)

    out = jax.block_until_ready(sas_block(x, params, heads=HEADS))
    ref = jax.block_until_ready(sas_block_ref(x, params, heads=HEADS))

    assert out.shape == (B, N, D) and out.dtype == jnp.float32

    # Tolerances account for bf16 MXU operands + tanh GELU + approx reciprocal
    # vs. the full-f32 exact reference (expected max-abs deviation is a few e-2
    # at these activation scales); algorithmic errors would be O(1).
    max_abs = float(jnp.max(jnp.abs(out - ref)))
    rel_rms = float(jnp.sqrt(jnp.mean((out - ref) ** 2) / jnp.mean(ref ** 2)))
    assert max_abs < 1e-1 and rel_rms < 2.5e-2, (
        f"max abs diff = {max_abs}, rel rms = {rel_rms}")

    print("KERNEL_OK")
</pallas_src>

<mosaic_0001>
module attributes {stable_mosaic.version = 11 : i64} {
  func.func @sas_block_kernel(%arg0: i32, %arg1: memref<1x64x128xf32, #tpu.memory_space<vmem>>, %arg2: memref<1x128xf32, #tpu.memory_space<vmem>>, %arg3: memref<1x128xf32, #tpu.memory_space<vmem>>, %arg4: memref<128x384xbf16, #tpu.memory_space<vmem>>, %arg5: memref<4x32x128xbf16, #tpu.memory_space<vmem>>, %arg6: memref<1x128xf32, #tpu.memory_space<vmem>>, %arg7: memref<3xf32, #tpu.memory_space<smem>>, %arg8: memref<1x128xf32, #tpu.memory_space<vmem>>, %arg9: memref<1x128xf32, #tpu.memory_space<vmem>>, %arg10: memref<128x256xbf16, #tpu.memory_space<vmem>>, %arg11: memref<1x256xf32, #tpu.memory_space<vmem>>, %arg12: memref<256x128xbf16, #tpu.memory_space<vmem>>, %arg13: memref<1x128xf32, #tpu.memory_space<vmem>>, %arg14: memref<1x64x128xf32, #tpu.memory_space<vmem>>) attributes {dimension_semantics = [#tpu.dimension_semantics<parallel>], iteration_bounds = array<i64: 2>, scalar_prefetch = 0 : i64, scratch_operands = 0 : i64, tpu.core_type = #tpu.core_type<tc>, window_params = [{transform_indices = @transform_0, window_bounds = array<i64: 1, 64, 128>}, {pipeline_mode = #tpu.pipeline_mode<synchronous>, transform_indices = @transform_1, window_bounds = array<i64: 1, 128>}, {pipeline_mode = #tpu.pipeline_mode<synchronous>, transform_indices = @transform_2, window_bounds = array<i64: 1, 128>}, {pipeline_mode = #tpu.pipeline_mode<synchronous>, transform_indices = @transform_3, window_bounds = array<i64: 128, 384>}, {pipeline_mode = #tpu.pipeline_mode<synchronous>, transform_indices = @transform_4, window_bounds = array<i64: 4, 32, 128>}, {pipeline_mode = #tpu.pipeline_mode<synchronous>, transform_indices = @transform_5, window_bounds = array<i64: 1, 128>}, {transform_indices = @transform_6, window_bounds = array<i64: 3>}, {pipeline_mode = #tpu.pipeline_mode<synchronous>, transform_indices = @transform_7, window_bounds = array<i64: 1, 128>}, {pipeline_mode = #tpu.pipeline_mode<synchronous>, transform_indices = @transform_8, window_bounds = array<i64: 1, 128>}, {pipeline_mode = #tpu.pipeline_mode<synchronous>, transform_indices = @transform_9, window_bounds = array<i64: 128, 256>}, {pipeline_mode = #tpu.pipeline_mode<synchronous>, transform_indices = @transform_10, window_bounds = array<i64: 1, 256>}, {pipeline_mode = #tpu.pipeline_mode<synchronous>, transform_indices = @transform_11, window_bounds = array<i64: 256, 128>}, {pipeline_mode = #tpu.pipeline_mode<synchronous>, transform_indices = @transform_12, window_bounds = array<i64: 1, 128>}, {transform_indices = @transform_13, window_bounds = array<i64: 1, 64, 128>}]} {
    %c0 = arith.constant 0 : index
    %0 = memref.load %arg7[%c0] : memref<3xf32, #tpu.memory_space<smem>>
    %c1 = arith.constant 1 : index
    %1 = memref.load %arg7[%c1] : memref<3xf32, #tpu.memory_space<smem>>
    %c2 = arith.constant 2 : index
    %2 = memref.load %arg7[%c2] : memref<3xf32, #tpu.memory_space<smem>>
    %cst = arith.constant 1.562500e-02 : f32
    %3 = arith.mulf %2, %cst : f32
    %c0_0 = arith.constant 0 : index
    %c0_1 = arith.constant 0 : index
    %c0_2 = arith.constant 0 : index
    %4 = vector.load %arg1[%c0_0, %c0_1, %c0_2] : memref<1x64x128xf32, #tpu.memory_space<vmem>>, vector<1x64x128xf32>
    %5 = vector.shape_cast %4 : vector<1x64x128xf32> to vector<64x128xf32>
    %c0_3 = arith.constant 0 : index
    %c0_4 = arith.constant 0 : index
    %6 = vector.load %arg2[%c0_3, %c0_4] : memref<1x128xf32, #tpu.memory_space<vmem>>, vector<1x128xf32>
    %7 = vector.shape_cast %6 : vector<1x128xf32> to vector<128xf32>
    %c0_5 = arith.constant 0 : index
    %c0_6 = arith.constant 0 : index
    %8 = vector.load %arg3[%c0_5, %c0_6] : memref<1x128xf32, #tpu.memory_space<vmem>>, vector<1x128xf32>
    %9 = vector.shape_cast %8 : vector<1x128xf32> to vector<128xf32>
    %cst_7 = arith.constant dense<0.000000e+00> : vector<64xf32>
    %10 = vector.multi_reduction <add>, %5, %cst_7 [1] : vector<64x128xf32> to vector<64xf32>
    %11 = vector.shape_cast %10 : vector<64xf32> to vector<64x1xf32>
    %12 = arith.mulf %5, %5 : vector<64x128xf32>
    %cst_8 = arith.constant dense<0.000000e+00> : vector<64xf32>
    %13 = vector.multi_reduction <add>, %12, %cst_8 [1] : vector<64x128xf32> to vector<64xf32>
    %14 = vector.shape_cast %13 : vector<64xf32> to vector<64x1xf32>
    %cst_9 = arith.constant 7.812500e-03 : f32
    %15 = vector.broadcast %cst_9 : f32 to vector<64x1xf32>
    %16 = arith.mulf %11, %15 : vector<64x1xf32>
    %cst_10 = arith.constant 7.812500e-03 : f32
    %17 = vector.broadcast %cst_10 : f32 to vector<64x1xf32>
    %18 = arith.mulf %14, %17 : vector<64x1xf32>
    %19 = arith.mulf %16, %16 : vector<64x1xf32>
    %20 = arith.subf %18, %19 : vector<64x1xf32>
    %21 = vector.broadcast %16 : vector<64x1xf32> to vector<64x128xf32>
    %22 = arith.subf %5, %21 : vector<64x128xf32>
    %cst_11 = arith.constant 9.99999974E-6 : f32
    %23 = vector.broadcast %cst_11 : f32 to vector<64x1xf32>
    %24 = arith.addf %20, %23 : vector<64x1xf32>
    %25 = math.rsqrt %24 : vector<64x1xf32>
    %26 = vector.broadcast %25 : vector<64x1xf32> to vector<64x128xf32>
    %27 = arith.mulf %22, %26 : vector<64x128xf32>
    %28 = vector.shape_cast %7 : vector<128xf32> to vector<1x128xf32>
    %29 = vector.broadcast %28 : vector<1x128xf32> to vector<64x128xf32>
    %30 = arith.mulf %27, %29 : vector<64x128xf32>
    %31 = vector.shape_cast %9 : vector<128xf32> to vector<1x128xf32>
    %32 = vector.broadcast %31 : vector<1x128xf32> to vector<64x128xf32>
    %33 = arith.addf %30, %32 : vector<64x128xf32>
    %34 = arith.truncf %33 : vector<64x128xf32> to vector<64x128xbf16>
    %c0_12 = arith.constant 0 : index
    %c0_13 = arith.constant 0 : index
    %35 = vector.load %arg4[%c0_12, %c0_13] : memref<128x384xbf16, #tpu.memory_space<vmem>>, vector<128x384xbf16>
    %cst_14 = arith.constant dense<0.000000e+00> : vector<64x384xf32>
    %36 = tpu.matmul %34, %35, %cst_14 {dimension_numbers = #tpu.dot_dimension_numbers<[1], [0], [0], [1], [0, 0, 1, 1], [], []>} : vector<64x128xbf16>, vector<128x384xbf16>, vector<64x384xf32> -> vector<64x384xf32>
    %37 = vector.extract_strided_slice %36 {offsets = [0, 0], sizes = [64, 32], strides = [1, 1]} : vector<64x384xf32> to vector<64x32xf32>
    %38 = vector.extract_strided_slice %36 {offsets = [0, 32], sizes = [64, 32], strides = [1, 1]} : vector<64x384xf32> to vector<64x32xf32>
    %39 = vector.extract_strided_slice %36 {offsets = [0, 64], sizes = [64, 32], strides = [1, 1]} : vector<64x384xf32> to vector<64x32xf32>
    %40 = vector.extract_strided_slice %36 {offsets = [0, 96], sizes = [64, 32], strides = [1, 1]} : vector<64x384xf32> to vector<64x32xf32>
    %41 = vector.shape_cast %37 : vector<64x32xf32> to vector<1x64x32xf32>
    %42 = vector.shape_cast %38 : vector<64x32xf32> to vector<1x64x32xf32>
    %43 = vector.shape_cast %39 : vector<64x32xf32> to vector<1x64x32xf32>
    %44 = vector.shape_cast %40 : vector<64x32xf32> to vector<1x64x32xf32>
    %45 = tpu.concatenate %41, %42, %43, %44 in 0 : vector<1x64x32xf32>, vector<1x64x32xf32>, vector<1x64x32xf32>, vector<1x64x32xf32> -> vector<4x64x32xf32>
    %cst_15 = arith.constant 0.0883883461 : f32
    %46 = vector.broadcast %cst_15 : f32 to vector<4x64x32xf32>
    %47 = arith.mulf %45, %46 : vector<4x64x32xf32>
    %48 = vector.extract_strided_slice %36 {offsets = [0, 128], sizes = [64, 32], strides = [1, 1]} : vector<64x384xf32> to vector<64x32xf32>
    %49 = vector.extract_strided_slice %36 {offsets = [0, 160], sizes = [64, 32], strides = [1, 1]} : vector<64x384xf32> to vector<64x32xf32>
    %50 = vector.extract_strided_slice %36 {offsets = [0, 192], sizes = [64, 32], strides = [1, 1]} : vector<64x384xf32> to vector<64x32xf32>
    %51 = vector.extract_strided_slice %36 {offsets = [0, 224], sizes = [64, 32], strides = [1, 1]} : vector<64x384xf32> to vector<64x32xf32>
    %52 = vector.shape_cast %48 : vector<64x32xf32> to vector<1x64x32xf32>
    %53 = vector.shape_cast %49 : vector<64x32xf32> to vector<1x64x32xf32>
    %54 = vector.shape_cast %50 : vector<64x32xf32> to vector<1x64x32xf32>
    %55 = vector.shape_cast %51 : vector<64x32xf32> to vector<1x64x32xf32>
    %56 = tpu.concatenate %52, %53, %54, %55 in 0 : vector<1x64x32xf32>, vector<1x64x32xf32>, vector<1x64x32xf32>, vector<1x64x32xf32> -> vector<4x64x32xf32>
    %57 = vector.extract_strided_slice %36 {offsets = [0, 256], sizes = [64, 32], strides = [1, 1]} : vector<64x384xf32> to vector<64x32xf32>
    %58 = vector.extract_strided_slice %36 {offsets = [0, 288], sizes = [64, 32], strides = [1, 1]} : vector<64x384xf32> to vector<64x32xf32>
    %59 = vector.extract_strided_slice %36 {offsets = [0, 320], sizes = [64, 32], strides = [1, 1]} : vector<64x384xf32> to vector<64x32xf32>
    %60 = vector.extract_strided_slice %36 {offsets = [0, 352], sizes = [64, 32], strides = [1, 1]} : vector<64x384xf32> to vector<64x32xf32>
    %61 = vector.shape_cast %57 : vector<64x32xf32> to vector<1x64x32xf32>
    %62 = vector.shape_cast %58 : vector<64x32xf32> to vector<1x64x32xf32>
    %63 = vector.shape_cast %59 : vector<64x32xf32> to vector<1x64x32xf32>
    %64 = vector.shape_cast %60 : vector<64x32xf32> to vector<1x64x32xf32>
    %65 = tpu.concatenate %61, %62, %63, %64 in 0 : vector<1x64x32xf32>, vector<1x64x32xf32>, vector<1x64x32xf32>, vector<1x64x32xf32> -> vector<4x64x32xf32>
    %66 = arith.truncf %47 : vector<4x64x32xf32> to vector<4x64x32xbf16>
    %67 = arith.truncf %56 : vector<4x64x32xf32> to vector<4x64x32xbf16>
    "tpu.trace_start"() <{level = 10 : i32, message = "hqd,hkd->hqk"}> : () -> ()
    %cst_16 = arith.constant dense<0.000000e+00> : vector<4x64x64xf32>
    %68 = tpu.matmul %66, %67, %cst_16 {dimension_numbers = #tpu.dot_dimension_numbers<[2], [2], [1], [1], [0, 0, 0, 1, 1, 1], [0], [0]>} : vector<4x64x32xbf16>, vector<4x64x32xbf16>, vector<4x64x64xf32> -> vector<4x64x64xf32>
    "tpu.trace_stop"() : () -> ()
    %cst_17 = arith.constant dense<0xFF800000> : vector<4x64xf32>
    %69 = vector.multi_reduction <maximumf>, %68, %cst_17 [2] : vector<4x64x64xf32> to vector<4x64xf32>
    %70 = vector.shape_cast %69 : vector<4x64xf32> to vector<4x64x1xf32>
    %71 = vector.broadcast %70 : vector<4x64x1xf32> to vector<4x64x64xf32>
    %72 = arith.subf %68, %71 : vector<4x64x64xf32>
    %73 = math.exp %72 : vector<4x64x64xf32>
    %cst_18 = arith.constant dense<0.000000e+00> : vector<4x64xf32>
    %74 = vector.multi_reduction <add>, %73, %cst_18 [2] : vector<4x64x64xf32> to vector<4x64xf32>
    %75 = vector.shape_cast %74 : vector<4x64xf32> to vector<4x64x1xf32>
    %76 = tpu.reciprocal %75 {approx = true} : vector<4x64x1xf32> -> vector<4x64x1xf32>
    %77 = vector.broadcast %76 : vector<4x64x1xf32> to vector<4x64x64xf32>
    %78 = arith.mulf %73, %77 : vector<4x64x64xf32>
    %79 = arith.truncf %78 : vector<4x64x64xf32> to vector<4x64x64xbf16>
    %80 = arith.truncf %65 : vector<4x64x32xf32> to vector<4x64x32xbf16>
    "tpu.trace_start"() <{level = 10 : i32, message = "hqk,hkd->hqd"}> : () -> ()
    %cst_19 = arith.constant dense<0.000000e+00> : vector<4x64x32xf32>
    %81 = tpu.matmul %79, %80, %cst_19 {dimension_numbers = #tpu.dot_dimension_numbers<[2], [1], [1], [2], [0, 0, 0, 1, 1, 2], [0], [0]>} : vector<4x64x64xbf16>, vector<4x64x32xbf16>, vector<4x64x32xf32> -> vector<4x64x32xf32>
    "tpu.trace_stop"() : () -> ()
    %82 = vector.broadcast %0 : f32 to vector<4x64x32xf32>
    %83 = arith.mulf %82, %65 : vector<4x64x32xf32>
    %84 = vector.broadcast %1 : f32 to vector<4x64x32xf32>
    %85 = arith.mulf %84, %81 : vector<4x64x32xf32>
    %86 = arith.addf %83, %85 : vector<4x64x32xf32>
    %cst_20 = arith.constant dense<0.000000e+00> : vector<4x32xf32>
    %87 = vector.multi_reduction <add>, %65, %cst_20 [1] : vector<4x64x32xf32> to vector<4x32xf32>
    %88 = vector.shape_cast %87 : vector<4x32xf32> to vector<4x1x32xf32>
    %89 = vector.broadcast %3 : f32 to vector<4x1x32xf32>
    %90 = arith.mulf %89, %88 : vector<4x1x32xf32>
    %91 = vector.broadcast %90 : vector<4x1x32xf32> to vector<4x64x32xf32>
    %92 = arith.subf %86, %91 : vector<4x64x32xf32>
    %93 = arith.truncf %92 : vector<4x64x32xf32> to vector<4x64x32xbf16>
    %c0_21 = arith.constant 0 : index
    %c0_22 = arith.constant 0 : index
    %c0_23 = arith.constant 0 : index
    %94 = vector.load %arg5[%c0_21, %c0_22, %c0_23] : memref<4x32x128xbf16, #tpu.memory_space<vmem>>, vector<4x32x128xbf16>
    "tpu.trace_start"() <{level = 10 : i32, message = "hnk,hkd->hnd"}> : () -> ()
    %cst_24 = arith.constant dense<0.000000e+00> : vector<4x64x128xf32>
    %95 = tpu.matmul %93, %94, %cst_24 {dimension_numbers = #tpu.dot_dimension_numbers<[2], [1], [1], [2], [0, 0, 0, 1, 1, 2], [0], [0]>} : vector<4x64x32xbf16>, vector<4x32x128xbf16>, vector<4x64x128xf32> -> vector<4x64x128xf32>
    "tpu.trace_stop"() : () -> ()
    %cst_25 = arith.constant dense<0.000000e+00> : vector<64x128xf32>
    %96 = vector.multi_reduction <add>, %95, %cst_25 [0] : vector<4x64x128xf32> to vector<64x128xf32>
    %97 = arith.addf %5, %96 : vector<64x128xf32>
    %c0_26 = arith.constant 0 : index
    %c0_27 = arith.constant 0 : index
    %98 = vector.load %arg6[%c0_26, %c0_27] : memref<1x128xf32, #tpu.memory_space<vmem>>, vector<1x128xf32>
    %99 = vector.shape_cast %98 : vector<1x128xf32> to vector<128xf32>
    %100 = vector.shape_cast %99 : vector<128xf32> to vector<1x128xf32>
    %101 = vector.broadcast %100 : vector<1x128xf32> to vector<64x128xf32>
    %102 = arith.addf %97, %101 : vector<64x128xf32>
    %c0_28 = arith.constant 0 : index
    %c0_29 = arith.constant 0 : index
    %103 = vector.load %arg8[%c0_28, %c0_29] : memref<1x128xf32, #tpu.memory_space<vmem>>, vector<1x128xf32>
    %104 = vector.shape_cast %103 : vector<1x128xf32> to vector<128xf32>
    %c0_30 = arith.constant 0 : index
    %c0_31 = arith.constant 0 : index
    %105 = vector.load %arg9[%c0_30, %c0_31] : memref<1x128xf32, #tpu.memory_space<vmem>>, vector<1x128xf32>
    %106 = vector.shape_cast %105 : vector<1x128xf32> to vector<128xf32>
    %cst_32 = arith.constant dense<0.000000e+00> : vector<64xf32>
    %107 = vector.multi_reduction <add>, %102, %cst_32 [1] : vector<64x128xf32> to vector<64xf32>
    %108 = vector.shape_cast %107 : vector<64xf32> to vector<64x1xf32>
    %109 = arith.mulf %102, %102 : vector<64x128xf32>
    %cst_33 = arith.constant dense<0.000000e+00> : vector<64xf32>
    %110 = vector.multi_reduction <add>, %109, %cst_33 [1] : vector<64x128xf32> to vector<64xf32>
    %111 = vector.shape_cast %110 : vector<64xf32> to vector<64x1xf32>
    %cst_34 = arith.constant 7.812500e-03 : f32
    %112 = vector.broadcast %cst_34 : f32 to vector<64x1xf32>
    %113 = arith.mulf %108, %112 : vector<64x1xf32>
    %cst_35 = arith.constant 7.812500e-03 : f32
    %114 = vector.broadcast %cst_35 : f32 to vector<64x1xf32>
    %115 = arith.mulf %111, %114 : vector<64x1xf32>
    %116 = arith.mulf %113, %113 : vector<64x1xf32>
    %117 = arith.subf %115, %116 : vector<64x1xf32>
    %118 = vector.broadcast %113 : vector<64x1xf32> to vector<64x128xf32>
    %119 = arith.subf %102, %118 : vector<64x128xf32>
    %cst_36 = arith.constant 9.99999974E-6 : f32
    %120 = vector.broadcast %cst_36 : f32 to vector<64x1xf32>
    %121 = arith.addf %117, %120 : vector<64x1xf32>
    %122 = math.rsqrt %121 : vector<64x1xf32>
    %123 = vector.broadcast %122 : vector<64x1xf32> to vector<64x128xf32>
    %124 = arith.mulf %119, %123 : vector<64x128xf32>
    %125 = vector.shape_cast %104 : vector<128xf32> to vector<1x128xf32>
    %126 = vector.broadcast %125 : vector<1x128xf32> to vector<64x128xf32>
    %127 = arith.mulf %124, %126 : vector<64x128xf32>
    %128 = vector.shape_cast %106 : vector<128xf32> to vector<1x128xf32>
    %129 = vector.broadcast %128 : vector<1x128xf32> to vector<64x128xf32>
    %130 = arith.addf %127, %129 : vector<64x128xf32>
    %131 = arith.truncf %130 : vector<64x128xf32> to vector<64x128xbf16>
    %c0_37 = arith.constant 0 : index
    %c0_38 = arith.constant 0 : index
    %132 = vector.load %arg10[%c0_37, %c0_38] : memref<128x256xbf16, #tpu.memory_space<vmem>>, vector<128x256xbf16>
    %cst_39 = arith.constant dense<0.000000e+00> : vector<64x256xf32>
    %133 = tpu.matmul %131, %132, %cst_39 {dimension_numbers = #tpu.dot_dimension_numbers<[1], [0], [0], [1], [0, 0, 1, 1], [], []>} : vector<64x128xbf16>, vector<128x256xbf16>, vector<64x256xf32> -> vector<64x256xf32>
    %c0_40 = arith.constant 0 : index
    %c0_41 = arith.constant 0 : index
    %134 = vector.load %arg11[%c0_40, %c0_41] : memref<1x256xf32, #tpu.memory_space<vmem>>, vector<1x256xf32>
    %135 = vector.shape_cast %134 : vector<1x256xf32> to vector<256xf32>
    %136 = vector.shape_cast %135 : vector<256xf32> to vector<1x256xf32>
    %137 = vector.broadcast %136 : vector<1x256xf32> to vector<64x256xf32>
    %138 = arith.addf %133, %137 : vector<64x256xf32>
    %139 = arith.mulf %138, %138 : vector<64x256xf32>
    %140 = arith.mulf %138, %139 : vector<64x256xf32>
    %cst_42 = arith.constant 4.471500e-02 : f32
    %141 = vector.broadcast %cst_42 : f32 to vector<64x256xf32>
    %142 = arith.mulf %141, %140 : vector<64x256xf32>
    %143 = arith.addf %138, %142 : vector<64x256xf32>
    %cst_43 = arith.constant 0.797884583 : f32
    %144 = vector.broadcast %cst_43 : f32 to vector<64x256xf32>
    %145 = arith.mulf %144, %143 : vector<64x256xf32>
    %146 = math.tanh %145 : vector<64x256xf32>
    %cst_44 = arith.constant 1.000000e+00 : f32
    %147 = vector.broadcast %cst_44 : f32 to vector<64x256xf32>
    %148 = arith.addf %147, %146 : vector<64x256xf32>
    %cst_45 = arith.constant 5.000000e-01 : f32
    %149 = vector.broadcast %cst_45 : f32 to vector<64x256xf32>
    %150 = arith.mulf %149, %148 : vector<64x256xf32>
    %151 = arith.mulf %138, %150 : vector<64x256xf32>
    %152 = arith.truncf %151 : vector<64x256xf32> to vector<64x256xbf16>
    %c0_46 = arith.constant 0 : index
    %c0_47 = arith.constant 0 : index
    %153 = vector.load %arg12[%c0_46, %c0_47] : memref<256x128xbf16, #tpu.memory_space<vmem>>, vector<256x128xbf16>
    %cst_48 = arith.constant dense<0.000000e+00> : vector<64x128xf32>
    %154 = tpu.matmul %152, %153, %cst_48 {dimension_numbers = #tpu.dot_dimension_numbers<[1], [0], [0], [1], [0, 0, 1, 1], [], []>} : vector<64x256xbf16>, vector<256x128xbf16>, vector<64x128xf32> -> vector<64x128xf32>
    %c0_49 = arith.constant 0 : index
    %c0_50 = arith.constant 0 : index
    %155 = vector.load %arg13[%c0_49, %c0_50] : memref<1x128xf32, #tpu.memory_space<vmem>>, vector<1x128xf32>
    %156 = vector.shape_cast %155 : vector<1x128xf32> to vector<128xf32>
    %157 = vector.shape_cast %156 : vector<128xf32> to vector<1x128xf32>
    %158 = vector.broadcast %157 : vector<1x128xf32> to vector<64x128xf32>
    %159 = arith.addf %154, %158 : vector<64x128xf32>
    %160 = arith.addf %102, %159 : vector<64x128xf32>
    %c0_51 = arith.constant 0 : index
    %c0_52 = arith.constant 0 : index
    %c0_53 = arith.constant 0 : index
    %161 = vector.load %arg14[%c0_51, %c0_52, %c0_53] : memref<1x64x128xf32, #tpu.memory_space<vmem>>, vector<1x64x128xf32>
    %162 = vector.shape_cast %161 : vector<1x64x128xf32> to vector<64x128xf32>
    %163 = vector.shape_cast %160 : vector<64x128xf32> to vector<1x64x128xf32>
    tpu.vector_store %arg14[%c0_51, %c0_52, %c0_53], %163 {strides = array<i32>} : memref<1x64x128xf32, #tpu.memory_space<vmem>>, vector<1x64x128xf32>,
    return
  }
  func.func @transform_0(%arg0: i32) -> (i32, i32, i32) {
    %c0_i32 = arith.constant 0 : i32
    %c0_i32_0 = arith.constant 0 : i32
    %c0_i32_1 = arith.constant 0 : i32
    return %arg0, %c0_i32, %c0_i32_0 : i32, i32, i32
  }
  func.func @transform_1(%arg0: i32) -> (i32, i32) {
    %c0_i32 = arith.constant 0 : i32
    %c0_i32_0 = arith.constant 0 : i32
    %c0_i32_1 = arith.constant 0 : i32
    return %c0_i32, %c0_i32_0 : i32, i32
  }
  func.func @transform_2(%arg0: i32) -> (i32, i32) {
    %c0_i32 = arith.constant 0 : i32
    %c0_i32_0 = arith.constant 0 : i32
    %c0_i32_1 = arith.constant 0 : i32
    return %c0_i32, %c0_i32_0 : i32, i32
  }
  func.func @transform_3(%arg0: i32) -> (i32, i32) {
    %c0_i32 = arith.constant 0 : i32
    %c0_i32_0 = arith.constant 0 : i32
    %c0_i32_1 = arith.constant 0 : i32
    return %c0_i32, %c0_i32_0 : i32, i32
  }
  func.func @transform_4(%arg0: i32) -> (i32, i32, i32) {
    %c0_i32 = arith.constant 0 : i32
    %c0_i32_0 = arith.constant 0 : i32
    %c0_i32_1 = arith.constant 0 : i32
    %c0_i32_2 = arith.constant 0 : i32
    return %c0_i32, %c0_i32_0, %c0_i32_1 : i32, i32, i32
  }
  func.func @transform_5(%arg0: i32) -> (i32, i32) {
    %c0_i32 = arith.constant 0 : i32
    %c0_i32_0 = arith.constant 0 : i32
    %c0_i32_1 = arith.constant 0 : i32
    return %c0_i32, %c0_i32_0 : i32, i32
  }
  func.func @transform_6(%arg0: i32) -> i32 {
    %c0_i32 = arith.constant 0 : i32
    %c0_i32_0 = arith.constant 0 : i32
    return %c0_i32 : i32
  }
  func.func @transform_7(%arg0: i32) -> (i32, i32) {
    %c0_i32 = arith.constant 0 : i32
    %c0_i32_0 = arith.constant 0 : i32
    %c0_i32_1 = arith.constant 0 : i32
    return %c0_i32, %c0_i32_0 : i32, i32
  }
  func.func @transform_8(%arg0: i32) -> (i32, i32) {
    %c0_i32 = arith.constant 0 : i32
    %c0_i32_0 = arith.constant 0 : i32
    %c0_i32_1 = arith.constant 0 : i32
    return %c0_i32, %c0_i32_0 : i32, i32
  }
  func.func @transform_9(%arg0: i32) -> (i32, i32) {
    %c0_i32 = arith.constant 0 : i32
    %c0_i32_0 = arith.constant 0 : i32
    %c0_i32_1 = arith.constant 0 : i32
    return %c0_i32, %c0_i32_0 : i32, i32
  }
  func.func @transform_10(%arg0: i32) -> (i32, i32) {
    %c0_i32 = arith.constant 0 : i32
    %c0_i32_0 = arith.constant 0 : i32
    %c0_i32_1 = arith.constant 0 : i32
    return %c0_i32, %c0_i32_0 : i32, i32
  }
  func.func @transform_11(%arg0: i32) -> (i32, i32) {
    %c0_i32 = arith.constant 0 : i32
    %c0_i32_0 = arith.constant 0 : i32
    %c0_i32_1 = arith.constant 0 : i32
    return %c0_i32, %c0_i32_0 : i32, i32
  }
  func.func @transform_12(%arg0: i32) -> (i32, i32) {
    %c0_i32 = arith.constant 0 : i32
    %c0_i32_0 = arith.constant 0 : i32
    %c0_i32_1 = arith.constant 0 : i32
    return %c0_i32, %c0_i32_0 : i32, i32
  }
  func.func @transform_13(%arg0: i32) -> (i32, i32, i32) {
    %c0_i32 = arith.constant 0 : i32
    %c0_i32_0 = arith.constant 0 : i32
    %c0_i32_1 = arith.constant 0 : i32
    return %arg0, %c0_i32, %c0_i32_0 : i32, i32, i32
  }
}

</mosaic_0001>

<llo_original>
// kernel: tpu_custom_call.1
$region0: #{tpu_custom_call.1}
  #allocation0 [shape = 'u32[]', space=smem, size = 0x4, offset = 0x4, fixed_abs, tag = 'smem constant byte address 0x4 - core index']
  #allocation1 [shape = 'u32[72,128]{1,0:T(1,128)}', space=vmem, size = 0x9000, scoped, tag = 'internal scratch']
  %s0 = inlined_call_operand.hbm [shape: f32[2,64,128], index: 0, kind: input, shape index: {}]
  %s1 = inlined_call_operand.hbm [shape: f32[1,128], index: 1, kind: input, shape index: {}]
  %s2 = inlined_call_operand.vmem [shape: f32[1,128], index: 2, kind: input, shape index: {}]
  %s3 = inlined_call_operand.hbm [shape: bf16[128,384], index: 3, kind: input, shape index: {}]
  %s4 = inlined_call_operand.hbm [shape: bf16[4,32,128], index: 4, kind: input, shape index: {}]
  %s5 = inlined_call_operand.vmem [shape: f32[1,128], index: 5, kind: input, shape index: {}]
  %s6 = inlined_call_operand.vmem [shape: f32[3], index: 6, kind: input, shape index: {}]
  %s7 = inlined_call_operand.vmem [shape: f32[1,128], index: 7, kind: input, shape index: {}]
  %s8 = inlined_call_operand.vmem [shape: f32[1,128], index: 8, kind: input, shape index: {}]
  %s9 = inlined_call_operand.hbm [shape: bf16[128,256], index: 9, kind: input, shape index: {}]
  %s10 = inlined_call_operand.vmem [shape: f32[1,256], index: 10, kind: input, shape index: {}]
  %s11 = inlined_call_operand.hbm [shape: bf16[256,128], index: 11, kind: input, shape index: {}]
  %s12 = inlined_call_operand.vmem [shape: f32[1,128], index: 12, kind: input, shape index: {}]
  %s13 = inlined_call_operand.hbm [shape: f32[2,64,128], index: 13, kind: output, shape index: {}]
  %s14 = sld [smem:[#allocation0]]
  $region113: #{tpu_custom_call.1} parent=0
    _
  %s16 = ssub.s32 1, %s14
  %s17 = scalar_select 0, %s16, %s14
  $region1: #{tpu_custom_call.1} parent=0
    #allocation2 [shape = 'u8[65536]{0}', space=vmem, size = 0x10000, scoped, tag = 'input window, operand 0']
    #allocation3 [shape = 's32[2]{0}', space=sflag, size = 0x8, scoped, tag = 'scoped memory for tpu_custom_call.1']
    #allocation4 [shape = 's32[2]{0}', space=sflag, size = 0x8, scoped, tag = 'scoped memory for tpu_custom_call.1']
    #allocation5 [shape = 's32[2]{0}', space=sflag, size = 0x8, scoped, tag = 'scoped memory for tpu_custom_call.1']
    #allocation6 [shape = 'u8[512]{0}', space=vmem, size = 0x400, scoped, tag = 'input window, operand 1, single buffered']
    #allocation7 [shape = 's32[1]{0}', space=sflag, size = 0x4, scoped, tag = 'scoped memory for tpu_custom_call.1']
    #allocation8 [shape = 'u8[98304]{0}', space=vmem, size = 0x18000, scoped, tag = 'input window, operand 3, single buffered']
    #allocation9 [shape = 'u8[32768]{0}', space=vmem, size = 0x8000, scoped, tag = 'input window, operand 4, single buffered']
    #allocation10 [shape = 's32[1]{0}', space=sflag, size = 0x4, scoped, tag = 'scoped memory for tpu_custom_call.1']
    #allocation11 [shape = 'u8[512]{0}', space=smem, size = 0x200, scoped, tag = 'input window, operand 6, single buffered']
    #allocation12 [shape = 'u8[65536]{0}', space=vmem, size = 0x10000, scoped, tag = 'input window, operand 9, single buffered']
    #allocation13 [shape = 'u8[65536]{0}', space=vmem, size = 0x10000, scoped, tag = 'input window, operand 11, single buffered']
    #allocation14 [shape = 's32[1]{0}', space=sflag, size = 0x4, scoped, tag = 'scoped memory for tpu_custom_call.1']
    #allocation15 [shape = 'u8[65536]{0}', space=vmem, size = 0x10000, scoped, tag = 'output window, operand 0']
    %18 = vsyncpa [#allocation3], 0
    %s19 = scalar_lea.sflag [#allocation3], 1
    %20 = vsyncpa %s19, 0
    %21 = vsyncpa [#allocation7], 0
    %22 = vsyncpa [#allocation10], 0
    %23 = vsyncpa [#allocation5], 0
    %24 = vsyncpa [#allocation14], 0
    %25 = vsyncpa [#allocation4], 0
    %s26 = scalar_lea.sflag [#allocation4], 1
    %27 = vsyncpa %s26, 0
    loop: start=0, step=1, limit=4
    $region2: #{tpu_custom_call.1} parent=1 // loop_pre_header
      _
    $region3: #{tpu_custom_call.1} parent=1 // loop_header
      %s29 = sphi 0, %s33
      %p30 = scmp.ge.s32.totalorder %s29, 4
      %s39 = sphi 0, %s41
      %s42 = sphi 0, %s39
      %s43 = sphi 0, %s42
      %s59 = sphi 0, %s43
      %s63 = sphi 0, %s63
      %s65 = sphi 0, %s63
      %s66 = sphi 0, %s65
      %s80 = sphi 0, %s66
      %s84 = sphi 0, %s84
      %s86 = sphi 0, %s84
      %s87 = sphi 0, %s86
      %s101 = sphi 0, %s87
      %s105 = sphi 0, %s105
      %s107 = sphi 0, %s105
      %s108 = sphi 0, %s107
      %s122 = sphi 0, %s108
      %s126 = sphi 0, %s126
      %s128 = sphi 0, %s126
      %s129 = sphi 0, %s128
      %s143 = sphi 0, %s129
      %s147 = sphi 0, %s147
      %s149 = sphi 0, %s147
      %s150 = sphi 0, %s149
      %s164 = sphi 0, %s150
      %s168 = sphi 0, %s168
      %s170 = sphi 0, %s168
      %s171 = sphi 0, %s170
      %s185 = sphi 0, %s171
      %s189 = sphi 0, %s189
      %s191 = sphi 0, %s189
      %s192 = sphi 0, %s191
      %s206 = sphi 0, %s192
      %s210 = sphi 0, %s210
      %s212 = sphi 0, %s210
      %s213 = sphi 0, %s212
      %s227 = sphi 0, %s213
      %s231 = sphi 0, %s231
      %s233 = sphi 0, %s231
      %s234 = sphi 0, %s233
      %s248 = sphi 0, %s234
      %s252 = sphi 0, %s252
      %s254 = sphi 0, %s252
      %s255 = sphi 0, %s254
      %s269 = sphi 0, %s255
      %s273 = sphi 0, %s273
      %s275 = sphi 0, %s273
      %s276 = sphi 0, %s275
      %s290 = sphi 0, %s276
      %s294 = sphi 0, %s294
      %s296 = sphi 0, %s294
      %s297 = sphi 0, %s296
      %s311 = sphi 0, %s297
      %s317 = sphi 0, %s319
      %s320 = sphi 0, %s317
      %s321 = sphi 0, %s320
      %s337 = sphi 0, %s321
    $region4: #{tpu_custom_call.1} parent=1 // loop_header_branch
      %32 = sbr.rel (%p30) target = $region8
    $region5: #{tpu_custom_call.1} parent=1 // loop_body
      %s34 = ssub.s32 %s29, 1
      %s35 = ssub.s32 %s29, 2
      %s36 = sadd.s32 %s29, 1
      %s37 = ssub.s32 %s29, %s36
      %p38 = scmp.eq.s32.totalorder %s37, 0
      %s40 = sadd.s32 %s39, 1
      %s41 = scalar_select %p38, %s39, %s40
      %p44 = pneg %p38
      %p45 = scmp.eq.s32.totalorder %s29, 1
      %p46 = por %p44, %p45
      %p47 = scmp.ne.s32.totalorder %s39, %s42
      %p48 = scmp.eq.s32.totalorder %s29, 0
      %p49 = por %p47, %p48
      %p50 = scmp.ne.s32.totalorder %s39, %s42
      %p51 = scmp.eq.s32.totalorder %s34, 1
      %p52 = por %p50, %p51
      %p53 = scmp.ne.s32.totalorder %s42, %s43
      %p54 = scmp.eq.s32.totalorder %s34, 0
      %p55 = por %p53, %p54
      %p56 = scmp.ne.s32.totalorder %s42, %s43
      %p57 = scmp.eq.s32.totalorder %s35, 1
      %p58 = por %p56, %p57
      %p60 = scmp.ne.s32.totalorder %s43, %s59
      %p61 = scmp.eq.s32.totalorder %s35, 0
      %p62 = por %p60, %p61
      %s64 = sadd.s32 %s63, 1
      %p67 = scmp.eq.s32.totalorder %s29, 1
      %p68 = scmp.ne.s32.totalorder %s63, %s65
      %p69 = scmp.eq.s32.totalorder %s29, 0
      %p70 = por %p68, %p69
      %p71 = scmp.ne.s32.totalorder %s63, %s65
      %p72 = scmp.eq.s32.totalorder %s34, 1
      %p73 = por %p71, %p72
      %p74 = scmp.ne.s32.totalorder %s65, %s66
      %p75 = scmp.eq.s32.totalorder %s34, 0
      %p76 = por %p74, %p75
      %p77 = scmp.ne.s32.totalorder %s65, %s66
      %p78 = scmp.eq.s32.totalorder %s35, 1
      %p79 = por %p77, %p78
      %p81 = scmp.ne.s32.totalorder %s66, %s80
      %p82 = scmp.eq.s32.totalorder %s35, 0
      %p83 = por %p81, %p82
      %s85 = sadd.s32 %s84, 1
      %p88 = scmp.eq.s32.totalorder %s29, 1
      %p89 = scmp.ne.s32.totalorder %s84, %s86
      %p90 = scmp.eq.s32.totalorder %s29, 0
      %p91 = por %p89, %p90
      %p92 = scmp.ne.s32.totalorder %s84, %s86
      %p93 = scmp.eq.s32.totalorder %s34, 1
      %p94 = por %p92, %p93
      %p95 = scmp.ne.s32.totalorder %s86, %s87
      %p96 = scmp.eq.s32.totalorder %s34, 0
      %p97 = por %p95, %p96
      %p98 = scmp.ne.s32.totalorder %s86, %s87
      %p99 = scmp.eq.s32.totalorder %s35, 1
      %p100 = por %p98, %p99
      %p102 = scmp.ne.s32.totalorder %s87, %s101
      %p103 = scmp.eq.s32.totalorder %s35, 0
      %p104 = por %p102, %p103
      %s106 = sadd.s32 %s105, 1
      %p109 = scmp.eq.s32.totalorder %s29, 1
      %p110 = scmp.ne.s32.totalorder %s105, %s107
      %p111 = scmp.eq.s32.totalorder %s29, 0
      %p112 = por %p110, %p111
      %p113 = scmp.ne.s32.totalorder %s105, %s107
      %p114 = scmp.eq.s32.totalorder %s34, 1
      %p115 = por %p113, %p114
      %p116 = scmp.ne.s32.totalorder %s107, %s108
      %p117 = scmp.eq.s32.totalorder %s34, 0
      %p118 = por %p116, %p117
      %p119 = scmp.ne.s32.totalorder %s107, %s108
      %p120 = scmp.eq.s32.totalorder %s35, 1
      %p121 = por %p119, %p120
      %p123 = scmp.ne.s32.totalorder %s108, %s122
      %p124 = scmp.eq.s32.totalorder %s35, 0
      %p125 = por %p123, %p124
      %s127 = sadd.s32 %s126, 1
      %p130 = scmp.eq.s32.totalorder %s29, 1
      %p131 = scmp.ne.s32.totalorder %s126, %s128
      %p132 = scmp.eq.s32.totalorder %s29, 0
      %p133 = por %p131, %p132
      %p134 = scmp.ne.s32.totalorder %s126, %s128
      %p135 = scmp.eq.s32.totalorder %s34, 1
      %p136 = por %p134, %p135
      %p137 = scmp.ne.s32.totalorder %s128, %s129
      %p138 = scmp.eq.s32.totalorder %s34, 0
      %p139 = por %p137, %p138
      %p140 = scmp.ne.s32.totalorder %s128, %s129
      %p141 = scmp.eq.s32.totalorder %s35, 1
      %p142 = por %p140, %p141
      %p144 = scmp.ne.s32.totalorder %s129, %s143
      %p145 = scmp.eq.s32.totalorder %s35, 0
      %p146 = por %p144, %p145
      %s148 = sadd.s32 %s147, 1
      %p151 = scmp.eq.s32.totalorder %s29, 1
      %p152 = scmp.ne.s32.totalorder %s147, %s149
      %p153 = scmp.eq.s32.totalorder %s29, 0
      %p154 = por %p152, %p153
      %p155 = scmp.ne.s32.totalorder %s147, %s149
      %p156 = scmp.eq.s32.totalorder %s34, 1
      %p157 = por %p155, %p156
      %p158 = scmp.ne.s32.totalorder %s149, %s150
      %p159 = scmp.eq.s32.totalorder %s34, 0
      %p160 = por %p158, %p159
      %p161 = scmp.ne.s32.totalorder %s149, %s150
      %p162 = scmp.eq.s32.totalorder %s35, 1
      %p163 = por %p161, %p162
      %p165 = scmp.ne.s32.totalorder %s150, %s164
      %p166 = scmp.eq.s32.totalorder %s35, 0
      %p167 = por %p165, %p166
      %s169 = sadd.s32 %s168, 1
      %p172 = scmp.eq.s32.totalorder %s29, 1
      %p173 = scmp.ne.s32.totalorder %s168, %s170
      %p174 = scmp.eq.s32.totalorder %s29, 0
      %p175 = por %p173, %p174
      %p176 = scmp.ne.s32.totalorder %s168, %s170
      %p177 = scmp.eq.s32.totalorder %s34, 1
      %p178 = por %p176, %p177
      %p179 = scmp.ne.s32.totalorder %s170, %s171
      %p180 = scmp.eq.s32.totalorder %s34, 0
      %p181 = por %p179, %p180
      %p182 = scmp.ne.s32.totalorder %s170, %s171
      %p183 = scmp.eq.s32.totalorder %s35, 1
      %p184 = por %p182, %p183
      %p186 = scmp.ne.s32.totalorder %s171, %s185
      %p187 = scmp.eq.s32.totalorder %s35, 0
      %p188 = por %p186, %p187
      %s190 = sadd.s32 %s189, 1
      %p193 = scmp.eq.s32.totalorder %s29, 1
      %p194 = scmp.ne.s32.totalorder %s189, %s191
      %p195 = scmp.eq.s32.totalorder %s29, 0
      %p196 = por %p194, %p195
      %p197 = scmp.ne.s32.totalorder %s189, %s191
      %p198 = scmp.eq.s32.totalorder %s34, 1
      %p199 = por %p197, %p198
      %p200 = scmp.ne.s32.totalorder %s191, %s192
      %p201 = scmp.eq.s32.totalorder %s34, 0
      %p202 = por %p200, %p201
      %p203 = scmp.ne.s32.totalorder %s191, %s192
      %p204 = scmp.eq.s32.totalorder %s35, 1
      %p205 = por %p203, %p204
      %p207 = scmp.ne.s32.totalorder %s192, %s206
      %p208 = scmp.eq.s32.totalorder %s35, 0
      %p209 = por %p207, %p208
      %s211 = sadd.s32 %s210, 1
      %p214 = scmp.eq.s32.totalorder %s29, 1
      %p215 = scmp.ne.s32.totalorder %s210, %s212
      %p216 = scmp.eq.s32.totalorder %s29, 0
      %p217 = por %p215, %p216
      %p218 = scmp.ne.s32.totalorder %s210, %s212
      %p219 = scmp.eq.s32.totalorder %s34, 1
      %p220 = por %p218, %p219
      %p221 = scmp.ne.s32.totalorder %s212, %s213
      %p222 = scmp.eq.s32.totalorder %s34, 0
      %p223 = por %p221, %p222
      %p224 = scmp.ne.s32.totalorder %s212, %s213
      %p225 = scmp.eq.s32.totalorder %s35, 1
      %p226 = por %p224, %p225
      %p228 = scmp.ne.s32.totalorder %s213, %s227
      %p229 = scmp.eq.s32.totalorder %s35, 0
      %p230 = por %p228, %p229
      %s232 = sadd.s32 %s231, 1
      %p235 = scmp.eq.s32.totalorder %s29, 1
      %p236 = scmp.ne.s32.totalorder %s231, %s233
      %p237 = scmp.eq.s32.totalorder %s29, 0
      %p238 = por %p236, %p237
      %p239 = scmp.ne.s32.totalorder %s231, %s233
      %p240 = scmp.eq.s32.totalorder %s34, 1
      %p241 = por %p239, %p240
      %p242 = scmp.ne.s32.totalorder %s233, %s234
      %p243 = scmp.eq.s32.totalorder %s34, 0
      %p244 = por %p242, %p243
      %p245 = scmp.ne.s32.totalorder %s233, %s234
      %p246 = scmp.eq.s32.totalorder %s35, 1
      %p247 = por %p245, %p246
      %p249 = scmp.ne.s32.totalorder %s234, %s248
      %p250 = scmp.eq.s32.totalorder %s35, 0
      %p251 = por %p249, %p250
      %s253 = sadd.s32 %s252, 1
      %p256 = scmp.eq.s32.totalorder %s29, 1
      %p257 = scmp.ne.s32.totalorder %s252, %s254
      %p258 = scmp.eq.s32.totalorder %s29, 0
      %p259 = por %p257, %p258
      %p260 = scmp.ne.s32.totalorder %s252, %s254
      %p261 = scmp.eq.s32.totalorder %s34, 1
      %p262 = por %p260, %p261
      %p263 = scmp.ne.s32.totalorder %s254, %s255
      %p264 = scmp.eq.s32.totalorder %s34, 0
      %p265 = por %p263, %p264
      %p266 = scmp.ne.s32.totalorder %s254, %s255
      %p267 = scmp.eq.s32.totalorder %s35, 1
      %p268 = por %p266, %p267
      %p270 = scmp.ne.s32.totalorder %s255, %s269
      %p271 = scmp.eq.s32.totalorder %s35, 0
      %p272 = por %p270, %p271
      %s274 = sadd.s32 %s273, 1
      %p277 = scmp.eq.s32.totalorder %s29, 1
      %p278 = scmp.ne.s32.totalorder %s273, %s275
      %p279 = scmp.eq.s32.totalorder %s29, 0
      %p280 = por %p278, %p279
      %p281 = scmp.ne.s32.totalorder %s273, %s275
      %p282 = scmp.eq.s32.totalorder %s34, 1
      %p283 = por %p281, %p282
      %p284 = scmp.ne.s32.totalorder %s275, %s276
      %p285 = scmp.eq.s32.totalorder %s34, 0
      %p286 = por %p284, %p285
      %p287 = scmp.ne.s32.totalorder %s275, %s276
      %p288 = scmp.eq.s32.totalorder %s35, 1
      %p289 = por %p287, %p288
      %p291 = scmp.ne.s32.totalorder %s276, %s290
      %p292 = scmp.eq.s32.totalorder %s35, 0
      %p293 = por %p291, %p292
      %s295 = sadd.s32 %s294, 1
      %p298 = scmp.eq.s32.totalorder %s29, 1
      %p299 = scmp.ne.s32.totalorder %s294, %s296
      %p300 = scmp.eq.s32.totalorder %s29, 0
      %p301 = por %p299, %p300
      %p302 = scmp.ne.s32.totalorder %s294, %s296
      %p303 = scmp.eq.s32.totalorder %s34, 1
      %p304 = por %p302, %p303
      %p305 = scmp.ne.s32.totalorder %s296, %s297
      %p306 = scmp.eq.s32.totalorder %s34, 0
      %p307 = por %p305, %p306
      %p308 = scmp.ne.s32.totalorder %s296, %s297
      %p309 = scmp.eq.s32.totalorder %s35, 1
      %p310 = por %p308, %p309
      %p312 = scmp.ne.s32.totalorder %s297, %s311
      %p313 = scmp.eq.s32.totalorder %s35, 0
      %p314 = por %p312, %p313
      %s315 = ssub.s32 %s29, %s36
      %p316 = scmp.eq.s32.totalorder %s315, 0
      %s318 = sadd.s32 %s317, 1
      %s319 = scalar_select %p316, %s317, %s318
      %p322 = pneg %p316
      %p323 = scmp.eq.s32.totalorder %s29, 1
      %p324 = por %p322, %p323
      %p325 = scmp.ne.s32.totalorder %s317, %s320
      %p326 = scmp.eq.s32.totalorder %s29, 0
      %p327 = por %p325, %p326
      %p328 = scmp.ne.s32.totalorder %s317, %s320
      %p329 = scmp.eq.s32.totalorder %s34, 1
      %p330 = por %p328, %p329
      %p331 = scmp.ne.s32.totalorder %s320, %s321
      %p332 = scmp.eq.s32.totalorder %s34, 0
      %p333 = por %p331, %p332
      %p334 = scmp.ne.s32.totalorder %s320, %s321
      %p335 = scmp.eq.s32.totalorder %s35, 1
      %p336 = por %p334, %p335
      %p338 = scmp.ne.s32.totalorder %s321, %s337
      %p339 = scmp.eq.s32.totalorder %s35, 0
      %p340 = por %p338, %p339
      %p341 = scmp.le.s32.totalorder 1, %s29
      %p342 = scmp.lt.s32.totalorder %s29, 3
      %p343 = pnand %p341, %p342
      %p344 = pneg %p343
      // Predicated region
      $region9: #{tpu_custom_call.1} parent=5 // pred_check
        _
      $region10: #{tpu_custom_call.1} parent=5 // pred_check_branch
        %346 = sbr.rel (%p343) target = $region12
      $region11: #{tpu_custom_call.1} parent=5 // pred_region
        %s347 = ssub.s32 %s29, 1
        // Predicated region
        $region13: #{tpu_custom_call.1} parent=11 // pred_check
          %p348 = pneg %p76
        $region14: #{tpu_custom_call.1} parent=11 // pred_check_branch
          %350 = sbr.rel (%p348) target = $region16
        $region15: #{tpu_custom_call.1} parent=11 // pred_region
          %352 = vsyncadd [#allocation7], 0
          %s354 = sshll.u32 %s1, 4
          %s355 = int_to_ptr.hbm [resolvable:$true] %s354
          %s356 = sshll.u32 [#allocation6], 4
          %s357 = int_to_ptr.vmem [resolvable:$true] %s356
          %359 = dma.hbm_to_vmem [thread:$0]  %s355, 16, %s357, [#allocation7]
        $region16: #{tpu_custom_call.1} parent=11 // pred_fallthru
          _
        // Predicated region
        $region17: #{tpu_custom_call.1} parent=11 // pred_check
          %p360 = pneg %p97
        $region18: #{tpu_custom_call.1} parent=11 // pred_check_branch
          %362 = sbr.rel (%p360) target = $region20
        $region19: #{tpu_custom_call.1} parent=11 // pred_region
          _
        $region20: #{tpu_custom_call.1} parent=11 // pred_fallthru
          _
        // Predicated region
        $region21: #{tpu_custom_call.1} parent=11 // pred_check
          %p363 = pneg %p118
        $region22: #{tpu_custom_call.1} parent=11 // pred_check_branch
          %365 = sbr.rel (%p363) target = $region24
        $region23: #{tpu_custom_call.1} parent=11 // pred_region
          %367 = vsyncadd [#allocation7], 0
          %s368 = sshll.u32 %s3, 4
          %s369 = int_to_ptr.hbm [resolvable:$true] %s368
          %s370 = sshll.u32 [#allocation8], 4
          %s371 = int_to_ptr.vmem [resolvable:$true] %s370
          %376 = dma.hbm_to_vmem [thread:$0]  %s369, 3072, %s371, [#allocation7], 192, 192, 12
        $region24: #{tpu_custom_call.1} parent=11 // pred_fallthru
          _
        // Predicated region
        $region25: #{tpu_custom_call.1} parent=11 // pred_check
          %p377 = pneg %p139
        $region26: #{tpu_custom_call.1} parent=11 // pred_check_branch
          %379 = sbr.rel (%p377) target = $region28
        $region27: #{tpu_custom_call.1} parent=11 // pred_region
          %381 = vsyncadd [#allocation10], 0
          %s382 = sshll.u32 %s4, 4
          %s383 = int_to_ptr.hbm [resolvable:$true] %s382
          %s384 = sshll.u32 [#allocation9], 4
          %s385 = int_to_ptr.vmem [resolvable:$true] %s384
          %390 = dma.hbm_to_vmem [thread:$0]  %s383, 1024, %s385, [#allocation10], 64, 64, 4
        $region28: #{tpu_custom_call.1} parent=11 // pred_fallthru
          _
        // Predicated region
        $region29: #{tpu_custom_call.1} parent=11 // pred_check
          %p391 = pneg %p160
        $region30: #{tpu_custom_call.1} parent=11 // pred_check_branch
          %393 = sbr.rel (%p391) target = $region32
        $region31: #{tpu_custom_call.1} parent=11 // pred_region
          _
        $region32: #{tpu_custom_call.1} parent=11 // pred_fallthru
          _
        // Predicated region
        $region33: #{tpu_custom_call.1} parent=11 // pred_check
          %p394 = pneg %p181
        $region34: #{tpu_custom_call.1} parent=11 // pred_check_branch
          %396 = sbr.rel (%p394) target = $region36
        $region35: #{tpu_custom_call.1} parent=11 // pred_region
          %398 = vsyncadd [#allocation5], 0
          %s400 = sshll.u32 %s6, 4
          %s401 = int_to_ptr.vmem [resolvable:$true] %s400
          %403 = dma.vmem_to_smem %s401, 16, [#allocation11], [#allocation5]
        $region36: #{tpu_custom_call.1} parent=11 // pred_fallthru
          _
        // Predicated region
        $region37: #{tpu_custom_call.1} parent=11 // pred_check
          %p404 = pneg %p202
        $region38: #{tpu_custom_call.1} parent=11 // pred_check_branch
          %406 = sbr.rel (%p404) target = $region40
        $region39: #{tpu_custom_call.1} parent=11 // pred_region
          _
        $region40: #{tpu_custom_call.1} parent=11 // pred_fallthru
          _
        // Predicated region
        $region41: #{tpu_custom_call.1} parent=11 // pred_check
          %p407 = pneg %p223
        $region42: #{tpu_custom_call.1} parent=11 // pred_check_branch
          %409 = sbr.rel (%p407) target = $region44
        $region43: #{tpu_custom_call.1} parent=11 // pred_region
          _
        $region44: #{tpu_custom_call.1} parent=11 // pred_fallthru
          _
        // Predicated region
        $region45: #{tpu_custom_call.1} parent=11 // pred_check
          %p410 = pneg %p244
        $region46: #{tpu_custom_call.1} parent=11 // pred_check_branch
          %412 = sbr.rel (%p410) target = $region48
        $region47: #{tpu_custom_call.1} parent=11 // pred_region
          %414 = vsyncadd [#allocation10], 0
          %s415 = sshll.u32 %s9, 4
          %s416 = int_to_ptr.hbm [resolvable:$true] %s415
          %s417 = sshll.u32 [#allocation12], 4
          %s418 = int_to_ptr.vmem [resolvable:$true] %s417
          %423 = dma.hbm_to_vmem [thread:$0]  %s416, 2048, %s418, [#allocation10], 128, 128, 8
        $region48: #{tpu_custom_call.1} parent=11 // pred_fallthru
          _
        // Predicated region
        $region49: #{tpu_custom_call.1} parent=11 // pred_check
          %p424 = pneg %p265
        $region50: #{tpu_custom_call.1} parent=11 // pred_check_branch
          %426 = sbr.rel (%p424) target = $region52
        $region51: #{tpu_custom_call.1} parent=11 // pred_region
          _
        $region52: #{tpu_custom_call.1} parent=11 // pred_fallthru
          _
        // Predicated region
        $region53: #{tpu_custom_call.1} parent=11 // pred_check
          %p427 = pneg %p286
        $region54: #{tpu_custom_call.1} parent=11 // pred_check_branch
          %429 = sbr.rel (%p427) target = $region56
        $region55: #{tpu_custom_call.1} parent=11 // pred_region
          %431 = vsyncadd [#allocation14], 0
          %s432 = sshll.u32 %s11, 4
          %s433 = int_to_ptr.hbm [resolvable:$true] %s432
          %s434 = sshll.u32 [#allocation13], 4
          %s435 = int_to_ptr.vmem [resolvable:$true] %s434
          %440 = dma.hbm_to_vmem [thread:$0]  %s433, 2048, %s435, [#allocation14], 64, 64, 4
        $region56: #{tpu_custom_call.1} parent=11 // pred_fallthru
          _
        // Predicated region
        $region57: #{tpu_custom_call.1} parent=11 // pred_check
          %p441 = pneg %p307
        $region58: #{tpu_custom_call.1} parent=11 // pred_check_branch
          %443 = sbr.rel (%p441) target = $region60
        $region59: #{tpu_custom_call.1} parent=11 // pred_region
          _
        $region60: #{tpu_custom_call.1} parent=11 // pred_fallthru
          _
      $region12: #{tpu_custom_call.1} parent=5 // pred_fallthru
        _
      %p444 = scmp.lt.s32.totalorder %s29, 2
      // Predicated region
      $region61: #{tpu_custom_call.1} parent=5 // pred_check
        %p445 = pneg %p444
      $region62: #{tpu_custom_call.1} parent=5 // pred_check_branch
        %447 = sbr.rel (%p445) target = $region64
      $region63: #{tpu_custom_call.1} parent=5 // pred_region
        // Predicated region
        $region65: #{tpu_custom_call.1} parent=63 // pred_check
          %p448 = pneg %p49
        $region66: #{tpu_custom_call.1} parent=63 // pred_check_branch
          %450 = sbr.rel (%p448) target = $region68
        $region67: #{tpu_custom_call.1} parent=63 // pred_region
          %s451 = sand.u32 %s39, 1
          %s452 = scalar_lea.sflag [#allocation3], %s451
          %s453 = sand.u32 %s39, 1
          %s454 = smul.addr %s453, 64
          %s455 = scalar_lea.vmem [#allocation2], %s454
          %457 = vsyncadd %s452, 0
          %s458 = smul.addr %s29, 8
          %s459 = smul.addr %s458, 8
          %s460 = scalar_lea.hbm %s0, %s459
          %s461 = sshll.u32 %s460, 4
          %s462 = int_to_ptr.hbm [resolvable:$true] %s461
          %s463 = sshll.u32 %s455, 4
          %s464 = int_to_ptr.vmem [resolvable:$true] %s463
          %469 = dma.hbm_to_vmem [thread:$0]  %s462, 1024, %s464, %s452, 128, 128, 8
        $region68: #{tpu_custom_call.1} parent=63 // pred_fallthru
          _
      $region64: #{tpu_custom_call.1} parent=5 // pred_fallthru
        _
      %p470 = scmp.le.s32.totalorder 1, %s29
      %p471 = scmp.lt.s32.totalorder %s29, 3
      %p472 = pnand %p470, %p471
      %p473 = pneg %p472
      // Predicated region
      $region69: #{tpu_custom_call.1} parent=5 // pred_check
        _
      $region70: #{tpu_custom_call.1} parent=5 // pred_check_branch
        %475 = sbr.rel (%p472) target = $region72
      $region71: #{tpu_custom_call.1} parent=5 // pred_region
        %s476 = ssub.s32 %s29, 1
        %s477 = sand.u32 %s42, 1
        %s478 = scalar_lea.sflag [#allocation3], %s477
        %s479 = sand.u32 %s42, 1
        %s480 = smul.addr %s479, 64
        %s481 = scalar_lea.vmem [#allocation2], %s480
        // Predicated region
        $region73: #{tpu_custom_call.1} parent=71 // pred_check
          %p482 = pneg %p55
        $region74: #{tpu_custom_call.1} parent=71 // pred_check_branch
          %484 = sbr.rel (%p482) target = $region76
        $region75: #{tpu_custom_call.1} parent=71 // pred_region
          %486 = dma.done %s478, 1024
        $region76: #{tpu_custom_call.1} parent=71 // pred_fallthru
          _
        // Predicated region
        $region77: #{tpu_custom_call.1} parent=71 // pred_check
          %p487 = pneg %p76
        $region78: #{tpu_custom_call.1} parent=71 // pred_check_branch
          %489 = sbr.rel (%p487) target = $region80
        $region79: #{tpu_custom_call.1} parent=71 // pred_region
          %491 = dma.done [#allocation7], 16
        $region80: #{tpu_custom_call.1} parent=71 // pred_fallthru
          _
        // Predicated region
        $region81: #{tpu_custom_call.1} parent=71 // pred_check
          %p492 = pneg %p118
        $region82: #{tpu_custom_call.1} parent=71 // pred_check_branch
          %494 = sbr.rel (%p492) target = $region84
        $region83: #{tpu_custom_call.1} parent=71 // pred_region
          %496 = dma.done [#allocation7], 3072
        $region84: #{tpu_custom_call.1} parent=71 // pred_fallthru
          _
        // Predicated region
        $region85: #{tpu_custom_call.1} parent=71 // pred_check
          %p497 = pneg %p139
        $region86: #{tpu_custom_call.1} parent=71 // pred_check_branch
          %499 = sbr.rel (%p497) target = $region88
        $region87: #{tpu_custom_call.1} parent=71 // pred_region
          %501 = dma.done [#allocation10], 1024
        $region88: #{tpu_custom_call.1} parent=71 // pred_fallthru
          _
        // Predicated region
        $region89: #{tpu_custom_call.1} parent=71 // pred_check
          %p502 = pneg %p181
        $region90: #{tpu_custom_call.1} parent=71 // pred_check_branch
          %504 = sbr.rel (%p502) target = $region92
        $region91: #{tpu_custom_call.1} parent=71 // pred_region
          %506 = dma.done [#allocation5], 16
        $region92: #{tpu_custom_call.1} parent=71 // pred_fallthru
          _
        // Predicated region
        $region93: #{tpu_custom_call.1} parent=71 // pred_check
          %p507 = pneg %p244
        $region94: #{tpu_custom_call.1} parent=71 // pred_check_branch
          %509 = sbr.rel (%p507) target = $region96
        $region95: #{tpu_custom_call.1} parent=71 // pred_region
          %511 = dma.done [#allocation10], 2048
        $region96: #{tpu_custom_call.1} parent=71 // pred_fallthru
          _
        // Predicated region
        $region97: #{tpu_custom_call.1} parent=71 // pred_check
          %p512 = pneg %p286
        $region98: #{tpu_custom_call.1} parent=71 // pred_check_branch
          %514 = sbr.rel (%p512) target = $region100
        $region99: #{tpu_custom_call.1} parent=71 // pred_region
          %516 = dma.done [#allocation14], 2048
        $region100: #{tpu_custom_call.1} parent=71 // pred_fallthru
          _
        %517 = sfence
        %s518 = sand.u32 %s42, 1
        %s519 = scalar_lea.sflag [#allocation3], %s518
        %s520 = sand.u32 %s42, 1
        %s521 = smul.addr %s520, 64
        %s522 = scalar_lea.vmem [#allocation2], %s521
        %p523 = pneg %p55
        %p524 = pneg %p52
        %p525 = pneg %p76
        %p526 = pneg %p73
        %p527 = pneg %p97
        %p528 = pneg %p94
        %p529 = pneg %p118
        %p530 = pneg %p115
        %p531 = pneg %p139
        %p532 = pneg %p136
        %p533 = pneg %p160
        %p534 = pneg %p157
        %p535 = pneg %p181
        %p536 = pneg %p178
        %p537 = pneg %p202
        %p538 = pneg %p199
        %p539 = pneg %p223
        %p540 = pneg %p220
        %p541 = pneg %p244
        %p542 = pneg %p241
        %p543 = pneg %p265
        %p544 = pneg %p262
        %p545 = pneg %p286
        %p546 = pneg %p283
        %p547 = pneg %p307
        %p548 = pneg %p304
        %p549 = pneg %p333
        %p550 = pneg %p330
        %s551 = sand.u32 %s320, 1
        %s552 = scalar_lea.sflag [#allocation4], %s551
        %s553 = sand.u32 %s320, 1
        %s554 = smul.addr %s553, 64
        %s555 = scalar_lea.vmem [#allocation15], %s554
        %s557 = sld [smem:[#allocation11]]
        %s558 = sld [smem:[#allocation11 + $0x1]]
        %s559 = sld [smem:[#allocation11 + $0x2]]
        %s560 = smul.f32 %s559, 0.015625
        %v561 = vld [vmem:[%s481] sm:$0xff]
        %v562 = vld [vmem:[%s481 + $0x8] sm:$0xff]
        %v563 = vld [vmem:[%s481 + $0x10] sm:$0xff]
        %v564 = vld [vmem:[%s481 + $0x18] sm:$0xff]
        %v565 = vld [vmem:[%s481 + $0x20] sm:$0xff]
        %v566 = vld [vmem:[%s481 + $0x28] sm:$0xff]
        %v567 = vld [vmem:[%s481 + $0x30] sm:$0xff]
        %v568 = vld [vmem:[%s481 + $0x38] sm:$0xff]
        %v569 = vld [vmem:[#allocation6] sm:$0x1]
        %v570 = vld [vmem:[%s2] sm:$0x1]
        %571 = vadd.xlane.f32.xlu0 %v561
        %v572 = vpop.xlane.xlu0 %571
        %573 = vadd.xlane.f32.xlu0 %v562
        %v574 = vpop.xlane.xlu0 %573
        %575 = vadd.xlane.f32.xlu0 %v563
        %v576 = vpop.xlane.xlu0 %575
        %577 = vadd.xlane.f32.xlu0 %v564
        %v578 = vpop.xlane.xlu0 %577
        %579 = vadd.xlane.f32.xlu0 %v565
        %v580 = vpop.xlane.xlu0 %579
        %581 = vadd.xlane.f32.xlu0 %v566
        %v582 = vpop.xlane.xlu0 %581
        %583 = vadd.xlane.f32.xlu0 %v567
        %v584 = vpop.xlane.xlu0 %583
        %585 = vadd.xlane.f32.xlu0 %v568
        %v586 = vpop.xlane.xlu0 %585
        %v587 = vmul.f32 %v561, %v561
        %v588 = vmul.f32 %v562, %v562
        %v589 = vmul.f32 %v563, %v563
        %v590 = vmul.f32 %v564, %v564
        %v591 = vmul.f32 %v565, %v565
        %v592 = vmul.f32 %v566, %v566
        %v593 = vmul.f32 %v567, %v567
        %v594 = vmul.f32 %v568, %v568
        %595 = vadd.xlane.f32.xlu0 %v587
        %v596 = vpop.xlane.xlu0 %595
        %597 = vadd.xlane.f32.xlu0 %v588
        %v598 = vpop.xlane.xlu0 %597
        %599 = vadd.xlane.f32.xlu0 %v589
        %v600 = vpop.xlane.xlu0 %599
        %601 = vadd.xlane.f32.xlu0 %v590
        %v602 = vpop.xlane.xlu0 %601
        %603 = vadd.xlane.f32.xlu0 %v591
        %v604 = vpop.xlane.xlu0 %603
        %605 = vadd.xlane.f32.xlu0 %v592
        %v606 = vpop.xlane.xlu0 %605
        %607 = vadd.xlane.f32.xlu0 %v593
        %v608 = vpop.xlane.xlu0 %607
        %609 = vadd.xlane.f32.xlu0 %v594
        %v610 = vpop.xlane.xlu0 %609
        %v611 = vmul.f32 %v572, 0.0078125
        %v612 = vmul.f32 %v574, 0.0078125
        %v613 = vmul.f32 %v576, 0.0078125
        %v614 = vmul.f32 %v578, 0.0078125
        %v615 = vmul.f32 %v580, 0.0078125
        %v616 = vmul.f32 %v582, 0.0078125
        %v617 = vmul.f32 %v584, 0.0078125
        %v618 = vmul.f32 %v586, 0.0078125
        %v619 = vmul.f32 %v596, 0.0078125
        %v620 = vmul.f32 %v598, 0.0078125
        %v621 = vmul.f32 %v600, 0.0078125
        %v622 = vmul.f32 %v602, 0.0078125
        %v623 = vmul.f32 %v604, 0.0078125
        %v624 = vmul.f32 %v606, 0.0078125
        %v625 = vmul.f32 %v608, 0.0078125
        %v626 = vmul.f32 %v610, 0.0078125
        %v627 = vmul.f32 %v611, %v611
        %v628 = vmul.f32 %v612, %v612
        %v629 = vmul.f32 %v613, %v613
        %v630 = vmul.f32 %v614, %v614
        %v631 = vmul.f32 %v615, %v615
        %v632 = vmul.f32 %v616, %v616
        %v633 = vmul.f32 %v617, %v617
        %v634 = vmul.f32 %v618, %v618
        %v635 = vsub.f32 %v619, %v627
        %v636 = vsub.f32 %v620, %v628
        %v637 = vsub.f32 %v621, %v629
        %v638 = vsub.f32 %v622, %v630
        %v639 = vsub.f32 %v623, %v631
        %v640 = vsub.f32 %v624, %v632
        %v641 = vsub.f32 %v625, %v633
        %v642 = vsub.f32 %v626, %v634
        %v643 = vsub.f32 %v561, %v611
        %v644 = vsub.f32 %v562, %v612
        %v645 = vsub.f32 %v563, %v613
        %v646 = vsub.f32 %v564, %v614
        %v647 = vsub.f32 %v565, %v615
        %v648 = vsub.f32 %v566, %v616
        %v649 = vsub.f32 %v567, %v617
        %v650 = vsub.f32 %v568, %v618
        %v651 = vadd.f32 %v635, 1e-05
        %v652 = vadd.f32 %v636, 1e-05
        %v653 = vadd.f32 %v637, 1e-05
        %v654 = vadd.f32 %v638, 1e-05
        %v655 = vadd.f32 %v639, 1e-05
        %v656 = vadd.f32 %v640, 1e-05
        %v657 = vadd.f32 %v641, 1e-05
        %v658 = vadd.f32 %v642, 1e-05
        %v659 = vrsqrt.pop %v651
        %v660 = vmul.f32 %v659, %v651
        %v661 = vmul.f32 %v660, %v659
        %v662 = vmul.f32 0.5, %v661
        %v663 = vsub.f32 1.5, %v662
        %v664 = vmul.f32 %v659, %v663
        %vm665 = vweird.f32 %v651
        %vm666 = vweird.f32 %v659
        %vm667 = vmor %vm665, %vm666
        %v668 = vsel %vm667, %v659, %v664
        %v669 = vrsqrt.pop %v652
        %v670 = vmul.f32 %v669, %v652
        %v671 = vmul.f32 %v670, %v669
        %v672 = vmul.f32 0.5, %v671
        %v673 = vsub.f32 1.5, %v672
        %v674 = vmul.f32 %v669, %v673
        %vm675 = vweird.f32 %v652
        %vm676 = vweird.f32 %v669
        %vm677 = vmor %vm675, %vm676
        %v678 = vsel %vm677, %v669, %v674
        %v679 = vrsqrt.pop %v653
        %v680 = vmul.f32 %v679, %v653
        %v681 = vmul.f32 %v680, %v679
        %v682 = vmul.f32 0.5, %v681
        %v683 = vsub.f32 1.5, %v682
        %v684 = vmul.f32 %v679, %v683
        %vm685 = vweird.f32 %v653
        %vm686 = vweird.f32 %v679
        %vm687 = vmor %vm685, %vm686
        %v688 = vsel %vm687, %v679, %v684
        %v689 = vrsqrt.pop %v654
        %v690 = vmul.f32 %v689, %v654
        %v691 = vmul.f32 %v690, %v689
        %v692 = vmul.f32 0.5, %v691
        %v693 = vsub.f32 1.5, %v692
        %v694 = vmul.f32 %v689, %v693
        %vm695 = vweird.f32 %v654
        %vm696 = vweird.f32 %v689
        %vm697 = vmor %vm695, %vm696
        %v698 = vsel %vm697, %v689, %v694
        %v699 = vrsqrt.pop %v655
        %v700 = vmul.f32 %v699, %v655
        %v701 = vmul.f32 %v700, %v699
        %v702 = vmul.f32 0.5, %v701
        %v703 = vsub.f32 1.5, %v702
        %v704 = vmul.f32 %v699, %v703
        %vm705 = vweird.f32 %v655
        %vm706 = vweird.f32 %v699
        %vm707 = vmor %vm705, %vm706
        %v708 = vsel %vm707, %v699, %v704
        %v709 = vrsqrt.pop %v656
        %v710 = vmul.f32 %v709, %v656
        %v711 = vmul.f32 %v710, %v709
        %v712 = vmul.f32 0.5, %v711
        %v713 = vsub.f32 1.5, %v712
        %v714 = vmul.f32 %v709, %v713
        %vm715 = vweird.f32 %v656
        %vm716 = vweird.f32 %v709
        %vm717 = vmor %vm715, %vm716
        %v718 = vsel %vm717, %v709, %v714
        %v719 = vrsqrt.pop %v657
        %v720 = vmul.f32 %v719, %v657
        %v721 = vmul.f32 %v720, %v719
        %v722 = vmul.f32 0.5, %v721
        %v723 = vsub.f32 1.5, %v722
        %v724 = vmul.f32 %v719, %v723
        %vm725 = vweird.f32 %v657
        %vm726 = vweird.f32 %v719
        %vm727 = vmor %vm725, %vm726
        %v728 = vsel %vm727, %v719, %v724
        %v729 = vrsqrt.pop %v658
        %v730 = vmul.f32 %v729, %v658
        %v731 = vmul.f32 %v730, %v729
        %v732 = vmul.f32 0.5, %v731
        %v733 = vsub.f32 1.5, %v732
        %v734 = vmul.f32 %v729, %v733
        %vm735 = vweird.f32 %v658
        %vm736 = vweird.f32 %v729
        %vm737 = vmor %vm735, %vm736
        %v738 = vsel %vm737, %v729, %v734
        %v739 = vmul.f32 %v643, %v668
        %v740 = vmul.f32 %v644, %v678
        %v741 = vmul.f32 %v645, %v688
        %v742 = vmul.f32 %v646, %v698
        %v743 = vmul.f32 %v647, %v708
        %v744 = vmul.f32 %v648, %v718
        %v745 = vmul.f32 %v649, %v728
        %v746 = vmul.f32 %v650, %v738
        %v748 = vperm.slane %v569, 0
        %v750 = vmul.f32 %v739, %v748
        %v751 = vmul.f32 %v740, %v748
        %v752 = vmul.f32 %v741, %v748
        %v753 = vmul.f32 %v742, %v748
        %v754 = vmul.f32 %v743, %v748
        %v755 = vmul.f32 %v744, %v748
        %v756 = vmul.f32 %v745, %v748
        %v757 = vmul.f32 %v746, %v748
        %v759 = vperm.slane %v570, 0
        %v761 = vadd.f32 %v750, %v759
        %v762 = vadd.f32 %v751, %v759
        %v763 = vadd.f32 %v752, %v759
        %v764 = vadd.f32 %v753, %v759
        %v765 = vadd.f32 %v754, %v759
        %v766 = vadd.f32 %v755, %v759
        %v767 = vadd.f32 %v756, %v759
        %v768 = vadd.f32 %v757, %v759
        %v769 = vpack.c.bf16 %v762, %v761
        %v770 = vpack.c.bf16 %v764, %v763
        %v771 = vpack.c.bf16 %v766, %v765
        %v772 = vpack.c.bf16 %v768, %v767
        %v773 = vld [vmem:[#allocation8] sm:$0xff]
        %v774 = vld [vmem:[#allocation8 + $0x8] sm:$0xf]
        %v775 = vld [vmem:[#allocation8 + $0xc] sm:$0xff]
        %v776 = vld [vmem:[#allocation8 + $0x14] sm:$0xf]
        %v777 = vld [vmem:[#allocation8 + $0x18] sm:$0xff]
        %v778 = vld [vmem:[#allocation8 + $0x20] sm:$0xf]
        %v779 = vld [vmem:[#allocation8 + $0x24] sm:$0xff]
        %v780 = vld [vmem:[#allocation8 + $0x2c] sm:$0xf]
        %v781 = vld [vmem:[#allocation8 + $0x30] sm:$0xff]
        %v782 = vld [vmem:[#allocation8 + $0x38] sm:$0xf]
        %v783 = vld [vmem:[#allocation8 + $0x3c] sm:$0xff]
        %v784 = vld [vmem:[#allocation8 + $0x44] sm:$0xf]
        %v785 = vld [vmem:[#allocation8 + $0x48] sm:$0xff]
        %v786 = vld [vmem:[#allocation8 + $0x50] sm:$0xf]
        %v787 = vld [vmem:[#allocation8 + $0x54] sm:$0xff]
        %v788 = vld [vmem:[#allocation8 + $0x5c] sm:$0xf]
        %v789 = vld [vmem:[#allocation8 + $0x60] sm:$0xff]
        %v790 = vld [vmem:[#allocation8 + $0x68] sm:$0xf]
        %v791 = vld [vmem:[#allocation8 + $0x6c] sm:$0xff]
        %v792 = vld [vmem:[#allocation8 + $0x74] sm:$0xf]
        %v793 = vld [vmem:[#allocation8 + $0x78] sm:$0xff]
        %v794 = vld [vmem:[#allocation8 + $0x80] sm:$0xf]
        %v795 = vld [vmem:[#allocation8 + $0x84] sm:$0xff]
        %v796 = vld [vmem:[#allocation8 + $0x8c] sm:$0xf]
        %v797 = vld [vmem:[#allocation8 + $0x90] sm:$0xff]
        %v798 = vld [vmem:[#allocation8 + $0x98] sm:$0xf]
        %v799 = vld [vmem:[#allocation8 + $0x9c] sm:$0xff]
        %v800 = vld [vmem:[#allocation8 + $0xa4] sm:$0xf]
        %v801 = vld [vmem:[#allocation8 + $0xa8] sm:$0xff]
        %v802 = vld [vmem:[#allocation8 + $0xb0] sm:$0xf]
        %v803 = vld [vmem:[#allocation8 + $0xb4] sm:$0xff]
        %v804 = vld [vmem:[#allocation8 + $0xbc] sm:$0xf]
        %v837 = vunpack.c.l.b16 %v773
        %v838 = vunpack.c.h.b16 %v773
        %v839 = vunpack.c.l.b16 %v774
        %v840 = vunpack.c.l.b16 %v775
        %v841 = vunpack.c.h.b16 %v775
        %v842 = vunpack.c.l.b16 %v776
        %v843 = vunpack.c.l.b16 %v777
        %v844 = vunpack.c.h.b16 %v777
        %v845 = vunpack.c.l.b16 %v778
        %v846 = vunpack.c.l.b16 %v779
        %v847 = vunpack.c.h.b16 %v779
        %v848 = vunpack.c.l.b16 %v780
        %v849 = vunpack.c.l.b16 %v781
        %v850 = vunpack.c.h.b16 %v781
        %v851 = vunpack.c.l.b16 %v782
        %v852 = vunpack.c.l.b16 %v783
        %v853 = vunpack.c.h.b16 %v783
        %v854 = vunpack.c.l.b16 %v784
        %v855 = vunpack.c.l.b16 %v785
        %v856 = vunpack.c.h.b16 %v785
        %v857 = vunpack.c.l.b16 %v786
        %v858 = vunpack.c.l.b16 %v787
        %v859 = vunpack.c.h.b16 %v787
        %v860 = vunpack.c.l.b16 %v788
        %v861 = vunpack.c.l.b16 %v789
        %v862 = vunpack.c.h.b16 %v789
        %v863 = vunpack.c.l.b16 %v790
        %v864 = vunpack.c.l.b16 %v791
        %v865 = vunpack.c.h.b16 %v791
        %v866 = vunpack.c.l.b16 %v792
        %v867 = vunpack.c.l.b16 %v793
        %v868 = vunpack.c.h.b16 %v793
        %v869 = vunpack.c.l.b16 %v794
        %v870 = vunpack.c.l.b16 %v795
        %v871 = vunpack.c.h.b16 %v795
        %v872 = vunpack.c.l.b16 %v796
        %v873 = vunpack.c.l.b16 %v797
        %v874 = vunpack.c.h.b16 %v797
        %v875 = vunpack.c.l.b16 %v798
        %v876 = vunpack.c.l.b16 %v799
        %v877 = vunpack.c.h.b16 %v799
        %v878 = vunpack.c.l.b16 %v800
        %v879 = vunpack.c.l.b16 %v801
        %v880 = vunpack.c.h.b16 %v801
        %v881 = vunpack.c.l.b16 %v802
        %v882 = vunpack.c.l.b16 %v803
        %v883 = vunpack.c.h.b16 %v803
        %v884 = vunpack.c.l.b16 %v804
        %v885 = vpack.c.b16 %v840, %v837
        %v886 = vpack.c.b16 %v841, %v838
        %v887 = vpack.c.b16 %v842, %v839
        %v888 = vpack.c.b16 %v846, %v843
        %v889 = vpack.c.b16 %v847, %v844
        %v890 = vpack.c.b16 %v848, %v845
        %v891 = vpack.c.b16 %v852, %v849
        %v892 = vpack.c.b16 %v853, %v850
        %v893 = vpack.c.b16 %v854, %v851
        %v894 = vpack.c.b16 %v858, %v855
        %v895 = vpack.c.b16 %v859, %v856
        %v896 = vpack.c.b16 %v860, %v857
        %v897 = vpack.c.b16 %v864, %v861
        %v898 = vpack.c.b16 %v865, %v862
        %v899 = vpack.c.b16 %v866, %v863
        %v900 = vpack.c.b16 %v870, %v867
        %v901 = vpack.c.b16 %v871, %v868
        %v902 = vpack.c.b16 %v872, %v869
        %v903 = vpack.c.b16 %v876, %v873
        %v904 = vpack.c.b16 %v877, %v874
        %v905 = vpack.c.b16 %v878, %v875
        %v906 = vpack.c.b16 %v882, %v879
        %v907 = vpack.c.b16 %v883, %v880
        %v908 = vpack.c.b16 %v884, %v881
        %933 = vmatpush.bf16.msra.mxu0 %v906
        %934 = vmatpush.bf16.msra.mxu0 %v903
        %935 = vmatpush.bf16.msra.mxu0 %v900
        %936 = vmatpush.bf16.msra.mxu0 %v897
        %937 = vmatpush.bf16.msra.mxu0 %v894
        %938 = vmatpush.bf16.msra.mxu0 %v891
        %939 = vmatpush.bf16.msra.mxu0 %v888
        %940 = vmatpush.bf16.msra.mxu0 %v885
        %941 = vmatmul.bf16.gmra.mxu0 %v769
        %v942 = vpop.f32.mrf.mxu0
        %v943 = vadd.f32 0.0, %v942
        %v944 = vpop.f32.mrf.mxu0
        %v945 = vadd.f32 0.0, %v944
        %946 = vmatmul.bf16.gmra.mxu0 %v770
        %v947 = vpop.f32.mrf.mxu0
        %v948 = vadd.f32 0.0, %v947
        %v949 = vpop.f32.mrf.mxu0
        %v950 = vadd.f32 0.0, %v949
        %951 = vmatmul.bf16.gmra.mxu0 %v771
        %v952 = vpop.f32.mrf.mxu0
        %v953 = vadd.f32 0.0, %v952
        %v954 = vpop.f32.mrf.mxu0
        %v955 = vadd.f32 0.0, %v954
        %956 = vmatmul.bf16.gmra.mxu0 %v772
        %v957 = vpop.f32.mrf.mxu0
        %v958 = vadd.f32 0.0, %v957
        %v959 = vpop.f32.mrf.mxu0
        %v960 = vadd.f32 0.0, %v959
        %961 = vdwg.mxu0
        %962 = vmatpush.bf16.msra.mxu0 %v907
        %963 = vmatpush.bf16.msra.mxu0 %v904
        %964 = vmatpush.bf16.msra.mxu0 %v901
        %965 = vmatpush.bf16.msra.mxu0 %v898
        %966 = vmatpush.bf16.msra.mxu0 %v895
        %967 = vmatpush.bf16.msra.mxu0 %v892
        %968 = vmatpush.bf16.msra.mxu0 %v889
        %969 = vmatpush.bf16.msra.mxu0 %v886
        %970 = vmatmul.bf16.gmra.mxu0 %v769
        %v971 = vpop.f32.mrf.mxu0
        %v972 = vadd.f32 0.0, %v971
        %v973 = vpop.f32.mrf.mxu0
        %v974 = vadd.f32 0.0, %v973
        %975 = vmatmul.bf16.gmra.mxu0 %v770
        %v976 = vpop.f32.mrf.mxu0
        %v977 = vadd.f32 0.0, %v976
        %v978 = vpop.f32.mrf.mxu0
        %v979 = vadd.f32 0.0, %v978
        %980 = vmatmul.bf16.gmra.mxu0 %v771
        %v981 = vpop.f32.mrf.mxu0
        %v982 = vadd.f32 0.0, %v981
        %v983 = vpop.f32.mrf.mxu0
        %v984 = vadd.f32 0.0, %v983
        %985 = vmatmul.bf16.gmra.mxu0 %v772
        %v986 = vpop.f32.mrf.mxu0
        %v987 = vadd.f32 0.0, %v986
        %v988 = vpop.f32.mrf.mxu0
        %v989 = vadd.f32 0.0, %v988
        %990 = vdwg.mxu0
        %991 = vmatpush.bf16.msra.mxu0 %v908
        %992 = vmatpush.bf16.msra.mxu0 %v905
        %993 = vmatpush.bf16.msra.mxu0 %v902
        %994 = vmatpush.bf16.msra.mxu0 %v899
        %995 = vmatpush.bf16.msra.mxu0 %v896
        %996 = vmatpush.bf16.msra.mxu0 %v893
        %997 = vmatpush.bf16.msra.mxu0 %v890
        %998 = vmatpush.bf16.msra.mxu0 %v887
        %999 = vmatmul.bf16.gmra.mxu0 %v769
        %v1000 = vpop.f32.mrf.mxu0
        %v1001 = vadd.f32 0.0, %v1000
        %v1002 = vpop.f32.mrf.mxu0
        %v1003 = vadd.f32 0.0, %v1002
        %1004 = vmatmul.bf16.gmra.mxu0 %v770
        %v1005 = vpop.f32.mrf.mxu0
        %v1006 = vadd.f32 0.0, %v1005
        %v1007 = vpop.f32.mrf.mxu0
        %v1008 = vadd.f32 0.0, %v1007
        %1009 = vmatmul.bf16.gmra.mxu0 %v771
        %v1010 = vpop.f32.mrf.mxu0
        %v1011 = vadd.f32 0.0, %v1010
        %v1012 = vpop.f32.mrf.mxu0
        %v1013 = vadd.f32 0.0, %v1012
        %1014 = vmatmul.bf16.gmra.mxu0 %v772
        %v1015 = vpop.f32.mrf.mxu0
        %v1016 = vadd.f32 0.0, %v1015
        %v1017 = vpop.f32.mrf.mxu0
        %v1018 = vadd.f32 0.0, %v1017
        %1019 = vdwg.mxu0
        %1028 = vrot.lane.b32.xlu0 %v943, 96
        %v1029 = vpop.permute.xlu0 %1028
        %1030 = vrot.lane.b32.xlu0 %v945, 96
        %v1031 = vpop.permute.xlu0 %1030
        %1032 = vrot.lane.b32.xlu0 %v948, 96
        %v1033 = vpop.permute.xlu0 %1032
        %1034 = vrot.lane.b32.xlu0 %v950, 96
        %v1035 = vpop.permute.xlu0 %1034
        %1036 = vrot.lane.b32.xlu0 %v953, 96
        %v1037 = vpop.permute.xlu0 %1036
        %1038 = vrot.lane.b32.xlu0 %v955, 96
        %v1039 = vpop.permute.xlu0 %1038
        %1040 = vrot.lane.b32.xlu0 %v958, 96
        %v1041 = vpop.permute.xlu0 %1040
        %1042 = vrot.lane.b32.xlu0 %v960, 96
        %v1043 = vpop.permute.xlu0 %1042
        %1052 = vrot.lane.b32.xlu0 %v943, 64
        %v1053 = vpop.permute.xlu0 %1052
        %1054 = vrot.lane.b32.xlu0 %v945, 64
        %v1055 = vpop.permute.xlu0 %1054
        %1056 = vrot.lane.b32.xlu0 %v948, 64
        %v1057 = vpop.permute.xlu0 %1056
        %1058 = vrot.lane.b32.xlu0 %v950, 64
        %v1059 = vpop.permute.xlu0 %1058
        %1060 = vrot.lane.b32.xlu0 %v953, 64
        %v1061 = vpop.permute.xlu0 %1060
        %1062 = vrot.lane.b32.xlu0 %v955, 64
        %v1063 = vpop.permute.xlu0 %1062
        %1064 = vrot.lane.b32.xlu0 %v958, 64
        %v1065 = vpop.permute.xlu0 %1064
        %1066 = vrot.lane.b32.xlu0 %v960, 64
        %v1067 = vpop.permute.xlu0 %1066
        %1076 = vrot.lane.b32.xlu0 %v943, 32
        %v1077 = vpop.permute.xlu0 %1076
        %1078 = vrot.lane.b32.xlu0 %v945, 32
        %v1079 = vpop.permute.xlu0 %1078
        %1080 = vrot.lane.b32.xlu0 %v948, 32
        %v1081 = vpop.permute.xlu0 %1080
        %1082 = vrot.lane.b32.xlu0 %v950, 32
        %v1083 = vpop.permute.xlu0 %1082
        %1084 = vrot.lane.b32.xlu0 %v953, 32
        %v1085 = vpop.permute.xlu0 %1084
        %1086 = vrot.lane.b32.xlu0 %v955, 32
        %v1087 = vpop.permute.xlu0 %1086
        %1088 = vrot.lane.b32.xlu0 %v958, 32
        %v1089 = vpop.permute.xlu0 %1088
        %1090 = vrot.lane.b32.xlu0 %v960, 32
        %v1091 = vpop.permute.xlu0 %1090
        %v1100 = vmul.f32 %v943, 0.088388346
        %v1101 = vmul.f32 %v945, 0.088388346
        %v1102 = vmul.f32 %v948, 0.088388346
        %v1103 = vmul.f32 %v950, 0.088388346
        %v1104 = vmul.f32 %v953, 0.088388346
        %v1105 = vmul.f32 %v955, 0.088388346
        %v1106 = vmul.f32 %v958, 0.088388346
        %v1107 = vmul.f32 %v960, 0.088388346
        %v1108 = vmul.f32 %v1029, 0.088388346
        %v1109 = vmul.f32 %v1031, 0.088388346
        %v1110 = vmul.f32 %v1033, 0.088388346
        %v1111 = vmul.f32 %v1035, 0.088388346
        %v1112 = vmul.f32 %v1037, 0.088388346
        %v1113 = vmul.f32 %v1039, 0.088388346
        %v1114 = vmul.f32 %v1041, 0.088388346
        %v1115 = vmul.f32 %v1043, 0.088388346
        %v1116 = vmul.f32 %v1053, 0.088388346
        %v1117 = vmul.f32 %v1055, 0.088388346
        %v1118 = vmul.f32 %v1057, 0.088388346
        %v1119 = vmul.f32 %v1059, 0.088388346
        %v1120 = vmul.f32 %v1061, 0.088388346
        %v1121 = vmul.f32 %v1063, 0.088388346
        %v1122 = vmul.f32 %v1065, 0.088388346
        %v1123 = vmul.f32 %v1067, 0.088388346
        %v1124 = vmul.f32 %v1077, 0.088388346
        %v1125 = vmul.f32 %v1079, 0.088388346
        %v1126 = vmul.f32 %v1081, 0.088388346
        %v1127 = vmul.f32 %v1083, 0.088388346
        %v1128 = vmul.f32 %v1085, 0.088388346
        %v1129 = vmul.f32 %v1087, 0.088388346
        %v1130 = vmul.f32 %v1089, 0.088388346
        %v1131 = vmul.f32 %v1091, 0.088388346
        %1140 = vrot.lane.b32.xlu0 %v972, 96
        %v1141 = vpop.permute.xlu0 %1140
        %1142 = vrot.lane.b32.xlu0 %v974, 96
        %v1143 = vpop.permute.xlu0 %1142
        %1144 = vrot.lane.b32.xlu0 %v977, 96
        %v1145 = vpop.permute.xlu0 %1144
        %1146 = vrot.lane.b32.xlu0 %v979, 96
        %v1147 = vpop.permute.xlu0 %1146
        %1148 = vrot.lane.b32.xlu0 %v982, 96
        %v1149 = vpop.permute.xlu0 %1148
        %1150 = vrot.lane.b32.xlu0 %v984, 96
        %v1151 = vpop.permute.xlu0 %1150
        %1152 = vrot.lane.b32.xlu0 %v987, 96
        %v1153 = vpop.permute.xlu0 %1152
        %1154 = vrot.lane.b32.xlu0 %v989, 96
        %v1155 = vpop.permute.xlu0 %1154
        %1164 = vrot.lane.b32.xlu0 %v972, 64
        %v1165 = vpop.permute.xlu0 %1164
        %1166 = vrot.lane.b32.xlu0 %v974, 64
        %v1167 = vpop.permute.xlu0 %1166
        %1168 = vrot.lane.b32.xlu0 %v977, 64
        %v1169 = vpop.permute.xlu0 %1168
        %1170 = vrot.lane.b32.xlu0 %v979, 64
        %v1171 = vpop.permute.xlu0 %1170
        %1172 = vrot.lane.b32.xlu0 %v982, 64
        %v1173 = vpop.permute.xlu0 %1172
        %1174 = vrot.lane.b32.xlu0 %v984, 64
        %v1175 = vpop.permute.xlu0 %1174
        %1176 = vrot.lane.b32.xlu0 %v987, 64
        %v1177 = vpop.permute.xlu0 %1176
        %1178 = vrot.lane.b32.xlu0 %v989, 64
        %v1179 = vpop.permute.xlu0 %1178
        %1188 = vrot.lane.b32.xlu0 %v972, 32
        %v1189 = vpop.permute.xlu0 %1188
        %1190 = vrot.lane.b32.xlu0 %v974, 32
        %v1191 = vpop.permute.xlu0 %1190
        %1192 = vrot.lane.b32.xlu0 %v977, 32
        %v1193 = vpop.permute.xlu0 %1192
        %1194 = vrot.lane.b32.xlu0 %v979, 32
        %v1195 = vpop.permute.xlu0 %1194
        %1196 = vrot.lane.b32.xlu0 %v982, 32
        %v1197 = vpop.permute.xlu0 %1196
        %1198 = vrot.lane.b32.xlu0 %v984, 32
        %v1199 = vpop.permute.xlu0 %1198
        %1200 = vrot.lane.b32.xlu0 %v987, 32
        %v1201 = vpop.permute.xlu0 %1200
        %1202 = vrot.lane.b32.xlu0 %v989, 32
        %v1203 = vpop.permute.xlu0 %1202
        %1220 = vrot.lane.b32.xlu0 %v1001, 96
        %v1221 = vpop.permute.xlu0 %1220
        %1222 = vrot.lane.b32.xlu0 %v1003, 96
        %v1223 = vpop.permute.xlu0 %1222
        %1224 = vrot.lane.b32.xlu0 %v1006, 96
        %v1225 = vpop.permute.xlu0 %1224
        %1226 = vrot.lane.b32.xlu0 %v1008, 96
        %v1227 = vpop.permute.xlu0 %1226
        %1228 = vrot.lane.b32.xlu0 %v1011, 96
        %v1229 = vpop.permute.xlu0 %1228
        %1230 = vrot.lane.b32.xlu0 %v1013, 96
        %v1231 = vpop.permute.xlu0 %1230
        %1232 = vrot.lane.b32.xlu0 %v1016, 96
        %v1233 = vpop.permute.xlu0 %1232
        %1234 = vrot.lane.b32.xlu0 %v1018, 96
        %v1235 = vpop.permute.xlu0 %1234
        %1244 = vrot.lane.b32.xlu0 %v1001, 64
        %v1245 = vpop.permute.xlu0 %1244
        %1246 = vrot.lane.b32.xlu0 %v1003, 64
        %v1247 = vpop.permute.xlu0 %1246
        %1248 = vrot.lane.b32.xlu0 %v1006, 64
        %v1249 = vpop.permute.xlu0 %1248
        %1250 = vrot.lane.b32.xlu0 %v1008, 64
        %v1251 = vpop.permute.xlu0 %1250
        %1252 = vrot.lane.b32.xlu0 %v1011, 64
        %v1253 = vpop.permute.xlu0 %1252
        %1254 = vrot.lane.b32.xlu0 %v1013, 64
        %v1255 = vpop.permute.xlu0 %1254
        %1256 = vrot.lane.b32.xlu0 %v1016, 64
        %v1257 = vpop.permute.xlu0 %1256
        %1258 = vrot.lane.b32.xlu0 %v1018, 64
        %v1259 = vpop.permute.xlu0 %1258
        %1268 = vrot.lane.b32.xlu0 %v1001, 32
        %v1269 = vpop.permute.xlu0 %1268
        %1270 = vrot.lane.b32.xlu0 %v1003, 32
        %v1271 = vpop.permute.xlu0 %1270
        %1272 = vrot.lane.b32.xlu0 %v1006, 32
        %v1273 = vpop.permute.xlu0 %1272
        %1274 = vrot.lane.b32.xlu0 %v1008, 32
        %v1275 = vpop.permute.xlu0 %1274
        %1276 = vrot.lane.b32.xlu0 %v1011, 32
        %v1277 = vpop.permute.xlu0 %1276
        %1278 = vrot.lane.b32.xlu0 %v1013, 32
        %v1279 = vpop.permute.xlu0 %1278
        %1280 = vrot.lane.b32.xlu0 %v1016, 32
        %v1281 = vpop.permute.xlu0 %1280
        %1282 = vrot.lane.b32.xlu0 %v1018, 32
        %v1283 = vpop.permute.xlu0 %1282
        %v1292 = vpack.c.bf16 %v1100, %v1100
        %v1293 = vpack.c.bf16 %v1101, %v1101
        %v1294 = vpack.c.bf16 %v1102, %v1102
        %v1295 = vpack.c.bf16 %v1103, %v1103
        %v1296 = vpack.c.bf16 %v1104, %v1104
        %v1297 = vpack.c.bf16 %v1105, %v1105
        %v1298 = vpack.c.bf16 %v1106, %v1106
        %v1299 = vpack.c.bf16 %v1107, %v1107
        %v1300 = vpack.c.bf16 %v1108, %v1108
        %v1301 = vpack.c.bf16 %v1109, %v1109
        %v1302 = vpack.c.bf16 %v1110, %v1110
        %v1303 = vpack.c.bf16 %v1111, %v1111
        %v1304 = vpack.c.bf16 %v1112, %v1112
        %v1305 = vpack.c.bf16 %v1113, %v1113
        %v1306 = vpack.c.bf16 %v1114, %v1114
        %v1307 = vpack.c.bf16 %v1115, %v1115
        %v1308 = vpack.c.bf16 %v1116, %v1116
        %v1309 = vpack.c.bf16 %v1117, %v1117
        %v1310 = vpack.c.bf16 %v1118, %v1118
        %v1311 = vpack.c.bf16 %v1119, %v1119
        %v1312 = vpack.c.bf16 %v1120, %v1120
        %v1313 = vpack.c.bf16 %v1121, %v1121
        %v1314 = vpack.c.bf16 %v1122, %v1122
        %v1315 = vpack.c.bf16 %v1123, %v1123
        %v1316 = vpack.c.bf16 %v1124, %v1124
        %v1317 = vpack.c.bf16 %v1125, %v1125
        %v1318 = vpack.c.bf16 %v1126, %v1126
        %v1319 = vpack.c.bf16 %v1127, %v1127
        %v1320 = vpack.c.bf16 %v1128, %v1128
        %v1321 = vpack.c.bf16 %v1129, %v1129
        %v1322 = vpack.c.bf16 %v1130, %v1130
        %v1323 = vpack.c.bf16 %v1131, %v1131
        %v1324 = vpack.c.bf16 %v972, %v972
        %v1325 = vpack.c.bf16 %v974, %v974
        %v1326 = vpack.c.bf16 %v977, %v977
        %v1327 = vpack.c.bf16 %v979, %v979
        %v1328 = vpack.c.bf16 %v982, %v982
        %v1329 = vpack.c.bf16 %v984, %v984
        %v1330 = vpack.c.bf16 %v987, %v987
        %v1331 = vpack.c.bf16 %v989, %v989
        %v1332 = vpack.c.bf16 %v1141, %v1141
        %v1333 = vpack.c.bf16 %v1143, %v1143
        %v1334 = vpack.c.bf16 %v1145, %v1145
        %v1335 = vpack.c.bf16 %v1147, %v1147
        %v1336 = vpack.c.bf16 %v1149, %v1149
        %v1337 = vpack.c.bf16 %v1151, %v1151
        %v1338 = vpack.c.bf16 %v1153, %v1153
        %v1339 = vpack.c.bf16 %v1155, %v1155
        %v1340 = vpack.c.bf16 %v1165, %v1165
        %v1341 = vpack.c.bf16 %v1167, %v1167
        %v1342 = vpack.c.bf16 %v1169, %v1169
        %v1343 = vpack.c.bf16 %v1171, %v1171
        %v1344 = vpack.c.bf16 %v1173, %v1173
        %v1345 = vpack.c.bf16 %v1175, %v1175
        %v1346 = vpack.c.bf16 %v1177, %v1177
        %v1347 = vpack.c.bf16 %v1179, %v1179
        %v1348 = vpack.c.bf16 %v1189, %v1189
        %v1349 = vpack.c.bf16 %v1191, %v1191
        %v1350 = vpack.c.bf16 %v1193, %v1193
        %v1351 = vpack.c.bf16 %v1195, %v1195
        %v1352 = vpack.c.bf16 %v1197, %v1197
        %v1353 = vpack.c.bf16 %v1199, %v1199
        %v1354 = vpack.c.bf16 %v1201, %v1201
        %v1355 = vpack.c.bf16 %v1203, %v1203
        %v1364 = vunpack.c.l.b16 %v1292
        %v1365 = vunpack.c.l.b16 %v1293
        %v1366 = vunpack.c.l.b16 %v1294
        %v1367 = vunpack.c.l.b16 %v1295
        %v1368 = vunpack.c.l.b16 %v1296
        %v1369 = vunpack.c.l.b16 %v1297
        %v1370 = vunpack.c.l.b16 %v1298
        %v1371 = vunpack.c.l.b16 %v1299
        %v1372 = vpack.c.b16 %v1365, %v1364
        %v1373 = vpack.c.b16 %v1367, %v1366
        %v1374 = vpack.c.b16 %v1369, %v1368
        %v1375 = vpack.c.b16 %v1371, %v1370
        %v1384 = vunpack.c.l.b16 %v1324
        %v1385 = vunpack.c.l.b16 %v1325
        %v1386 = vunpack.c.l.b16 %v1326
        %v1387 = vunpack.c.l.b16 %v1327
        %v1388 = vunpack.c.l.b16 %v1328
        %v1389 = vunpack.c.l.b16 %v1329
        %v1390 = vunpack.c.l.b16 %v1330
        %v1391 = vunpack.c.l.b16 %v1331
        %v1392 = vpack.c.b16 %v1385, %v1384
        %v1393 = vpack.c.b16 %v1387, %v1386
        %v1394 = vpack.c.b16 %v1389, %v1388
        %v1395 = vpack.c.b16 %v1391, %v1390
        %vm1396 = vcmask 261120
        %v1398 = vsel %vm1396, %v1372, 0
        %v1401 = vsel %vm1396, %v1373, 0
        %v1404 = vsel %vm1396, %v1374, 0
        %v1407 = vsel %vm1396, %v1375, 0
        %v1410 = vsel %vm1396, %v1392, 0
        %v1413 = vsel %vm1396, %v1393, 0
        %v1416 = vsel %vm1396, %v1394, 0
        %v1419 = vsel %vm1396, %v1395, 0
        %1421 = vmatpush.bf16.xpose.msra.mxu0 0
        %1422 = vmatpush.bf16.xpose.msra.mxu0 0
        %1423 = vmatpush.bf16.xpose.msra.mxu0 0
        %1424 = vmatpush.bf16.xpose.msra.mxu0 0
        %1425 = vmatpush.bf16.xpose.msra.mxu0 %v1419
        %1426 = vmatpush.bf16.xpose.msra.mxu0 %v1416
        %1427 = vmatpush.bf16.xpose.msra.mxu0 %v1413
        %1428 = vmatpush.bf16.xpose.msra.mxu0 %v1410
        %1429 = vmatmul.bf16.gmra.mxu0 %v1398
        %v1430 = vpop.f32.mrf.mxu0
        %v1431 = vadd.f32 0.0, %v1430
        %v1432 = vpop.f32.mrf.mxu0
        %v1433 = vadd.f32 0.0, %v1432
        %1434 = vmatmul.bf16.gmra.mxu0 %v1401
        %v1435 = vpop.f32.mrf.mxu0
        %v1436 = vadd.f32 0.0, %v1435
        %v1437 = vpop.f32.mrf.mxu0
        %v1438 = vadd.f32 0.0, %v1437
        %1439 = vmatmul.bf16.gmra.mxu0 %v1404
        %v1440 = vpop.f32.mrf.mxu0
        %v1441 = vadd.f32 0.0, %v1440
        %v1442 = vpop.f32.mrf.mxu0
        %v1443 = vadd.f32 0.0, %v1442
        %1444 = vmatmul.bf16.gmra.mxu0 %v1407
        %v1445 = vpop.f32.mrf.mxu0
        %v1446 = vadd.f32 0.0, %v1445
        %v1447 = vpop.f32.mrf.mxu0
        %v1448 = vadd.f32 0.0, %v1447
        %1449 = vdwg.mxu0
        %v1458 = vunpack.c.l.b16 %v1300
        %v1459 = vunpack.c.l.b16 %v1301
        %v1460 = vunpack.c.l.b16 %v1302
        %v1461 = vunpack.c.l.b16 %v1303
        %v1462 = vunpack.c.l.b16 %v1304
        %v1463 = vunpack.c.l.b16 %v1305
        %v1464 = vunpack.c.l.b16 %v1306
        %v1465 = vunpack.c.l.b16 %v1307
        %v1466 = vpack.c.b16 %v1459, %v1458
        %v1467 = vpack.c.b16 %v1461, %v1460
        %v1468 = vpack.c.b16 %v1463, %v1462
        %v1469 = vpack.c.b16 %v1465, %v1464
        %v1478 = vunpack.c.l.b16 %v1332
        %v1479 = vunpack.c.l.b16 %v1333
        %v1480 = vunpack.c.l.b16 %v1334
        %v1481 = vunpack.c.l.b16 %v1335
        %v1482 = vunpack.c.l.b16 %v1336
        %v1483 = vunpack.c.l.b16 %v1337
        %v1484 = vunpack.c.l.b16 %v1338
        %v1485 = vunpack.c.l.b16 %v1339
        %v1486 = vpack.c.b16 %v1479, %v1478
        %v1487 = vpack.c.b16 %v1481, %v1480
        %v1488 = vpack.c.b16 %v1483, %v1482
        %v1489 = vpack.c.b16 %v1485, %v1484
        %v1491 = vsel %vm1396, %v1466, 0
        %v1494 = vsel %vm1396, %v1467, 0
        %v1497 = vsel %vm1396, %v1468, 0
        %v1500 = vsel %vm1396, %v1469, 0
        %v1503 = vsel %vm1396, %v1486, 0
        %v1506 = vsel %vm1396, %v1487, 0
        %v1509 = vsel %vm1396, %v1488, 0
        %v1512 = vsel %vm1396, %v1489, 0
        %1514 = vmatpush.bf16.xpose.msra.mxu0 0
        %1515 = vmatpush.bf16.xpose.msra.mxu0 0
        %1516 = vmatpush.bf16.xpose.msra.mxu0 0
        %1517 = vmatpush.bf16.xpose.msra.mxu0 0
        %1518 = vmatpush.bf16.xpose.msra.mxu0 %v1512
        %1519 = vmatpush.bf16.xpose.msra.mxu0 %v1509
        %1520 = vmatpush.bf16.xpose.msra.mxu0 %v1506
        %1521 = vmatpush.bf16.xpose.msra.mxu0 %v1503
        %1522 = vmatmul.bf16.gmra.mxu0 %v1491
        %v1523 = vpop.f32.mrf.mxu0
        %v1524 = vadd.f32 0.0, %v1523
        %v1525 = vpop.f32.mrf.mxu0
        %v1526 = vadd.f32 0.0, %v1525
        %1527 = vmatmul.bf16.gmra.mxu0 %v1494
        %v1528 = vpop.f32.mrf.mxu0
        %v1529 = vadd.f32 0.0, %v1528
        %v1530 = vpop.f32.mrf.mxu0
        %v1531 = vadd.f32 0.0, %v1530
        %1532 = vmatmul.bf16.gmra.mxu0 %v1497
        %v1533 = vpop.f32.mrf.mxu0
        %v1534 = vadd.f32 0.0, %v1533
        %v1535 = vpop.f32.mrf.mxu0
        %v1536 = vadd.f32 0.0, %v1535
        %1537 = vmatmul.bf16.gmra.mxu0 %v1500
        %v1538 = vpop.f32.mrf.mxu0
        %v1539 = vadd.f32 0.0, %v1538
        %v1540 = vpop.f32.mrf.mxu0
        %v1541 = vadd.f32 0.0, %v1540
        %1542 = vdwg.mxu0
        %v1551 = vunpack.c.l.b16 %v1308
        %v1552 = vunpack.c.l.b16 %v1309
        %v1553 = vunpack.c.l.b16 %v1310
        %v1554 = vunpack.c.l.b16 %v1311
        %v1555 = vunpack.c.l.b16 %v1312
        %v1556 = vunpack.c.l.b16 %v1313
        %v1557 = vunpack.c.l.b16 %v1314
        %v1558 = vunpack.c.l.b16 %v1315
        %v1559 = vpack.c.b16 %v1552, %v1551
        %v1560 = vpack.c.b16 %v1554, %v1553
        %v1561 = vpack.c.b16 %v1556, %v1555
        %v1562 = vpack.c.b16 %v1558, %v1557
        %v1571 = vunpack.c.l.b16 %v1340
        %v1572 = vunpack.c.l.b16 %v1341
        %v1573 = vunpack.c.l.b16 %v1342
        %v1574 = vunpack.c.l.b16 %v1343
        %v1575 = vunpack.c.l.b16 %v1344
        %v1576 = vunpack.c.l.b16 %v1345
        %v1577 = vunpack.c.l.b16 %v1346
        %v1578 = vunpack.c.l.b16 %v1347
        %v1579 = vpack.c.b16 %v1572, %v1571
        %v1580 = vpack.c.b16 %v1574, %v1573
        %v1581 = vpack.c.b16 %v1576, %v1575
        %v1582 = vpack.c.b16 %v1578, %v1577
        %v1584 = vsel %vm1396, %v1559, 0
        %v1587 = vsel %vm1396, %v1560, 0
        %v1590 = vsel %vm1396, %v1561, 0
        %v1593 = vsel %vm1396, %v1562, 0
        %v1596 = vsel %vm1396, %v1579, 0
        %v1599 = vsel %vm1396, %v1580, 0
        %v1602 = vsel %vm1396, %v1581, 0
        %v1605 = vsel %vm1396, %v1582, 0
        %1607 = vmatpush.bf16.xpose.msra.mxu0 0
        %1608 = vmatpush.bf16.xpose.msra.mxu0 0
        %1609 = vmatpush.bf16.xpose.msra.mxu0 0
        %1610 = vmatpush.bf16.xpose.msra.mxu0 0
        %1611 = vmatpush.bf16.xpose.msra.mxu0 %v1605
        %1612 = vmatpush.bf16.xpose.msra.mxu0 %v1602
        %1613 = vmatpush.bf16.xpose.msra.mxu0 %v1599
        %1614 = vmatpush.bf16.xpose.msra.mxu0 %v1596
        %1615 = vmatmul.bf16.gmra.mxu0 %v1584
        %v1616 = vpop.f32.mrf.mxu0
        %v1617 = vadd.f32 0.0, %v1616
        %v1618 = vpop.f32.mrf.mxu0
        %v1619 = vadd.f32 0.0, %v1618
        %1620 = vmatmul.bf16.gmra.mxu0 %v1587
        %v1621 = vpop.f32.mrf.mxu0
        %v1622 = vadd.f32 0.0, %v1621
        %v1623 = vpop.f32.mrf.mxu0
        %v1624 = vadd.f32 0.0, %v1623
        %1625 = vmatmul.bf16.gmra.mxu0 %v1590
        %v1626 = vpop.f32.mrf.mxu0
        %v1627 = vadd.f32 0.0, %v1626
        %v1628 = vpop.f32.mrf.mxu0
        %v1629 = vadd.f32 0.0, %v1628
        %1630 = vmatmul.bf16.gmra.mxu0 %v1593
        %v1631 = vpop.f32.mrf.mxu0
        %v1632 = vadd.f32 0.0, %v1631
        %v1633 = vpop.f32.mrf.mxu0
        %v1634 = vadd.f32 0.0, %v1633
        %1635 = vdwg.mxu0
        %v1644 = vunpack.c.l.b16 %v1316
        %v1645 = vunpack.c.l.b16 %v1317
        %v1646 = vunpack.c.l.b16 %v1318
        %v1647 = vunpack.c.l.b16 %v1319
        %v1648 = vunpack.c.l.b16 %v1320
        %v1649 = vunpack.c.l.b16 %v1321
        %v1650 = vunpack.c.l.b16 %v1322
        %v1651 = vunpack.c.l.b16 %v1323
        %v1652 = vpack.c.b16 %v1645, %v1644
        %v1653 = vpack.c.b16 %v1647, %v1646
        %v1654 = vpack.c.b16 %v1649, %v1648
        %v1655 = vpack.c.b16 %v1651, %v1650
        %v1664 = vunpack.c.l.b16 %v1348
        %v1665 = vunpack.c.l.b16 %v1349
        %v1666 = vunpack.c.l.b16 %v1350
        %v1667 = vunpack.c.l.b16 %v1351
        %v1668 = vunpack.c.l.b16 %v1352
        %v1669 = vunpack.c.l.b16 %v1353
        %v1670 = vunpack.c.l.b16 %v1354
        %v1671 = vunpack.c.l.b16 %v1355
        %v1672 = vpack.c.b16 %v1665, %v1664
        %v1673 = vpack.c.b16 %v1667, %v1666
        %v1674 = vpack.c.b16 %v1669, %v1668
        %v1675 = vpack.c.b16 %v1671, %v1670
        %v1677 = vsel %vm1396, %v1652, 0
        %v1680 = vsel %vm1396, %v1653, 0
        %v1683 = vsel %vm1396, %v1654, 0
        %v1686 = vsel %vm1396, %v1655, 0
        %v1689 = vsel %vm1396, %v1672, 0
        %v1692 = vsel %vm1396, %v1673, 0
        %v1695 = vsel %vm1396, %v1674, 0
        %v1698 = vsel %vm1396, %v1675, 0
        %1700 = vmatpush.bf16.xpose.msra.mxu0 0
        %1701 = vmatpush.bf16.xpose.msra.mxu0 0
        %1702 = vmatpush.bf16.xpose.msra.mxu0 0
        %1703 = vmatpush.bf16.xpose.msra.mxu0 0
        %1704 = vmatpush.bf16.xpose.msra.mxu0 %v1698
        %1705 = vmatpush.bf16.xpose.msra.mxu0 %v1695
        %1706 = vmatpush.bf16.xpose.msra.mxu0 %v1692
        %1707 = vmatpush.bf16.xpose.msra.mxu0 %v1689
        %1708 = vmatmul.bf16.gmra.mxu0 %v1677
        %v1709 = vpop.f32.mrf.mxu0
        %v1710 = vadd.f32 0.0, %v1709
        %v1711 = vpop.f32.mrf.mxu0
        %v1712 = vadd.f32 0.0, %v1711
        %1713 = vmatmul.bf16.gmra.mxu0 %v1680
        %v1714 = vpop.f32.mrf.mxu0
        %v1715 = vadd.f32 0.0, %v1714
        %v1716 = vpop.f32.mrf.mxu0
        %v1717 = vadd.f32 0.0, %v1716
        %1718 = vmatmul.bf16.gmra.mxu0 %v1683
        %v1719 = vpop.f32.mrf.mxu0
        %v1720 = vadd.f32 0.0, %v1719
        %v1721 = vpop.f32.mrf.mxu0
        %v1722 = vadd.f32 0.0, %v1721
        %1723 = vmatmul.bf16.gmra.mxu0 %v1686
        %v1724 = vpop.f32.mrf.mxu0
        %v1725 = vadd.f32 0.0, %v1724
        %v1726 = vpop.f32.mrf.mxu0
        %v1727 = vadd.f32 0.0, %v1726
        %1728 = vdwg.mxu0
        %vm1729 = vcmask 523264
        %v1730 = vsel %vm1729, %v1431, -inf
        %1731 = vmax.xlane.f32.xlu0 %v1730
        %v1732 = vpop.xlane.xlu0 %1731
        %v1733 = vsel %vm1729, %v1433, -inf
        %1734 = vmax.xlane.f32.xlu0 %v1733
        %v1735 = vpop.xlane.xlu0 %1734
        %v1736 = vsel %vm1729, %v1436, -inf
        %1737 = vmax.xlane.f32.xlu0 %v1736
        %v1738 = vpop.xlane.xlu0 %1737
        %v1739 = vsel %vm1729, %v1438, -inf
        %1740 = vmax.xlane.f32.xlu0 %v1739
        %v1741 = vpop.xlane.xlu0 %1740
        %v1742 = vsel %vm1729, %v1441, -inf
        %1743 = vmax.xlane.f32.xlu0 %v1742
        %v1744 = vpop.xlane.xlu0 %1743
        %v1745 = vsel %vm1729, %v1443, -inf
        %1746 = vmax.xlane.f32.xlu0 %v1745
        %v1747 = vpop.xlane.xlu0 %1746
        %v1748 = vsel %vm1729, %v1446, -inf
        %1749 = vmax.xlane.f32.xlu0 %v1748
        %v1750 = vpop.xlane.xlu0 %1749
        %v1751 = vsel %vm1729, %v1448, -inf
        %1752 = vmax.xlane.f32.xlu0 %v1751
        %v1753 = vpop.xlane.xlu0 %1752
        %v1754 = vsel %vm1729, %v1524, -inf
        %1755 = vmax.xlane.f32.xlu0 %v1754
        %v1756 = vpop.xlane.xlu0 %1755
        %v1757 = vsel %vm1729, %v1526, -inf
        %1758 = vmax.xlane.f32.xlu0 %v1757
        %v1759 = vpop.xlane.xlu0 %1758
        %v1760 = vsel %vm1729, %v1529, -inf
        %1761 = vmax.xlane.f32.xlu0 %v1760
        %v1762 = vpop.xlane.xlu0 %1761
        %v1763 = vsel %vm1729, %v1531, -inf
        %1764 = vmax.xlane.f32.xlu0 %v1763
        %v1765 = vpop.xlane.xlu0 %1764
        %v1766 = vsel %vm1729, %v1534, -inf
        %1767 = vmax.xlane.f32.xlu0 %v1766
        %v1768 = vpop.xlane.xlu0 %1767
        %v1769 = vsel %vm1729, %v1536, -inf
        %1770 = vmax.xlane.f32.xlu0 %v1769
        %v1771 = vpop.xlane.xlu0 %1770
        %v1772 = vsel %vm1729, %v1539, -inf
        %1773 = vmax.xlane.f32.xlu0 %v1772
        %v1774 = vpop.xlane.xlu0 %1773
        %v1775 = vsel %vm1729, %v1541, -inf
        %1776 = vmax.xlane.f32.xlu0 %v1775
        %v1777 = vpop.xlane.xlu0 %1776
        %v1778 = vsel %vm1729, %v1617, -inf
        %1779 = vmax.xlane.f32.xlu0 %v1778
        %v1780 = vpop.xlane.xlu0 %1779
        %v1781 = vsel %vm1729, %v1619, -inf
        %1782 = vmax.xlane.f32.xlu0 %v1781
        %v1783 = vpop.xlane.xlu0 %1782
        %v1784 = vsel %vm1729, %v1622, -inf
        %1785 = vmax.xlane.f32.xlu0 %v1784
        %v1786 = vpop.xlane.xlu0 %1785
        %v1787 = vsel %vm1729, %v1624, -inf
        %1788 = vmax.xlane.f32.xlu0 %v1787
        %v1789 = vpop.xlane.xlu0 %1788
        %v1790 = vsel %vm1729, %v1627, -inf
        %1791 = vmax.xlane.f32.xlu0 %v1790
        %v1792 = vpop.xlane.xlu0 %1791
        %v1793 = vsel %vm1729, %v1629, -inf
        %1794 = vmax.xlane.f32.xlu0 %v1793
        %v1795 = vpop.xlane.xlu0 %1794
        %v1796 = vsel %vm1729, %v1632, -inf
        %1797 = vmax.xlane.f32.xlu0 %v1796
        %v1798 = vpop.xlane.xlu0 %1797
        %v1799 = vsel %vm1729, %v1634, -inf
        %1800 = vmax.xlane.f32.xlu0 %v1799
        %v1801 = vpop.xlane.xlu0 %1800
        %v1802 = vsel %vm1729, %v1710, -inf
        %1803 = vmax.xlane.f32.xlu0 %v1802
        %v1804 = vpop.xlane.xlu0 %1803
        %v1805 = vsel %vm1729, %v1712, -inf
        %1806 = vmax.xlane.f32.xlu0 %v1805
        %v1807 = vpop.xlane.xlu0 %1806
        %v1808 = vsel %vm1729, %v1715, -inf
        %1809 = vmax.xlane.f32.xlu0 %v1808
        %v1810 = vpop.xlane.xlu0 %1809
        %v1811 = vsel %vm1729, %v1717, -inf
        %1812 = vmax.xlane.f32.xlu0 %v1811
        %v1813 = vpop.xlane.xlu0 %1812
        %v1814 = vsel %vm1729, %v1720, -inf
        %1815 = vmax.xlane.f32.xlu0 %v1814
        %v1816 = vpop.xlane.xlu0 %1815
        %v1817 = vsel %vm1729, %v1722, -inf
        %1818 = vmax.xlane.f32.xlu0 %v1817
        %v1819 = vpop.xlane.xlu0 %1818
        %v1820 = vsel %vm1729, %v1725, -inf
        %1821 = vmax.xlane.f32.xlu0 %v1820
        %v1822 = vpop.xlane.xlu0 %1821
        %v1823 = vsel %vm1729, %v1727, -inf
        %1824 = vmax.xlane.f32.xlu0 %v1823
        %v1825 = vpop.xlane.xlu0 %1824
        %v1826 = vsub.f32 %v1431, %v1732
        %v1827 = vsub.f32 %v1433, %v1735
        %v1828 = vsub.f32 %v1436, %v1738
        %v1829 = vsub.f32 %v1438, %v1741
        %v1830 = vsub.f32 %v1441, %v1744
        %v1831 = vsub.f32 %v1443, %v1747
        %v1832 = vsub.f32 %v1446, %v1750
        %v1833 = vsub.f32 %v1448, %v1753
        %v1834 = vsub.f32 %v1524, %v1756
        %v1835 = vsub.f32 %v1526, %v1759
        %v1836 = vsub.f32 %v1529, %v1762
        %v1837 = vsub.f32 %v1531, %v1765
        %v1838 = vsub.f32 %v1534, %v1768
        %v1839 = vsub.f32 %v1536, %v1771
        %v1840 = vsub.f32 %v1539, %v1774
        %v1841 = vsub.f32 %v1541, %v1777
        %v1842 = vsub.f32 %v1617, %v1780
        %v1843 = vsub.f32 %v1619, %v1783
        %v1844 = vsub.f32 %v1622, %v1786
        %v1845 = vsub.f32 %v1624, %v1789
        %v1846 = vsub.f32 %v1627, %v1792
        %v1847 = vsub.f32 %v1629, %v1795
        %v1848 = vsub.f32 %v1632, %v1798
        %v1849 = vsub.f32 %v1634, %v1801
        %v1850 = vsub.f32 %v1710, %v1804
        %v1851 = vsub.f32 %v1712, %v1807
        %v1852 = vsub.f32 %v1715, %v1810
        %v1853 = vsub.f32 %v1717, %v1813
        %v1854 = vsub.f32 %v1720, %v1816
        %v1855 = vsub.f32 %v1722, %v1819
        %v1856 = vsub.f32 %v1725, %v1822
        %v1857 = vsub.f32 %v1727, %v1825
        %v1858 = vmul.f32 %v1826, 1.442695
        %v1859 = vpow.pop %v1858
        %v1860 = vmul.f32 %v1827, 1.442695
        %v1861 = vpow.pop %v1860
        %v1862 = vmul.f32 %v1828, 1.442695
        %v1863 = vpow.pop %v1862
        %v1864 = vmul.f32 %v1829, 1.442695
        %v1865 = vpow.pop %v1864
        %v1866 = vmul.f32 %v1830, 1.442695
        %v1867 = vpow.pop %v1866
        %v1868 = vmul.f32 %v1831, 1.442695
        %v1869 = vpow.pop %v1868
        %v1870 = vmul.f32 %v1832, 1.442695
        %v1871 = vpow.pop %v1870
        %v1872 = vmul.f32 %v1833, 1.442695
        %v1873 = vpow.pop %v1872
        %v1874 = vmul.f32 %v1834, 1.442695
        %v1875 = vpow.pop %v1874
        %v1876 = vmul.f32 %v1835, 1.442695
        %v1877 = vpow.pop %v1876
        %v1878 = vmul.f32 %v1836, 1.442695
        %v1879 = vpow.pop %v1878
        %v1880 = vmul.f32 %v1837, 1.442695
        %v1881 = vpow.pop %v1880
        %v1882 = vmul.f32 %v1838, 1.442695
        %v1883 = vpow.pop %v1882
        %v1884 = vmul.f32 %v1839, 1.442695
        %v1885 = vpow.pop %v1884
        %v1886 = vmul.f32 %v1840, 1.442695
        %v1887 = vpow.pop %v1886
        %v1888 = vmul.f32 %v1841, 1.442695
        %v1889 = vpow.pop %v1888
        %v1890 = vmul.f32 %v1842, 1.442695
        %v1891 = vpow.pop %v1890
        %v1892 = vmul.f32 %v1843, 1.442695
        %v1893 = vpow.pop %v1892
        %v1894 = vmul.f32 %v1844, 1.442695
        %v1895 = vpow.pop %v1894
        %v1896 = vmul.f32 %v1845, 1.442695
        %v1897 = vpow.pop %v1896
        %v1898 = vmul.f32 %v1846, 1.442695
        %v1899 = vpow.pop %v1898
        %v1900 = vmul.f32 %v1847, 1.442695
        %v1901 = vpow.pop %v1900
        %v1902 = vmul.f32 %v1848, 1.442695
        %v1903 = vpow.pop %v1902
        %v1904 = vmul.f32 %v1849, 1.442695
        %v1905 = vpow.pop %v1904
        %v1906 = vmul.f32 %v1850, 1.442695
        %v1907 = vpow.pop %v1906
        %v1908 = vmul.f32 %v1851, 1.442695
        %v1909 = vpow.pop %v1908
        %v1910 = vmul.f32 %v1852, 1.442695
        %v1911 = vpow.pop %v1910
        %v1912 = vmul.f32 %v1853, 1.442695
        %v1913 = vpow.pop %v1912
        %v1914 = vmul.f32 %v1854, 1.442695
        %v1915 = vpow.pop %v1914
        %v1916 = vmul.f32 %v1855, 1.442695
        %v1917 = vpow.pop %v1916
        %v1918 = vmul.f32 %v1856, 1.442695
        %v1919 = vpow.pop %v1918
        %v1920 = vmul.f32 %v1857, 1.442695
        %v1921 = vpow.pop %v1920
        %v1922 = vsel %vm1729, %v1859, 0.0
        %1923 = vadd.xlane.f32.xlu0 %v1922
        %v1924 = vpop.xlane.xlu0 %1923
        %v1925 = vsel %vm1729, %v1861, 0.0
        %1926 = vadd.xlane.f32.xlu0 %v1925
        %v1927 = vpop.xlane.xlu0 %1926
        %v1928 = vsel %vm1729, %v1863, 0.0
        %1929 = vadd.xlane.f32.xlu0 %v1928
        %v1930 = vpop.xlane.xlu0 %1929
        %v1931 = vsel %vm1729, %v1865, 0.0
        %1932 = vadd.xlane.f32.xlu0 %v1931
        %v1933 = vpop.xlane.xlu0 %1932
        %v1934 = vsel %vm1729, %v1867, 0.0
        %1935 = vadd.xlane.f32.xlu0 %v1934
        %v1936 = vpop.xlane.xlu0 %1935
        %v1937 = vsel %vm1729, %v1869, 0.0
        %1938 = vadd.xlane.f32.xlu0 %v1937
        %v1939 = vpop.xlane.xlu0 %1938
        %v1940 = vsel %vm1729, %v1871, 0.0
        %1941 = vadd.xlane.f32.xlu0 %v1940
        %v1942 = vpop.xlane.xlu0 %1941
        %v1943 = vsel %vm1729, %v1873, 0.0
        %1944 = vadd.xlane.f32.xlu0 %v1943
        %v1945 = vpop.xlane.xlu0 %1944
        %v1946 = vsel %vm1729, %v1875, 0.0
        %1947 = vadd.xlane.f32.xlu0 %v1946
        %v1948 = vpop.xlane.xlu0 %1947
        %v1949 = vsel %vm1729, %v1877, 0.0
        %1950 = vadd.xlane.f32.xlu0 %v1949
        %v1951 = vpop.xlane.xlu0 %1950
        %v1952 = vsel %vm1729, %v1879, 0.0
        %1953 = vadd.xlane.f32.xlu0 %v1952
        %v1954 = vpop.xlane.xlu0 %1953
        %v1955 = vsel %vm1729, %v1881, 0.0
        %1956 = vadd.xlane.f32.xlu0 %v1955
        %v1957 = vpop.xlane.xlu0 %1956
        %v1958 = vsel %vm1729, %v1883, 0.0
        %1959 = vadd.xlane.f32.xlu0 %v1958
        %v1960 = vpop.xlane.xlu0 %1959
        %v1961 = vsel %vm1729, %v1885, 0.0
        %1962 = vadd.xlane.f32.xlu0 %v1961
        %v1963 = vpop.xlane.xlu0 %1962
        %v1964 = vsel %vm1729, %v1887, 0.0
        %1965 = vadd.xlane.f32.xlu0 %v1964
        %v1966 = vpop.xlane.xlu0 %1965
        %v1967 = vsel %vm1729, %v1889, 0.0
        %1968 = vadd.xlane.f32.xlu0 %v1967
        %v1969 = vpop.xlane.xlu0 %1968
        %v1970 = vsel %vm1729, %v1891, 0.0
        %1971 = vadd.xlane.f32.xlu0 %v1970
        %v1972 = vpop.xlane.xlu0 %1971
        %v1973 = vsel %vm1729, %v1893, 0.0
        %1974 = vadd.xlane.f32.xlu0 %v1973
        %v1975 = vpop.xlane.xlu0 %1974
        %v1976 = vsel %vm1729, %v1895, 0.0
        %1977 = vadd.xlane.f32.xlu0 %v1976
        %v1978 = vpop.xlane.xlu0 %1977
        %v1979 = vsel %vm1729, %v1897, 0.0
        %1980 = vadd.xlane.f32.xlu0 %v1979
        %v1981 = vpop.xlane.xlu0 %1980
        %v1982 = vsel %vm1729, %v1899, 0.0
        %1983 = vadd.xlane.f32.xlu0 %v1982
        %v1984 = vpop.xlane.xlu0 %1983
        %v1985 = vsel %vm1729, %v1901, 0.0
        %1986 = vadd.xlane.f32.xlu0 %v1985
        %v1987 = vpop.xlane.xlu0 %1986
        %v1988 = vsel %vm1729, %v1903, 0.0
        %1989 = vadd.xlane.f32.xlu0 %v1988
        %v1990 = vpop.xlane.xlu0 %1989
        %v1991 = vsel %vm1729, %v1905, 0.0
        %1992 = vadd.xlane.f32.xlu0 %v1991
        %v1993 = vpop.xlane.xlu0 %1992
        %v1994 = vsel %vm1729, %v1907, 0.0
        %1995 = vadd.xlane.f32.xlu0 %v1994
        %v1996 = vpop.xlane.xlu0 %1995
        %v1997 = vsel %vm1729, %v1909, 0.0
        %1998 = vadd.xlane.f32.xlu0 %v1997
        %v1999 = vpop.xlane.xlu0 %1998
        %v2000 = vsel %vm1729, %v1911, 0.0
        %2001 = vadd.xlane.f32.xlu0 %v2000
        %v2002 = vpop.xlane.xlu0 %2001
        %v2003 = vsel %vm1729, %v1913, 0.0
        %2004 = vadd.xlane.f32.xlu0 %v2003
        %v2005 = vpop.xlane.xlu0 %2004
        %v2006 = vsel %vm1729, %v1915, 0.0
        %2007 = vadd.xlane.f32.xlu0 %v2006
        %v2008 = vpop.xlane.xlu0 %2007
        %v2009 = vsel %vm1729, %v1917, 0.0
        %2010 = vadd.xlane.f32.xlu0 %v2009
        %v2011 = vpop.xlane.xlu0 %2010
        %v2012 = vsel %vm1729, %v1919, 0.0
        %2013 = vadd.xlane.f32.xlu0 %v2012
        %v2014 = vpop.xlane.xlu0 %2013
        %v2015 = vsel %vm1729, %v1921, 0.0
        %2016 = vadd.xlane.f32.xlu0 %v2015
        %v2017 = vpop.xlane.xlu0 %2016
        %v2018 = vrcp.pop %v1924
        %v2019 = vrcp.pop %v1927
        %v2020 = vrcp.pop %v1930
        %v2021 = vrcp.pop %v1933
        %v2022 = vrcp.pop %v1936
        %v2023 = vrcp.pop %v1939
        %v2024 = vrcp.pop %v1942
        %v2025 = vrcp.pop %v1945
        %v2026 = vrcp.pop %v1948
        %v2027 = vrcp.pop %v1951
        %v2028 = vrcp.pop %v1954
        %v2029 = vrcp.pop %v1957
        %v2030 = vrcp.pop %v1960
        %v2031 = vrcp.pop %v1963
        %v2032 = vrcp.pop %v1966
        %v2033 = vrcp.pop %v1969
        %v2034 = vrcp.pop %v1972
        %v2035 = vrcp.pop %v1975
        %v2036 = vrcp.pop %v1978
        %v2037 = vrcp.pop %v1981
        %v2038 = vrcp.pop %v1984
        %v2039 = vrcp.pop %v1987
        %v2040 = vrcp.pop %v1990
        %v2041 = vrcp.pop %v1993
        %v2042 = vrcp.pop %v1996
        %v2043 = vrcp.pop %v1999
        %v2044 = vrcp.pop %v2002
        %v2045 = vrcp.pop %v2005
        %v2046 = vrcp.pop %v2008
        %v2047 = vrcp.pop %v2011
        %v2048 = vrcp.pop %v2014
        %v2049 = vrcp.pop %v2017
        %v2050 = vmul.f32 %v1859, %v2018
        %v2051 = vmul.f32 %v1861, %v2019
        %v2052 = vmul.f32 %v1863, %v2020
        %v2053 = vmul.f32 %v1865, %v2021
        %v2054 = vmul.f32 %v1867, %v2022
        %v2055 = vmul.f32 %v1869, %v2023
        %v2056 = vmul.f32 %v1871, %v2024
        %v2057 = vmul.f32 %v1873, %v2025
        %v2058 = vmul.f32 %v1875, %v2026
        %v2059 = vmul.f32 %v1877, %v2027
        %v2060 = vmul.f32 %v1879, %v2028
        %v2061 = vmul.f32 %v1881, %v2029
        %v2062 = vmul.f32 %v1883, %v2030
        %v2063 = vmul.f32 %v1885, %v2031
        %v2064 = vmul.f32 %v1887, %v2032
        %v2065 = vmul.f32 %v1889, %v2033
        %v2066 = vmul.f32 %v1891, %v2034
        %v2067 = vmul.f32 %v1893, %v2035
        %v2068 = vmul.f32 %v1895, %v2036
        %v2069 = vmul.f32 %v1897, %v2037
        %v2070 = vmul.f32 %v1899, %v2038
        %v2071 = vmul.f32 %v1901, %v2039
        %v2072 = vmul.f32 %v1903, %v2040
        %v2073 = vmul.f32 %v1905, %v2041
        %v2074 = vmul.f32 %v1907, %v2042
        %v2075 = vmul.f32 %v1909, %v2043
        %v2076 = vmul.f32 %v1911, %v2044
        %v2077 = vmul.f32 %v1913, %v2045
        %v2078 = vmul.f32 %v1915, %v2046
        %v2079 = vmul.f32 %v1917, %v2047
        %v2080 = vmul.f32 %v1919, %v2048
        %v2081 = vmul.f32 %v1921, %v2049
        %v2082 = vpack.c.bf16 %v2050, %v2050
        %v2083 = vpack.c.bf16 %v2051, %v2051
        %v2084 = vpack.c.bf16 %v2052, %v2052
        %v2085 = vpack.c.bf16 %v2053, %v2053
        %v2086 = vpack.c.bf16 %v2054, %v2054
        %v2087 = vpack.c.bf16 %v2055, %v2055
        %v2088 = vpack.c.bf16 %v2056, %v2056
        %v2089 = vpack.c.bf16 %v2057, %v2057
        %v2090 = vpack.c.bf16 %v2058, %v2058
        %v2091 = vpack.c.bf16 %v2059, %v2059
        %v2092 = vpack.c.bf16 %v2060, %v2060
        %v2093 = vpack.c.bf16 %v2061, %v2061
        %v2094 = vpack.c.bf16 %v2062, %v2062
        %v2095 = vpack.c.bf16 %v2063, %v2063
        %v2096 = vpack.c.bf16 %v2064, %v2064
        %v2097 = vpack.c.bf16 %v2065, %v2065
        %v2098 = vpack.c.bf16 %v2066, %v2066
        %v2099 = vpack.c.bf16 %v2067, %v2067
        %v2100 = vpack.c.bf16 %v2068, %v2068
        %v2101 = vpack.c.bf16 %v2069, %v2069
        %v2102 = vpack.c.bf16 %v2070, %v2070
        %v2103 = vpack.c.bf16 %v2071, %v2071
        %v2104 = vpack.c.bf16 %v2072, %v2072
        %v2105 = vpack.c.bf16 %v2073, %v2073
        %v2106 = vpack.c.bf16 %v2074, %v2074
        %v2107 = vpack.c.bf16 %v2075, %v2075
        %v2108 = vpack.c.bf16 %v2076, %v2076
        %v2109 = vpack.c.bf16 %v2077, %v2077
        %v2110 = vpack.c.bf16 %v2078, %v2078
        %v2111 = vpack.c.bf16 %v2079, %v2079
        %v2112 = vpack.c.bf16 %v2080, %v2080
        %v2113 = vpack.c.bf16 %v2081, %v2081
        %v2114 = vpack.c.bf16 %v1001, %v1001
        %v2115 = vpack.c.bf16 %v1003, %v1003
        %v2116 = vpack.c.bf16 %v1006, %v1006
        %v2117 = vpack.c.bf16 %v1008, %v1008
        %v2118 = vpack.c.bf16 %v1011, %v1011
        %v2119 = vpack.c.bf16 %v1013, %v1013
        %v2120 = vpack.c.bf16 %v1016, %v1016
        %v2121 = vpack.c.bf16 %v1018, %v1018
        %v2122 = vpack.c.bf16 %v1221, %v1221
        %v2123 = vpack.c.bf16 %v1223, %v1223
        %v2124 = vpack.c.bf16 %v1225, %v1225
        %v2125 = vpack.c.bf16 %v1227, %v1227
        %v2126 = vpack.c.bf16 %v1229, %v1229
        %v2127 = vpack.c.bf16 %v1231, %v1231
        %v2128 = vpack.c.bf16 %v1233, %v1233
        %v2129 = vpack.c.bf16 %v1235, %v1235
        %v2130 = vpack.c.bf16 %v1245, %v1245
        %v2131 = vpack.c.bf16 %v1247, %v1247
        %v2132 = vpack.c.bf16 %v1249, %v1249
        %v2133 = vpack.c.bf16 %v1251, %v1251
        %v2134 = vpack.c.bf16 %v1253, %v1253
        %v2135 = vpack.c.bf16 %v1255, %v1255
        %v2136 = vpack.c.bf16 %v1257, %v1257
        %v2137 = vpack.c.bf16 %v1259, %v1259
        %v2138 = vpack.c.bf16 %v1269, %v1269
        %v2139 = vpack.c.bf16 %v1271, %v1271
        %v2140 = vpack.c.bf16 %v1273, %v1273
        %v2141 = vpack.c.bf16 %v1275, %v1275
        %v2142 = vpack.c.bf16 %v1277, %v1277
        %v2143 = vpack.c.bf16 %v1279, %v1279
        %v2144 = vpack.c.bf16 %v1281, %v1281
        %v2145 = vpack.c.bf16 %v1283, %v1283
        %v2154 = vunpack.c.l.b16 %v2082
        %v2155 = vunpack.c.l.b16 %v2083
        %v2156 = vunpack.c.l.b16 %v2084
        %v2157 = vunpack.c.l.b16 %v2085
        %v2158 = vunpack.c.l.b16 %v2086
        %v2159 = vunpack.c.l.b16 %v2087
        %v2160 = vunpack.c.l.b16 %v2088
        %v2161 = vunpack.c.l.b16 %v2089
        %v2162 = vpack.c.b16 %v2155, %v2154
        %v2163 = vpack.c.b16 %v2157, %v2156
        %v2164 = vpack.c.b16 %v2159, %v2158
        %v2165 = vpack.c.b16 %v2161, %v2160
        %v2174 = vunpack.c.l.b16 %v2114
        %v2175 = vunpack.c.l.b16 %v2115
        %v2176 = vunpack.c.l.b16 %v2116
        %v2177 = vunpack.c.l.b16 %v2117
        %v2178 = vunpack.c.l.b16 %v2118
        %v2179 = vunpack.c.l.b16 %v2119
        %v2180 = vunpack.c.l.b16 %v2120
        %v2181 = vunpack.c.l.b16 %v2121
        %v2182 = vpack.c.b16 %v2175, %v2174
        %v2183 = vpack.c.b16 %v2177, %v2176
        %v2184 = vpack.c.b16 %v2179, %v2178
        %v2185 = vpack.c.b16 %v2181, %v2180
        %v2191 = vsel %vm1729, %v2162, 0
        %v2194 = vsel %vm1729, %v2163, 0
        %v2197 = vsel %vm1729, %v2164, 0
        %v2200 = vsel %vm1729, %v2165, 0
        %2202 = vmatpush.bf16.msra.mxu0 0
        %2203 = vmatpush.bf16.msra.mxu0 0
        %2204 = vmatpush.bf16.msra.mxu0 0
        %2205 = vmatpush.bf16.msra.mxu0 0
        %2206 = vmatpush.bf16.msra.mxu0 %v2185
        %2207 = vmatpush.bf16.msra.mxu0 %v2184
        %2208 = vmatpush.bf16.msra.mxu0 %v2183
        %2209 = vmatpush.bf16.msra.mxu0 %v2182
        %2210 = vmatmul.bf16.gmra.mxu0 %v2191
        %v2211 = vpop.f32.mrf.mxu0
        %v2212 = vadd.f32 0.0, %v2211
        %v2213 = vpop.f32.mrf.mxu0
        %v2214 = vadd.f32 0.0, %v2213
        %2215 = vmatmul.bf16.gmra.mxu0 %v2194
        %v2216 = vpop.f32.mrf.mxu0
        %v2217 = vadd.f32 0.0, %v2216
        %v2218 = vpop.f32.mrf.mxu0
        %v2219 = vadd.f32 0.0, %v2218
        %2220 = vmatmul.bf16.gmra.mxu0 %v2197
        %v2221 = vpop.f32.mrf.mxu0
        %v2222 = vadd.f32 0.0, %v2221
        %v2223 = vpop.f32.mrf.mxu0
        %v2224 = vadd.f32 0.0, %v2223
        %2225 = vmatmul.bf16.gmra.mxu0 %v2200
        %v2226 = vpop.f32.mrf.mxu0
        %v2227 = vadd.f32 0.0, %v2226
        %v2228 = vpop.f32.mrf.mxu0
        %v2229 = vadd.f32 0.0, %v2228
        %2230 = vdwg.mxu0
        %v2239 = vunpack.c.l.b16 %v2090
        %v2240 = vunpack.c.l.b16 %v2091
        %v2241 = vunpack.c.l.b16 %v2092
        %v2242 = vunpack.c.l.b16 %v2093
        %v2243 = vunpack.c.l.b16 %v2094
        %v2244 = vunpack.c.l.b16 %v2095
        %v2245 = vunpack.c.l.b16 %v2096
        %v2246 = vunpack.c.l.b16 %v2097
        %v2247 = vpack.c.b16 %v2240, %v2239
        %v2248 = vpack.c.b16 %v2242, %v2241
        %v2249 = vpack.c.b16 %v2244, %v2243
        %v2250 = vpack.c.b16 %v2246, %v2245
        %v2259 = vunpack.c.l.b16 %v2122
        %v2260 = vunpack.c.l.b16 %v2123
        %v2261 = vunpack.c.l.b16 %v2124
        %v2262 = vunpack.c.l.b16 %v2125
        %v2263 = vunpack.c.l.b16 %v2126
        %v2264 = vunpack.c.l.b16 %v2127
        %v2265 = vunpack.c.l.b16 %v2128
        %v2266 = vunpack.c.l.b16 %v2129
        %v2267 = vpack.c.b16 %v2260, %v2259
        %v2268 = vpack.c.b16 %v2262, %v2261
        %v2269 = vpack.c.b16 %v2264, %v2263
        %v2270 = vpack.c.b16 %v2266, %v2265
        %v2276 = vsel %vm1729, %v2247, 0
        %v2279 = vsel %vm1729, %v2248, 0
        %v2282 = vsel %vm1729, %v2249, 0
        %v2285 = vsel %vm1729, %v2250, 0
        %2287 = vmatpush.bf16.msra.mxu0 0
        %2288 = vmatpush.bf16.msra.mxu0 0
        %2289 = vmatpush.bf16.msra.mxu0 0
        %2290 = vmatpush.bf16.msra.mxu0 0
        %2291 = vmatpush.bf16.msra.mxu0 %v2270
        %2292 = vmatpush.bf16.msra.mxu0 %v2269
        %2293 = vmatpush.bf16.msra.mxu0 %v2268
        %2294 = vmatpush.bf16.msra.mxu0 %v2267
        %2295 = vmatmul.bf16.gmra.mxu0 %v2276
        %v2296 = vpop.f32.mrf.mxu0
        %v2297 = vadd.f32 0.0, %v2296
        %v2298 = vpop.f32.mrf.mxu0
        %v2299 = vadd.f32 0.0, %v2298
        %2300 = vmatmul.bf16.gmra.mxu0 %v2279
        %v2301 = vpop.f32.mrf.mxu0
        %v2302 = vadd.f32 0.0, %v2301
        %v2303 = vpop.f32.mrf.mxu0
        %v2304 = vadd.f32 0.0, %v2303
        %2305 = vmatmul.bf16.gmra.mxu0 %v2282
        %v2306 = vpop.f32.mrf.mxu0
        %v2307 = vadd.f32 0.0, %v2306
        %v2308 = vpop.f32.mrf.mxu0
        %v2309 = vadd.f32 0.0, %v2308
        %2310 = vmatmul.bf16.gmra.mxu0 %v2285
        %v2311 = vpop.f32.mrf.mxu0
        %v2312 = vadd.f32 0.0, %v2311
        %v2313 = vpop.f32.mrf.mxu0
        %v2314 = vadd.f32 0.0, %v2313
        %2315 = vdwg.mxu0
        %v2324 = vunpack.c.l.b16 %v2098
        %v2325 = vunpack.c.l.b16 %v2099
        %v2326 = vunpack.c.l.b16 %v2100
        %v2327 = vunpack.c.l.b16 %v2101
        %v2328 = vunpack.c.l.b16 %v2102
        %v2329 = vunpack.c.l.b16 %v2103
        %v2330 = vunpack.c.l.b16 %v2104
        %v2331 = vunpack.c.l.b16 %v2105
        %v2332 = vpack.c.b16 %v2325, %v2324
        %v2333 = vpack.c.b16 %v2327, %v2326
        %v2334 = vpack.c.b16 %v2329, %v2328
        %v2335 = vpack.c.b16 %v2331, %v2330
        %v2344 = vunpack.c.l.b16 %v2130
        %v2345 = vunpack.c.l.b16 %v2131
        %v2346 = vunpack.c.l.b16 %v2132
        %v2347 = vunpack.c.l.b16 %v2133
        %v2348 = vunpack.c.l.b16 %v2134
        %v2349 = vunpack.c.l.b16 %v2135
        %v2350 = vunpack.c.l.b16 %v2136
        %v2351 = vunpack.c.l.b16 %v2137
        %v2352 = vpack.c.b16 %v2345, %v2344
        %v2353 = vpack.c.b16 %v2347, %v2346
        %v2354 = vpack.c.b16 %v2349, %v2348
        %v2355 = vpack.c.b16 %v2351, %v2350
        %v2361 = vsel %vm1729, %v2332, 0
        %v2364 = vsel %vm1729, %v2333, 0
        %v2367 = vsel %vm1729, %v2334, 0
        %v2370 = vsel %vm1729, %v2335, 0
        %2372 = vmatpush.bf16.msra.mxu0 0
        %2373 = vmatpush.bf16.msra.mxu0 0
        %2374 = vmatpush.bf16.msra.mxu0 0
        %2375 = vmatpush.bf16.msra.mxu0 0
        %2376 = vmatpush.bf16.msra.mxu0 %v2355
        %2377 = vmatpush.bf16.msra.mxu0 %v2354
        %2378 = vmatpush.bf16.msra.mxu0 %v2353
        %2379 = vmatpush.bf16.msra.mxu0 %v2352
        %2380 = vmatmul.bf16.gmra.mxu0 %v2361
        %v2381 = vpop.f32.mrf.mxu0
        %v2382 = vadd.f32 0.0, %v2381
        %v2383 = vpop.f32.mrf.mxu0
        %v2384 = vadd.f32 0.0, %v2383
        %2385 = vmatmul.bf16.gmra.mxu0 %v2364
        %v2386 = vpop.f32.mrf.mxu0
        %v2387 = vadd.f32 0.0, %v2386
        %v2388 = vpop.f32.mrf.mxu0
        %v2389 = vadd.f32 0.0, %v2388
        %2390 = vmatmul.bf16.gmra.mxu0 %v2367
        %v2391 = vpop.f32.mrf.mxu0
        %v2392 = vadd.f32 0.0, %v2391
        %v2393 = vpop.f32.mrf.mxu0
        %v2394 = vadd.f32 0.0, %v2393
        %2395 = vmatmul.bf16.gmra.mxu0 %v2370
        %v2396 = vpop.f32.mrf.mxu0
        %v2397 = vadd.f32 0.0, %v2396
        %v2398 = vpop.f32.mrf.mxu0
        %v2399 = vadd.f32 0.0, %v2398
        %2400 = vdwg.mxu0
        %v2409 = vunpack.c.l.b16 %v2106
        %v2410 = vunpack.c.l.b16 %v2107
        %v2411 = vunpack.c.l.b16 %v2108
        %v2412 = vunpack.c.l.b16 %v2109
        %v2413 = vunpack.c.l.b16 %v2110
        %v2414 = vunpack.c.l.b16 %v2111
        %v2415 = vunpack.c.l.b16 %v2112
        %v2416 = vunpack.c.l.b16 %v2113
        %v2417 = vpack.c.b16 %v2410, %v2409
        %v2418 = vpack.c.b16 %v2412, %v2411
        %v2419 = vpack.c.b16 %v2414, %v2413
        %v2420 = vpack.c.b16 %v2416, %v2415
        %v2429 = vunpack.c.l.b16 %v2138
        %v2430 = vunpack.c.l.b16 %v2139
        %v2431 = vunpack.c.l.b16 %v2140
        %v2432 = vunpack.c.l.b16 %v2141
        %v2433 = vunpack.c.l.b16 %v2142
        %v2434 = vunpack.c.l.b16 %v2143
        %v2435 = vunpack.c.l.b16 %v2144
        %v2436 = vunpack.c.l.b16 %v2145
        %v2437 = vpack.c.b16 %v2430, %v2429
        %v2438 = vpack.c.b16 %v2432, %v2431
        %v2439 = vpack.c.b16 %v2434, %v2433
        %v2440 = vpack.c.b16 %v2436, %v2435
        %v2446 = vsel %vm1729, %v2417, 0
        %v2449 = vsel %vm1729, %v2418, 0
        %v2452 = vsel %vm1729, %v2419, 0
        %v2455 = vsel %vm1729, %v2420, 0
        %2457 = vmatpush.bf16.msra.mxu0 0
        %2458 = vmatpush.bf16.msra.mxu0 0
        %2459 = vmatpush.bf16.msra.mxu0 0
        %2460 = vmatpush.bf16.msra.mxu0 0
        %2461 = vmatpush.bf16.msra.mxu0 %v2440
        %2462 = vmatpush.bf16.msra.mxu0 %v2439
        %2463 = vmatpush.bf16.msra.mxu0 %v2438
        %2464 = vmatpush.bf16.msra.mxu0 %v2437
        %2465 = vmatmul.bf16.gmra.mxu0 %v2446
        %v2466 = vpop.f32.mrf.mxu0
        %v2467 = vadd.f32 0.0, %v2466
        %v2468 = vpop.f32.mrf.mxu0
        %v2469 = vadd.f32 0.0, %v2468
        %2470 = vmatmul.bf16.gmra.mxu0 %v2449
        %v2471 = vpop.f32.mrf.mxu0
        %v2472 = vadd.f32 0.0, %v2471
        %v2473 = vpop.f32.mrf.mxu0
        %v2474 = vadd.f32 0.0, %v2473
        %2475 = vmatmul.bf16.gmra.mxu0 %v2452
        %v2476 = vpop.f32.mrf.mxu0
        %v2477 = vadd.f32 0.0, %v2476
        %v2478 = vpop.f32.mrf.mxu0
        %v2479 = vadd.f32 0.0, %v2478
        %2480 = vmatmul.bf16.gmra.mxu0 %v2455
        %v2481 = vpop.f32.mrf.mxu0
        %v2482 = vadd.f32 0.0, %v2481
        %v2483 = vpop.f32.mrf.mxu0
        %v2484 = vadd.f32 0.0, %v2483
        %2485 = vdwg.mxu0
        %v2486 = vstv %s557
        %v2487 = vmul.f32 %v2486, %v1001
        %v2488 = vmul.f32 %v2486, %v1003
        %v2489 = vmul.f32 %v2486, %v1006
        %v2490 = vmul.f32 %v2486, %v1008
        %v2491 = vmul.f32 %v2486, %v1011
        %v2492 = vmul.f32 %v2486, %v1013
        %v2493 = vmul.f32 %v2486, %v1016
        %v2494 = vmul.f32 %v2486, %v1018
        %v2495 = vmul.f32 %v2486, %v1221
        %v2496 = vmul.f32 %v2486, %v1223
        %v2497 = vmul.f32 %v2486, %v1225
        %v2498 = vmul.f32 %v2486, %v1227
        %v2499 = vmul.f32 %v2486, %v1229
        %v2500 = vmul.f32 %v2486, %v1231
        %v2501 = vmul.f32 %v2486, %v1233
        %v2502 = vmul.f32 %v2486, %v1235
        %v2503 = vmul.f32 %v2486, %v1245
        %v2504 = vmul.f32 %v2486, %v1247
        %v2505 = vmul.f32 %v2486, %v1249
        %v2506 = vmul.f32 %v2486, %v1251
        %v2507 = vmul.f32 %v2486, %v1253
        %v2508 = vmul.f32 %v2486, %v1255
        %v2509 = vmul.f32 %v2486, %v1257
        %v2510 = vmul.f32 %v2486, %v1259
        %v2511 = vmul.f32 %v2486, %v1269
        %v2512 = vmul.f32 %v2486, %v1271
        %v2513 = vmul.f32 %v2486, %v1273
        %v2514 = vmul.f32 %v2486, %v1275
        %v2515 = vmul.f32 %v2486, %v1277
        %v2516 = vmul.f32 %v2486, %v1279
        %v2517 = vmul.f32 %v2486, %v1281
        %v2518 = vmul.f32 %v2486, %v1283
        %v2519 = vstv %s558
        %v2520 = vmul.f32 %v2519, %v2212
        %v2521 = vmul.f32 %v2519, %v2214
        %v2522 = vmul.f32 %v2519, %v2217
        %v2523 = vmul.f32 %v2519, %v2219
        %v2524 = vmul.f32 %v2519, %v2222
        %v2525 = vmul.f32 %v2519, %v2224
        %v2526 = vmul.f32 %v2519, %v2227
        %v2527 = vmul.f32 %v2519, %v2229
        %v2528 = vmul.f32 %v2519, %v2297
        %v2529 = vmul.f32 %v2519, %v2299
        %v2530 = vmul.f32 %v2519, %v2302
        %v2531 = vmul.f32 %v2519, %v2304
        %v2532 = vmul.f32 %v2519, %v2307
        %v2533 = vmul.f32 %v2519, %v2309
        %v2534 = vmul.f32 %v2519, %v2312
        %v2535 = vmul.f32 %v2519, %v2314
        %v2536 = vmul.f32 %v2519, %v2382
        %v2537 = vmul.f32 %v2519, %v2384
        %v2538 = vmul.f32 %v2519, %v2387
        %v2539 = vmul.f32 %v2519, %v2389
        %v2540 = vmul.f32 %v2519, %v2392
        %v2541 = vmul.f32 %v2519, %v2394
        %v2542 = vmul.f32 %v2519, %v2397
        %v2543 = vmul.f32 %v2519, %v2399
        %v2544 = vmul.f32 %v2519, %v2467
        %v2545 = vmul.f32 %v2519, %v2469
        %v2546 = vmul.f32 %v2519, %v2472
        %v2547 = vmul.f32 %v2519, %v2474
        %v2548 = vmul.f32 %v2519, %v2477
        %v2549 = vmul.f32 %v2519, %v2479
        %v2550 = vmul.f32 %v2519, %v2482
        %v2551 = vmul.f32 %v2519, %v2484
        %v2552 = vadd.f32 %v2487, %v2520
        %v2553 = vadd.f32 %v2488, %v2521
        %v2554 = vadd.f32 %v2489, %v2522
        %v2555 = vadd.f32 %v2490, %v2523
        %v2556 = vadd.f32 %v2491, %v2524
        %v2557 = vadd.f32 %v2492, %v2525
        %v2558 = vadd.f32 %v2493, %v2526
        %v2559 = vadd.f32 %v2494, %v2527
        %v2560 = vadd.f32 %v2495, %v2528
        %v2561 = vadd.f32 %v2496, %v2529
        %v2562 = vadd.f32 %v2497, %v2530
        %v2563 = vadd.f32 %v2498, %v2531
        %v2564 = vadd.f32 %v2499, %v2532
        %v2565 = vadd.f32 %v2500, %v2533
        %v2566 = vadd.f32 %v2501, %v2534
        %v2567 = vadd.f32 %v2502, %v2535
        %v2568 = vadd.f32 %v2503, %v2536
        %v2569 = vadd.f32 %v2504, %v2537
        %v2570 = vadd.f32 %v2505, %v2538
        %v2571 = vadd.f32 %v2506, %v2539
        %v2572 = vadd.f32 %v2507, %v2540
        %v2573 = vadd.f32 %v2508, %v2541
        %v2574 = vadd.f32 %v2509, %v2542
        %v2575 = vadd.f32 %v2510, %v2543
        %v2576 = vadd.f32 %v2511, %v2544
        %v2577 = vadd.f32 %v2512, %v2545
        %v2578 = vadd.f32 %v2513, %v2546
        %v2579 = vadd.f32 %v2514, %v2547
        %v2580 = vadd.f32 %v2515, %v2548
        %v2581 = vadd.f32 %v2516, %v2549
        %v2582 = vadd.f32 %v2517, %v2550
        %v2583 = vadd.f32 %v2518, %v2551
        %v2584 = vsel %vm1396, %v1001, 0.0
        %v2585 = vsel %vm1396, %v1003, 0.0
        %v2586 = vadd.f32 %v2584, %v2585
        %v2587 = vsel %vm1396, %v1006, 0.0
        %v2588 = vadd.f32 %v2586, %v2587
        %v2589 = vsel %vm1396, %v1008, 0.0
        %v2590 = vadd.f32 %v2588, %v2589
        %v2591 = vsel %vm1396, %v1011, 0.0
        %v2592 = vadd.f32 %v2590, %v2591
        %v2593 = vsel %vm1396, %v1013, 0.0
        %v2594 = vadd.f32 %v2592, %v2593
        %v2595 = vsel %vm1396, %v1016, 0.0
        %v2596 = vadd.f32 %v2594, %v2595
        %v2597 = vsel %vm1396, %v1018, 0.0
        %v2598 = vadd.f32 %v2596, %v2597
        %v2599 = vrot.slane %v2598, 4
        %v2600 = vadd.f32 %v2598, %v2599
        %v2601 = vrot.slane %v2600, 2
        %v2602 = vadd.f32 %v2600, %v2601
        %v2603 = vrot.slane %v2602, 1
        %v2604 = vadd.f32 %v2602, %v2603
        %v2605 = vsel %vm1396, %v1221, 0.0
        %v2606 = vsel %vm1396, %v1223, 0.0
        %v2607 = vadd.f32 %v2605, %v2606
        %v2608 = vsel %vm1396, %v1225, 0.0
        %v2609 = vadd.f32 %v2607, %v2608
        %v2610 = vsel %vm1396, %v1227, 0.0
        %v2611 = vadd.f32 %v2609, %v2610
        %v2612 = vsel %vm1396, %v1229, 0.0
        %v2613 = vadd.f32 %v2611, %v2612
        %v2614 = vsel %vm1396, %v1231, 0.0
        %v2615 = vadd.f32 %v2613, %v2614
        %v2616 = vsel %vm1396, %v1233, 0.0
        %v2617 = vadd.f32 %v2615, %v2616
        %v2618 = vsel %vm1396, %v1235, 0.0
        %v2619 = vadd.f32 %v2617, %v2618
        %v2620 = vrot.slane %v2619, 4
        %v2621 = vadd.f32 %v2619, %v2620
        %v2622 = vrot.slane %v2621, 2
        %v2623 = vadd.f32 %v2621, %v2622
        %v2624 = vrot.slane %v2623, 1
        %v2625 = vadd.f32 %v2623, %v2624
        %v2626 = vsel %vm1396, %v1245, 0.0
        %v2627 = vsel %vm1396, %v1247, 0.0
        %v2628 = vadd.f32 %v2626, %v2627
        %v2629 = vsel %vm1396, %v1249, 0.0
        %v2630 = vadd.f32 %v2628, %v2629
        %v2631 = vsel %vm1396, %v1251, 0.0
        %v2632 = vadd.f32 %v2630, %v2631
        %v2633 = vsel %vm1396, %v1253, 0.0
        %v2634 = vadd.f32 %v2632, %v2633
        %v2635 = vsel %vm1396, %v1255, 0.0
        %v2636 = vadd.f32 %v2634, %v2635
        %v2637 = vsel %vm1396, %v1257, 0.0
        %v2638 = vadd.f32 %v2636, %v2637
        %v2639 = vsel %vm1396, %v1259, 0.0
        %v2640 = vadd.f32 %v2638, %v2639
        %v2641 = vrot.slane %v2640, 4
        %v2642 = vadd.f32 %v2640, %v2641
        %v2643 = vrot.slane %v2642, 2
        %v2644 = vadd.f32 %v2642, %v2643
        %v2645 = vrot.slane %v2644, 1
        %v2646 = vadd.f32 %v2644, %v2645
        %v2647 = vsel %vm1396, %v1269, 0.0
        %v2648 = vsel %vm1396, %v1271, 0.0
        %v2649 = vadd.f32 %v2647, %v2648
        %v2650 = vsel %vm1396, %v1273, 0.0
        %v2651 = vadd.f32 %v2649, %v2650
        %v2652 = vsel %vm1396, %v1275, 0.0
        %v2653 = vadd.f32 %v2651, %v2652
        %v2654 = vsel %vm1396, %v1277, 0.0
        %v2655 = vadd.f32 %v2653, %v2654
        %v2656 = vsel %vm1396, %v1279, 0.0
        %v2657 = vadd.f32 %v2655, %v2656
        %v2658 = vsel %vm1396, %v1281, 0.0
        %v2659 = vadd.f32 %v2657, %v2658
        %v2660 = vsel %vm1396, %v1283, 0.0
        %v2661 = vadd.f32 %v2659, %v2660
        %v2662 = vrot.slane %v2661, 4
        %v2663 = vadd.f32 %v2661, %v2662
        %v2664 = vrot.slane %v2663, 2
        %v2665 = vadd.f32 %v2663, %v2664
        %v2666 = vrot.slane %v2665, 1
        %v2667 = vadd.f32 %v2665, %v2666
        %v2668 = vstv %s560
        %v2669 = vmul.f32 %v2668, %v2604
        %v2670 = vmul.f32 %v2668, %v2625
        %v2671 = vmul.f32 %v2668, %v2646
        %v2672 = vmul.f32 %v2668, %v2667
        %v2673 = vsub.f32 %v2552, %v2669
        %v2674 = vsub.f32 %v2553, %v2669
        %v2675 = vsub.f32 %v2554, %v2669
        %v2676 = vsub.f32 %v2555, %v2669
        %v2677 = vsub.f32 %v2556, %v2669
        %v2678 = vsub.f32 %v2557, %v2669
        %v2679 = vsub.f32 %v2558, %v2669
        %v2680 = vsub.f32 %v2559, %v2669
        %v2681 = vsub.f32 %v2560, %v2670
        %v2682 = vsub.f32 %v2561, %v2670
        %v2683 = vsub.f32 %v2562, %v2670
        %v2684 = vsub.f32 %v2563, %v2670
        %v2685 = vsub.f32 %v2564, %v2670
        %v2686 = vsub.f32 %v2565, %v2670
        %v2687 = vsub.f32 %v2566, %v2670
        %v2688 = vsub.f32 %v2567, %v2670
        %v2689 = vsub.f32 %v2568, %v2671
        %v2690 = vsub.f32 %v2569, %v2671
        %v2691 = vsub.f32 %v2570, %v2671
        %v2692 = vsub.f32 %v2571, %v2671
        %v2693 = vsub.f32 %v2572, %v2671
        %v2694 = vsub.f32 %v2573, %v2671
        %v2695 = vsub.f32 %v2574, %v2671
        %v2696 = vsub.f32 %v2575, %v2671
        %v2697 = vsub.f32 %v2576, %v2672
        %v2698 = vsub.f32 %v2577, %v2672
        %v2699 = vsub.f32 %v2578, %v2672
        %v2700 = vsub.f32 %v2579, %v2672
        %v2701 = vsub.f32 %v2580, %v2672
        %v2702 = vsub.f32 %v2581, %v2672
        %v2703 = vsub.f32 %v2582, %v2672
        %v2704 = vsub.f32 %v2583, %v2672
        %v2705 = vpack.c.bf16 %v2673, %v2673
        %v2706 = vpack.c.bf16 %v2674, %v2674
        %v2707 = vpack.c.bf16 %v2675, %v2675
        %v2708 = vpack.c.bf16 %v2676, %v2676
        %v2709 = vpack.c.bf16 %v2677, %v2677
        %v2710 = vpack.c.bf16 %v2678, %v2678
        %v2711 = vpack.c.bf16 %v2679, %v2679
        %v2712 = vpack.c.bf16 %v2680, %v2680
        %v2713 = vpack.c.bf16 %v2681, %v2681
        %v2714 = vpack.c.bf16 %v2682, %v2682
        %v2715 = vpack.c.bf16 %v2683, %v2683
        %v2716 = vpack.c.bf16 %v2684, %v2684
        %v2717 = vpack.c.bf16 %v2685, %v2685
        %v2718 = vpack.c.bf16 %v2686, %v2686
        %v2719 = vpack.c.bf16 %v2687, %v2687
        %v2720 = vpack.c.bf16 %v2688, %v2688
        %v2721 = vpack.c.bf16 %v2689, %v2689
        %v2722 = vpack.c.bf16 %v2690, %v2690
        %v2723 = vpack.c.bf16 %v2691, %v2691
        %v2724 = vpack.c.bf16 %v2692, %v2692
        %v2725 = vpack.c.bf16 %v2693, %v2693
        %v2726 = vpack.c.bf16 %v2694, %v2694
        %v2727 = vpack.c.bf16 %v2695, %v2695
        %v2728 = vpack.c.bf16 %v2696, %v2696
        %v2729 = vpack.c.bf16 %v2697, %v2697
        %v2730 = vpack.c.bf16 %v2698, %v2698
        %v2731 = vpack.c.bf16 %v2699, %v2699
        %v2732 = vpack.c.bf16 %v2700, %v2700
        %v2733 = vpack.c.bf16 %v2701, %v2701
        %v2734 = vpack.c.bf16 %v2702, %v2702
        %v2735 = vpack.c.bf16 %v2703, %v2703
        %v2736 = vpack.c.bf16 %v2704, %v2704
        %v2737 = vld [vmem:[#allocation9] sm:$0xf]
        %v2738 = vld [vmem:[#allocation9 + $0x4] sm:$0xf]
        %v2739 = vld [vmem:[#allocation9 + $0x8] sm:$0xf]
        %v2740 = vld [vmem:[#allocation9 + $0xc] sm:$0xf]
        %v2741 = vld [vmem:[#allocation9 + $0x10] sm:$0xf]
        %v2742 = vld [vmem:[#allocation9 + $0x14] sm:$0xf]
        %v2743 = vld [vmem:[#allocation9 + $0x18] sm:$0xf]
        %v2744 = vld [vmem:[#allocation9 + $0x1c] sm:$0xf]
        %v2745 = vld [vmem:[#allocation9 + $0x20] sm:$0xf]
        %v2746 = vld [vmem:[#allocation9 + $0x24] sm:$0xf]
        %v2747 = vld [vmem:[#allocation9 + $0x28] sm:$0xf]
        %v2748 = vld [vmem:[#allocation9 + $0x2c] sm:$0xf]
        %v2749 = vld [vmem:[#allocation9 + $0x30] sm:$0xf]
        %v2750 = vld [vmem:[#allocation9 + $0x34] sm:$0xf]
        %v2751 = vld [vmem:[#allocation9 + $0x38] sm:$0xf]
        %v2752 = vld [vmem:[#allocation9 + $0x3c] sm:$0xf]
        %v2761 = vunpack.c.l.b16 %v2705
        %v2762 = vunpack.c.l.b16 %v2706
        %v2763 = vunpack.c.l.b16 %v2707
        %v2764 = vunpack.c.l.b16 %v2708
        %v2765 = vunpack.c.l.b16 %v2709
        %v2766 = vunpack.c.l.b16 %v2710
        %v2767 = vunpack.c.l.b16 %v2711
        %v2768 = vunpack.c.l.b16 %v2712
        %v2769 = vpack.c.b16 %v2762, %v2761
        %v2770 = vpack.c.b16 %v2764, %v2763
        %v2771 = vpack.c.b16 %v2766, %v2765
        %v2772 = vpack.c.b16 %v2768, %v2767
        %v2777 = vunpack.c.l.b16 %v2737
        %v2778 = vunpack.c.l.b16 %v2738
        %v2779 = vunpack.c.l.b16 %v2739
        %v2780 = vunpack.c.l.b16 %v2740
        %v2781 = vpack.c.b16 %v2778, %v2777
        %v2782 = vpack.c.b16 %v2780, %v2779
        %v2786 = vsel %vm1396, %v2769, 0
        %v2789 = vsel %vm1396, %v2770, 0
        %v2792 = vsel %vm1396, %v2771, 0
        %v2795 = vsel %vm1396, %v2772, 0
        %2797 = vmatpush.bf16.msra.mxu0 0
        %2798 = vmatpush.bf16.msra.mxu0 0
        %2799 = vmatpush.bf16.msra.mxu0 0
        %2800 = vmatpush.bf16.msra.mxu0 0
        %2801 = vmatpush.bf16.msra.mxu0 0
        %2802 = vmatpush.bf16.msra.mxu0 0
        %2803 = vmatpush.bf16.msra.mxu0 %v2782
        %2804 = vmatpush.bf16.msra.mxu0 %v2781
        %2805 = vmatmul.bf16.gmra.mxu0 %v2786
        %v2806 = vpop.f32.mrf.mxu0
        %v2807 = vadd.f32 0.0, %v2806
        %v2808 = vpop.f32.mrf.mxu0
        %v2809 = vadd.f32 0.0, %v2808
        %2810 = vmatmul.bf16.gmra.mxu0 %v2789
        %v2811 = vpop.f32.mrf.mxu0
        %v2812 = vadd.f32 0.0, %v2811
        %v2813 = vpop.f32.mrf.mxu0
        %v2814 = vadd.f32 0.0, %v2813
        %2815 = vmatmul.bf16.gmra.mxu0 %v2792
        %v2816 = vpop.f32.mrf.mxu0
        %v2817 = vadd.f32 0.0, %v2816
        %v2818 = vpop.f32.mrf.mxu0
        %v2819 = vadd.f32 0.0, %v2818
        %2820 = vmatmul.bf16.gmra.mxu0 %v2795
        %v2821 = vpop.f32.mrf.mxu0
        %v2822 = vadd.f32 0.0, %v2821
        %v2823 = vpop.f32.mrf.mxu0
        %v2824 = vadd.f32 0.0, %v2823
        %2825 = vdwg.mxu0
        %v2834 = vunpack.c.l.b16 %v2713
        %v2835 = vunpack.c.l.b16 %v2714
        %v2836 = vunpack.c.l.b16 %v2715
        %v2837 = vunpack.c.l.b16 %v2716
        %v2838 = vunpack.c.l.b16 %v2717
        %v2839 = vunpack.c.l.b16 %v2718
        %v2840 = vunpack.c.l.b16 %v2719
        %v2841 = vunpack.c.l.b16 %v2720
        %v2842 = vpack.c.b16 %v2835, %v2834
        %v2843 = vpack.c.b16 %v2837, %v2836
        %v2844 = vpack.c.b16 %v2839, %v2838
        %v2845 = vpack.c.b16 %v2841, %v2840
        %v2850 = vunpack.c.l.b16 %v2741
        %v2851 = vunpack.c.l.b16 %v2742
        %v2852 = vunpack.c.l.b16 %v2743
        %v2853 = vunpack.c.l.b16 %v2744
        %v2854 = vpack.c.b16 %v2851, %v2850
        %v2855 = vpack.c.b16 %v2853, %v2852
        %v2859 = vsel %vm1396, %v2842, 0
        %v2862 = vsel %vm1396, %v2843, 0
        %v2865 = vsel %vm1396, %v2844, 0
        %v2868 = vsel %vm1396, %v2845, 0
        %2870 = vmatpush.bf16.msra.mxu0 0
        %2871 = vmatpush.bf16.msra.mxu0 0
        %2872 = vmatpush.bf16.msra.mxu0 0
        %2873 = vmatpush.bf16.msra.mxu0 0
        %2874 = vmatpush.bf16.msra.mxu0 0
        %2875 = vmatpush.bf16.msra.mxu0 0
        %2876 = vmatpush.bf16.msra.mxu0 %v2855
        %2877 = vmatpush.bf16.msra.mxu0 %v2854
        %2878 = vmatmul.bf16.gmra.mxu0 %v2859
        %v2879 = vpop.f32.mrf.mxu0
        %v2880 = vadd.f32 0.0, %v2879
        %v2881 = vpop.f32.mrf.mxu0
        %v2882 = vadd.f32 0.0, %v2881
        %2883 = vmatmul.bf16.gmra.mxu0 %v2862
        %v2884 = vpop.f32.mrf.mxu0
        %v2885 = vadd.f32 0.0, %v2884
        %v2886 = vpop.f32.mrf.mxu0
        %v2887 = vadd.f32 0.0, %v2886
        %2888 = vmatmul.bf16.gmra.mxu0 %v2865
        %v2889 = vpop.f32.mrf.mxu0
        %v2890 = vadd.f32 0.0, %v2889
        %v2891 = vpop.f32.mrf.mxu0
        %v2892 = vadd.f32 0.0, %v2891
        %2893 = vmatmul.bf16.gmra.mxu0 %v2868
        %v2894 = vpop.f32.mrf.mxu0
        %v2895 = vadd.f32 0.0, %v2894
        %v2896 = vpop.f32.mrf.mxu0
        %v2897 = vadd.f32 0.0, %v2896
        %2898 = vdwg.mxu0
        %v2907 = vunpack.c.l.b16 %v2721
        %v2908 = vunpack.c.l.b16 %v2722
        %v2909 = vunpack.c.l.b16 %v2723
        %v2910 = vunpack.c.l.b16 %v2724
        %v2911 = vunpack.c.l.b16 %v2725
        %v2912 = vunpack.c.l.b16 %v2726
        %v2913 = vunpack.c.l.b16 %v2727
        %v2914 = vunpack.c.l.b16 %v2728
        %v2915 = vpack.c.b16 %v2908, %v2907
        %v2916 = vpack.c.b16 %v2910, %v2909
        %v2917 = vpack.c.b16 %v2912, %v2911
        %v2918 = vpack.c.b16 %v2914, %v2913
        %v2923 = vunpack.c.l.b16 %v2745
        %v2924 = vunpack.c.l.b16 %v2746
        %v2925 = vunpack.c.l.b16 %v2747
        %v2926 = vunpack.c.l.b16 %v2748
        %v2927 = vpack.c.b16 %v2924, %v2923
        %v2928 = vpack.c.b16 %v2926, %v2925
        %v2932 = vsel %vm1396, %v2915, 0
        %v2935 = vsel %vm1396, %v2916, 0
        %v2938 = vsel %vm1396, %v2917, 0
        %v2941 = vsel %vm1396, %v2918, 0
        %2943 = vmatpush.bf16.msra.mxu0 0
        %2944 = vmatpush.bf16.msra.mxu0 0
        %2945 = vmatpush.bf16.msra.mxu0 0
        %2946 = vmatpush.bf16.msra.mxu0 0
        %2947 = vmatpush.bf16.msra.mxu0 0
        %2948 = vmatpush.bf16.msra.mxu0 0
        %2949 = vmatpush.bf16.msra.mxu0 %v2928
        %2950 = vmatpush.bf16.msra.mxu0 %v2927
        %2951 = vmatmul.bf16.gmra.mxu0 %v2932
        %v2952 = vpop.f32.mrf.mxu0
        %v2953 = vadd.f32 0.0, %v2952
        %v2954 = vpop.f32.mrf.mxu0
        %v2955 = vadd.f32 0.0, %v2954
        %2956 = vmatmul.bf16.gmra.mxu0 %v2935
        %v2957 = vpop.f32.mrf.mxu0
        %v2958 = vadd.f32 0.0, %v2957
        %v2959 = vpop.f32.mrf.mxu0
        %v2960 = vadd.f32 0.0, %v2959
        %2961 = vmatmul.bf16.gmra.mxu0 %v2938
        %v2962 = vpop.f32.mrf.mxu0
        %v2963 = vadd.f32 0.0, %v2962
        %v2964 = vpop.f32.mrf.mxu0
        %v2965 = vadd.f32 0.0, %v2964
        %2966 = vmatmul.bf16.gmra.mxu0 %v2941
        %v2967 = vpop.f32.mrf.mxu0
        %v2968 = vadd.f32 0.0, %v2967
        %v2969 = vpop.f32.mrf.mxu0
        %v2970 = vadd.f32 0.0, %v2969
        %2971 = vdwg.mxu0
        %v2980 = vunpack.c.l.b16 %v2729
        %v2981 = vunpack.c.l.b16 %v2730
        %v2982 = vunpack.c.l.b16 %v2731
        %v2983 = vunpack.c.l.b16 %v2732
        %v2984 = vunpack.c.l.b16 %v2733
        %v2985 = vunpack.c.l.b16 %v2734
        %v2986 = vunpack.c.l.b16 %v2735
        %v2987 = vunpack.c.l.b16 %v2736
        %v2988 = vpack.c.b16 %v2981, %v2980
        %v2989 = vpack.c.b16 %v2983, %v2982
        %v2990 = vpack.c.b16 %v2985, %v2984
        %v2991 = vpack.c.b16 %v2987, %v2986
        %v2996 = vunpack.c.l.b16 %v2749
        %v2997 = vunpack.c.l.b16 %v2750
        %v2998 = vunpack.c.l.b16 %v2751
        %v2999 = vunpack.c.l.b16 %v2752
        %v3000 = vpack.c.b16 %v2997, %v2996
        %v3001 = vpack.c.b16 %v2999, %v2998
        %v3005 = vsel %vm1396, %v2988, 0
        %v3008 = vsel %vm1396, %v2989, 0
        %v3011 = vsel %vm1396, %v2990, 0
        %v3014 = vsel %vm1396, %v2991, 0
        %3016 = vmatpush.bf16.msra.mxu0 0
        %3017 = vmatpush.bf16.msra.mxu0 0
        %3018 = vmatpush.bf16.msra.mxu0 0
        %3019 = vmatpush.bf16.msra.mxu0 0
        %3020 = vmatpush.bf16.msra.mxu0 0
        %3021 = vmatpush.bf16.msra.mxu0 0
        %3022 = vmatpush.bf16.msra.mxu0 %v3001
        %3023 = vmatpush.bf16.msra.mxu0 %v3000
        %3024 = vmatmul.bf16.gmra.mxu0 %v3005
        %v3025 = vpop.f32.mrf.mxu0
        %v3026 = vadd.f32 0.0, %v3025
        %v3027 = vpop.f32.mrf.mxu0
        %v3028 = vadd.f32 0.0, %v3027
        %3029 = vmatmul.bf16.gmra.mxu0 %v3008
        %v3030 = vpop.f32.mrf.mxu0
        %v3031 = vadd.f32 0.0, %v3030
        %v3032 = vpop.f32.mrf.mxu0
        %v3033 = vadd.f32 0.0, %v3032
        %3034 = vmatmul.bf16.gmra.mxu0 %v3011
        %v3035 = vpop.f32.mrf.mxu0
        %v3036 = vadd.f32 0.0, %v3035
        %v3037 = vpop.f32.mrf.mxu0
        %v3038 = vadd.f32 0.0, %v3037
        %3039 = vmatmul.bf16.gmra.mxu0 %v3014
        %v3040 = vpop.f32.mrf.mxu0
        %v3041 = vadd.f32 0.0, %v3040
        %v3042 = vpop.f32.mrf.mxu0
        %v3043 = vadd.f32 0.0, %v3042
        %3044 = vdwg.mxu0
        %v3045 = vadd.f32 %v2807, %v2880
        %v3046 = vadd.f32 %v3045, %v2953
        %v3047 = vadd.f32 %v3046, %v3026
        %v3048 = vadd.f32 %v2809, %v2882
        %v3049 = vadd.f32 %v3048, %v2955
        %v3050 = vadd.f32 %v3049, %v3028
        %v3051 = vadd.f32 %v2812, %v2885
        %v3052 = vadd.f32 %v3051, %v2958
        %v3053 = vadd.f32 %v3052, %v3031
        %v3054 = vadd.f32 %v2814, %v2887
        %v3055 = vadd.f32 %v3054, %v2960
        %v3056 = vadd.f32 %v3055, %v3033
        %v3057 = vadd.f32 %v2817, %v2890
        %v3058 = vadd.f32 %v3057, %v2963
        %v3059 = vadd.f32 %v3058, %v3036
        %v3060 = vadd.f32 %v2819, %v2892
        %v3061 = vadd.f32 %v3060, %v2965
        %v3062 = vadd.f32 %v3061, %v3038
        %v3063 = vadd.f32 %v2822, %v2895
        %v3064 = vadd.f32 %v3063, %v2968
        %v3065 = vadd.f32 %v3064, %v3041
        %v3066 = vadd.f32 %v2824, %v2897
        %v3067 = vadd.f32 %v3066, %v2970
        %v3068 = vadd.f32 %v3067, %v3043
        %v3069 = vadd.f32 %v561, %v3047
        %v3070 = vadd.f32 %v562, %v3050
        %v3071 = vadd.f32 %v563, %v3053
        %v3072 = vadd.f32 %v564, %v3056
        %v3073 = vadd.f32 %v565, %v3059
        %v3074 = vadd.f32 %v566, %v3062
        %v3075 = vadd.f32 %v567, %v3065
        %v3076 = vadd.f32 %v568, %v3068
        %v3077 = vld [vmem:[%s5] sm:$0x1]
        %v3079 = vperm.slane %v3077, 0
        %v3081 = vadd.f32 %v3069, %v3079
        %v3082 = vadd.f32 %v3070, %v3079
        %v3083 = vadd.f32 %v3071, %v3079
        %v3084 = vadd.f32 %v3072, %v3079
        %v3085 = vadd.f32 %v3073, %v3079
        %v3086 = vadd.f32 %v3074, %v3079
        %v3087 = vadd.f32 %v3075, %v3079
        %v3088 = vadd.f32 %v3076, %v3079
        %v3089 = vld [vmem:[%s7] sm:$0x1]
        %v3090 = vld [vmem:[%s8] sm:$0x1]
        %3091 = vadd.xlane.f32.xlu0 %v3081
        %v3092 = vpop.xlane.xlu0 %3091
        %3093 = vadd.xlane.f32.xlu0 %v3082
        %v3094 = vpop.xlane.xlu0 %3093
        %3095 = vadd.xlane.f32.xlu0 %v3083
        %v3096 = vpop.xlane.xlu0 %3095
        %3097 = vadd.xlane.f32.xlu0 %v3084
        %v3098 = vpop.xlane.xlu0 %3097
        %3099 = vadd.xlane.f32.xlu0 %v3085
        %v3100 = vpop.xlane.xlu0 %3099
        %3101 = vadd.xlane.f32.xlu0 %v3086
        %v3102 = vpop.xlane.xlu0 %3101
        %3103 = vadd.xlane.f32.xlu0 %v3087
        %v3104 = vpop.xlane.xlu0 %3103
        %3105 = vadd.xlane.f32.xlu0 %v3088
        %v3106 = vpop.xlane.xlu0 %3105
        %v3107 = vmul.f32 %v3081, %v3081
        %v3108 = vmul.f32 %v3082, %v3082
        %v3109 = vmul.f32 %v3083, %v3083
        %v3110 = vmul.f32 %v3084, %v3084
        %v3111 = vmul.f32 %v3085, %v3085
        %v3112 = vmul.f32 %v3086, %v3086
        %v3113 = vmul.f32 %v3087, %v3087
        %v3114 = vmul.f32 %v3088, %v3088
        %3115 = vadd.xlane.f32.xlu0 %v3107
        %v3116 = vpop.xlane.xlu0 %3115
        %3117 = vadd.xlane.f32.xlu0 %v3108
        %v3118 = vpop.xlane.xlu0 %3117
        %3119 = vadd.xlane.f32.xlu0 %v3109
        %v3120 = vpop.xlane.xlu0 %3119
        %3121 = vadd.xlane.f32.xlu0 %v3110
        %v3122 = vpop.xlane.xlu0 %3121
        %3123 = vadd.xlane.f32.xlu0 %v3111
        %v3124 = vpop.xlane.xlu0 %3123
        %3125 = vadd.xlane.f32.xlu0 %v3112
        %v3126 = vpop.xlane.xlu0 %3125
        %3127 = vadd.xlane.f32.xlu0 %v3113
        %v3128 = vpop.xlane.xlu0 %3127
        %3129 = vadd.xlane.f32.xlu0 %v3114
        %v3130 = vpop.xlane.xlu0 %3129
        %v3131 = vmul.f32 %v3092, 0.0078125
        %v3132 = vmul.f32 %v3094, 0.0078125
        %v3133 = vmul.f32 %v3096, 0.0078125
        %v3134 = vmul.f32 %v3098, 0.0078125
        %v3135 = vmul.f32 %v3100, 0.0078125
        %v3136 = vmul.f32 %v3102, 0.0078125
        %v3137 = vmul.f32 %v3104, 0.0078125
        %v3138 = vmul.f32 %v3106, 0.0078125
        %v3139 = vmul.f32 %v3116, 0.0078125
        %v3140 = vmul.f32 %v3118, 0.0078125
        %v3141 = vmul.f32 %v3120, 0.0078125
        %v3142 = vmul.f32 %v3122, 0.0078125
        %v3143 = vmul.f32 %v3124, 0.0078125
        %v3144 = vmul.f32 %v3126, 0.0078125
        %v3145 = vmul.f32 %v3128, 0.0078125
        %v3146 = vmul.f32 %v3130, 0.0078125
        %v3147 = vmul.f32 %v3131, %v3131
        %v3148 = vmul.f32 %v3132, %v3132
        %v3149 = vmul.f32 %v3133, %v3133
        %v3150 = vmul.f32 %v3134, %v3134
        %v3151 = vmul.f32 %v3135, %v3135
        %v3152 = vmul.f32 %v3136, %v3136
        %v3153 = vmul.f32 %v3137, %v3137
        %v3154 = vmul.f32 %v3138, %v3138
        %v3155 = vsub.f32 %v3139, %v3147
        %v3156 = vsub.f32 %v3140, %v3148
        %v3157 = vsub.f32 %v3141, %v3149
        %v3158 = vsub.f32 %v3142, %v3150
        %v3159 = vsub.f32 %v3143, %v3151
        %v3160 = vsub.f32 %v3144, %v3152
        %v3161 = vsub.f32 %v3145, %v3153
        %v3162 = vsub.f32 %v3146, %v3154
        %v3163 = vsub.f32 %v3081, %v3131
        %v3164 = vsub.f32 %v3082, %v3132
        %v3165 = vsub.f32 %v3083, %v3133
        %v3166 = vsub.f32 %v3084, %v3134
        %v3167 = vsub.f32 %v3085, %v3135
        %v3168 = vsub.f32 %v3086, %v3136
        %v3169 = vsub.f32 %v3087, %v3137
        %v3170 = vsub.f32 %v3088, %v3138
        %v3171 = vadd.f32 %v3155, 1e-05
        %v3172 = vadd.f32 %v3156, 1e-05
        %v3173 = vadd.f32 %v3157, 1e-05
        %v3174 = vadd.f32 %v3158, 1e-05
        %v3175 = vadd.f32 %v3159, 1e-05
        %v3176 = vadd.f32 %v3160, 1e-05
        %v3177 = vadd.f32 %v3161, 1e-05
        %v3178 = vadd.f32 %v3162, 1e-05
        %v3179 = vrsqrt.pop %v3171
        %v3180 = vmul.f32 %v3179, %v3171
        %v3181 = vmul.f32 %v3180, %v3179
        %v3182 = vmul.f32 0.5, %v3181
        %v3183 = vsub.f32 1.5, %v3182
        %v3184 = vmul.f32 %v3179, %v3183
        %vm3185 = vweird.f32 %v3171
        %vm3186 = vweird.f32 %v3179
        %vm3187 = vmor %vm3185, %vm3186
        %v3188 = vsel %vm3187, %v3179, %v3184
        %v3189 = vrsqrt.pop %v3172
        %v3190 = vmul.f32 %v3189, %v3172
        %v3191 = vmul.f32 %v3190, %v3189
        %v3192 = vmul.f32 0.5, %v3191
        %v3193 = vsub.f32 1.5, %v3192
        %v3194 = vmul.f32 %v3189, %v3193
        %vm3195 = vweird.f32 %v3172
        %vm3196 = vweird.f32 %v3189
        %vm3197 = vmor %vm3195, %vm3196
        %v3198 = vsel %vm3197, %v3189, %v3194
        %v3199 = vrsqrt.pop %v3173
        %v3200 = vmul.f32 %v3199, %v3173
        %v3201 = vmul.f32 %v3200, %v3199
        %v3202 = vmul.f32 0.5, %v3201
        %v3203 = vsub.f32 1.5, %v3202
        %v3204 = vmul.f32 %v3199, %v3203
        %vm3205 = vweird.f32 %v3173
        %vm3206 = vweird.f32 %v3199
        %vm3207 = vmor %vm3205, %vm3206
        %v3208 = vsel %vm3207, %v3199, %v3204
        %v3209 = vrsqrt.pop %v3174
        %v3210 = vmul.f32 %v3209, %v3174
        %v3211 = vmul.f32 %v3210, %v3209
        %v3212 = vmul.f32 0.5, %v3211
        %v3213 = vsub.f32 1.5, %v3212
        %v3214 = vmul.f32 %v3209, %v3213
        %vm3215 = vweird.f32 %v3174
        %vm3216 = vweird.f32 %v3209
        %vm3217 = vmor %vm3215, %vm3216
        %v3218 = vsel %vm3217, %v3209, %v3214
        %v3219 = vrsqrt.pop %v3175
        %v3220 = vmul.f32 %v3219, %v3175
        %v3221 = vmul.f32 %v3220, %v3219
        %v3222 = vmul.f32 0.5, %v3221
        %v3223 = vsub.f32 1.5, %v3222
        %v3224 = vmul.f32 %v3219, %v3223
        %vm3225 = vweird.f32 %v3175
        %vm3226 = vweird.f32 %v3219
        %vm3227 = vmor %vm3225, %vm3226
        %v3228 = vsel %vm3227, %v3219, %v3224
        %v3229 = vrsqrt.pop %v3176
        %v3230 = vmul.f32 %v3229, %v3176
        %v3231 = vmul.f32 %v3230, %v3229
        %v3232 = vmul.f32 0.5, %v3231
        %v3233 = vsub.f32 1.5, %v3232
        %v3234 = vmul.f32 %v3229, %v3233
        %vm3235 = vweird.f32 %v3176
        %vm3236 = vweird.f32 %v3229
        %vm3237 = vmor %vm3235, %vm3236
        %v3238 = vsel %vm3237, %v3229, %v3234
        %v3239 = vrsqrt.pop %v3177
        %v3240 = vmul.f32 %v3239, %v3177
        %v3241 = vmul.f32 %v3240, %v3239
        %v3242 = vmul.f32 0.5, %v3241
        %v3243 = vsub.f32 1.5, %v3242
        %v3244 = vmul.f32 %v3239, %v3243
        %vm3245 = vweird.f32 %v3177
        %vm3246 = vweird.f32 %v3239
        %vm3247 = vmor %vm3245, %vm3246
        %v3248 = vsel %vm3247, %v3239, %v3244
        %v3249 = vrsqrt.pop %v3178
        %v3250 = vmul.f32 %v3249, %v3178
        %v3251 = vmul.f32 %v3250, %v3249
        %v3252 = vmul.f32 0.5, %v3251
        %v3253 = vsub.f32 1.5, %v3252
        %v3254 = vmul.f32 %v3249, %v3253
        %vm3255 = vweird.f32 %v3178
        %vm3256 = vweird.f32 %v3249
        %vm3257 = vmor %vm3255, %vm3256
        %v3258 = vsel %vm3257, %v3249, %v3254
        %v3259 = vmul.f32 %v3163, %v3188
        %v3260 = vmul.f32 %v3164, %v3198
        %v3261 = vmul.f32 %v3165, %v3208
        %v3262 = vmul.f32 %v3166, %v3218
        %v3263 = vmul.f32 %v3167, %v3228
        %v3264 = vmul.f32 %v3168, %v3238
        %v3265 = vmul.f32 %v3169, %v3248
        %v3266 = vmul.f32 %v3170, %v3258
        %v3268 = vperm.slane %v3089, 0
        %v3270 = vmul.f32 %v3259, %v3268
        %v3271 = vmul.f32 %v3260, %v3268
        %v3272 = vmul.f32 %v3261, %v3268
        %v3273 = vmul.f32 %v3262, %v3268
        %v3274 = vmul.f32 %v3263, %v3268
        %v3275 = vmul.f32 %v3264, %v3268
        %v3276 = vmul.f32 %v3265, %v3268
        %v3277 = vmul.f32 %v3266, %v3268
        %v3279 = vperm.slane %v3090, 0
        %v3281 = vadd.f32 %v3270, %v3279
        %v3282 = vadd.f32 %v3271, %v3279
        %v3283 = vadd.f32 %v3272, %v3279
        %v3284 = vadd.f32 %v3273, %v3279
        %v3285 = vadd.f32 %v3274, %v3279
        %v3286 = vadd.f32 %v3275, %v3279
        %v3287 = vadd.f32 %v3276, %v3279
        %v3288 = vadd.f32 %v3277, %v3279
        %v3289 = vpack.c.bf16 %v3282, %v3281
        %v3290 = vpack.c.bf16 %v3284, %v3283
        %v3291 = vpack.c.bf16 %v3286, %v3285
        %v3292 = vpack.c.bf16 %v3288, %v3287
        %v3293 = vld [vmem:[#allocation12] sm:$0xff]
        %v3294 = vld [vmem:[#allocation12 + $0x8] sm:$0xff]
        %v3295 = vld [vmem:[#allocation12 + $0x10] sm:$0xff]
        %v3296 = vld [vmem:[#allocation12 + $0x18] sm:$0xff]
        %v3297 = vld [vmem:[#allocation12 + $0x20] sm:$0xff]
        %v3298 = vld [vmem:[#allocation12 + $0x28] sm:$0xff]
        %v3299 = vld [vmem:[#allocation12 + $0x30] sm:$0xff]
        %v3300 = vld [vmem:[#allocation12 + $0x38] sm:$0xff]
        %v3301 = vld [vmem:[#allocation12 + $0x40] sm:$0xff]
        %v3302 = vld [vmem:[#allocation12 + $0x48] sm:$0xff]
        %v3303 = vld [vmem:[#allocation12 + $0x50] sm:$0xff]
        %v3304 = vld [vmem:[#allocation12 + $0x58] sm:$0xff]
        %v3305 = vld [vmem:[#allocation12 + $0x60] sm:$0xff]
        %v3306 = vld [vmem:[#allocation12 + $0x68] sm:$0xff]
        %v3307 = vld [vmem:[#allocation12 + $0x70] sm:$0xff]
        %v3308 = vld [vmem:[#allocation12 + $0x78] sm:$0xff]
        %v3309 = vld [vmem:[%s10] sm:$0x3]
        %v3311 = vperm.slane %v3309, 0
        %v3312 = vperm.slane %v3309, 1
        %v3331 = vunpack.c.l.b16 %v3293
        %v3332 = vunpack.c.h.b16 %v3293
        %v3333 = vunpack.c.l.b16 %v3294
        %v3334 = vunpack.c.h.b16 %v3294
        %v3335 = vunpack.c.l.b16 %v3295
        %v3336 = vunpack.c.h.b16 %v3295
        %v3337 = vunpack.c.l.b16 %v3296
        %v3338 = vunpack.c.h.b16 %v3296
        %v3339 = vunpack.c.l.b16 %v3297
        %v3340 = vunpack.c.h.b16 %v3297
        %v3341 = vunpack.c.l.b16 %v3298
        %v3342 = vunpack.c.h.b16 %v3298
        %v3343 = vunpack.c.l.b16 %v3299
        %v3344 = vunpack.c.h.b16 %v3299
        %v3345 = vunpack.c.l.b16 %v3300
        %v3346 = vunpack.c.h.b16 %v3300
        %v3347 = vunpack.c.l.b16 %v3301
        %v3348 = vunpack.c.h.b16 %v3301
        %v3349 = vunpack.c.l.b16 %v3302
        %v3350 = vunpack.c.h.b16 %v3302
        %v3351 = vunpack.c.l.b16 %v3303
        %v3352 = vunpack.c.h.b16 %v3303
        %v3353 = vunpack.c.l.b16 %v3304
        %v3354 = vunpack.c.h.b16 %v3304
        %v3355 = vunpack.c.l.b16 %v3305
        %v3356 = vunpack.c.h.b16 %v3305
        %v3357 = vunpack.c.l.b16 %v3306
        %v3358 = vunpack.c.h.b16 %v3306
        %v3359 = vunpack.c.l.b16 %v3307
        %v3360 = vunpack.c.h.b16 %v3307
        %v3361 = vunpack.c.l.b16 %v3308
        %v3362 = vunpack.c.h.b16 %v3308
        %v3363 = vpack.c.b16 %v3333, %v3331
        %v3364 = vpack.c.b16 %v3334, %v3332
        %v3365 = vpack.c.b16 %v3337, %v3335
        %v3366 = vpack.c.b16 %v3338, %v3336
        %v3367 = vpack.c.b16 %v3341, %v3339
        %v3368 = vpack.c.b16 %v3342, %v3340
        %v3369 = vpack.c.b16 %v3345, %v3343
        %v3370 = vpack.c.b16 %v3346, %v3344
        %v3371 = vpack.c.b16 %v3349, %v3347
        %v3372 = vpack.c.b16 %v3350, %v3348
        %v3373 = vpack.c.b16 %v3353, %v3351
        %v3374 = vpack.c.b16 %v3354, %v3352
        %v3375 = vpack.c.b16 %v3357, %v3355
        %v3376 = vpack.c.b16 %v3358, %v3356
        %v3377 = vpack.c.b16 %v3361, %v3359
        %v3378 = vpack.c.b16 %v3362, %v3360
        %3395 = vmatpush.bf16.msra.mxu0 %v3377
        %3396 = vmatpush.bf16.msra.mxu0 %v3375
        %3397 = vmatpush.bf16.msra.mxu0 %v3373
        %3398 = vmatpush.bf16.msra.mxu0 %v3371
        %3399 = vmatpush.bf16.msra.mxu0 %v3369
        %3400 = vmatpush.bf16.msra.mxu0 %v3367
        %3401 = vmatpush.bf16.msra.mxu0 %v3365
        %3402 = vmatpush.bf16.msra.mxu0 %v3363
        %3403 = vmatmul.bf16.gmra.mxu0 %v3289
        %v3404 = vpop.f32.mrf.mxu0
        %v3405 = vadd.f32 %v3311, %v3404
        %v3406 = vpop.f32.mrf.mxu0
        %v3407 = vadd.f32 %v3311, %v3406
        %3408 = vmatmul.bf16.gmra.mxu0 %v3290
        %v3409 = vpop.f32.mrf.mxu0
        %v3410 = vadd.f32 %v3311, %v3409
        %v3411 = vpop.f32.mrf.mxu0
        %v3412 = vadd.f32 %v3311, %v3411
        %3413 = vmatmul.bf16.gmra.mxu0 %v3291
        %v3414 = vpop.f32.mrf.mxu0
        %v3415 = vadd.f32 %v3311, %v3414
        %v3416 = vpop.f32.mrf.mxu0
        %v3417 = vadd.f32 %v3311, %v3416
        %3418 = vmatmul.bf16.gmra.mxu0 %v3292
        %v3419 = vpop.f32.mrf.mxu0
        %v3420 = vadd.f32 %v3311, %v3419
        %v3421 = vpop.f32.mrf.mxu0
        %v3422 = vadd.f32 %v3311, %v3421
        %3423 = vdwg.mxu0
        %3424 = vmatpush.bf16.msra.mxu0 %v3378
        %3425 = vmatpush.bf16.msra.mxu0 %v3376
        %3426 = vmatpush.bf16.msra.mxu0 %v3374
        %3427 = vmatpush.bf16.msra.mxu0 %v3372
        %3428 = vmatpush.bf16.msra.mxu0 %v3370
        %3429 = vmatpush.bf16.msra.mxu0 %v3368
        %3430 = vmatpush.bf16.msra.mxu0 %v3366
        %3431 = vmatpush.bf16.msra.mxu0 %v3364
        %3432 = vmatmul.bf16.gmra.mxu0 %v3289
        %v3433 = vpop.f32.mrf.mxu0
        %v3434 = vadd.f32 %v3312, %v3433
        %v3435 = vpop.f32.mrf.mxu0
        %v3436 = vadd.f32 %v3312, %v3435
        %3437 = vmatmul.bf16.gmra.mxu0 %v3290
        %v3438 = vpop.f32.mrf.mxu0
        %v3439 = vadd.f32 %v3312, %v3438
        %v3440 = vpop.f32.mrf.mxu0
        %v3441 = vadd.f32 %v3312, %v3440
        %3442 = vmatmul.bf16.gmra.mxu0 %v3291
        %v3443 = vpop.f32.mrf.mxu0
        %v3444 = vadd.f32 %v3312, %v3443
        %v3445 = vpop.f32.mrf.mxu0
        %v3446 = vadd.f32 %v3312, %v3445
        %3447 = vmatmul.bf16.gmra.mxu0 %v3292
        %v3448 = vpop.f32.mrf.mxu0
        %v3449 = vadd.f32 %v3312, %v3448
        %v3450 = vpop.f32.mrf.mxu0
        %v3451 = vadd.f32 %v3312, %v3450
        %3452 = vdwg.mxu0
        %v3453 = vmul.f32 %v3405, %v3405
        %v3454 = vmul.f32 %v3434, %v3434
        %v3455 = vmul.f32 %v3407, %v3407
        %v3456 = vmul.f32 %v3436, %v3436
        %v3457 = vmul.f32 %v3410, %v3410
        %v3458 = vmul.f32 %v3439, %v3439
        %v3459 = vmul.f32 %v3412, %v3412
        %v3460 = vmul.f32 %v3441, %v3441
        %v3461 = vmul.f32 %v3415, %v3415
        %v3462 = vmul.f32 %v3444, %v3444
        %v3463 = vmul.f32 %v3417, %v3417
        %v3464 = vmul.f32 %v3446, %v3446
        %v3465 = vmul.f32 %v3420, %v3420
        %v3466 = vmul.f32 %v3449, %v3449
        %v3467 = vmul.f32 %v3422, %v3422
        %v3468 = vmul.f32 %v3451, %v3451
        %v3469 = vmul.f32 %v3405, %v3453
        %v3470 = vmul.f32 %v3434, %v3454
        %v3471 = vmul.f32 %v3407, %v3455
        %v3472 = vmul.f32 %v3436, %v3456
        %v3473 = vmul.f32 %v3410, %v3457
        %v3474 = vmul.f32 %v3439, %v3458
        %v3475 = vmul.f32 %v3412, %v3459
        %v3476 = vmul.f32 %v3441, %v3460
        %v3477 = vmul.f32 %v3415, %v3461
        %v3478 = vmul.f32 %v3444, %v3462
        %v3479 = vmul.f32 %v3417, %v3463
        %v3480 = vmul.f32 %v3446, %v3464
        %v3481 = vmul.f32 %v3420, %v3465
        %v3482 = vmul.f32 %v3449, %v3466
        %v3483 = vmul.f32 %v3422, %v3467
        %v3484 = vmul.f32 %v3451, %v3468
        %v3485 = vmul.f32 %v3469, 0.044715
        %v3486 = vmul.f32 %v3470, 0.044715
        %v3487 = vmul.f32 %v3471, 0.044715
        %v3488 = vmul.f32 %v3472, 0.044715
        %v3489 = vmul.f32 %v3473, 0.044715
        %v3490 = vmul.f32 %v3474, 0.044715
        %v3491 = vmul.f32 %v3475, 0.044715
        %v3492 = vmul.f32 %v3476, 0.044715
        %v3493 = vmul.f32 %v3477, 0.044715
        %v3494 = vmul.f32 %v3478, 0.044715
        %v3495 = vmul.f32 %v3479, 0.044715
        %v3496 = vmul.f32 %v3480, 0.044715
        %v3497 = vmul.f32 %v3481, 0.044715
        %v3498 = vmul.f32 %v3482, 0.044715
        %v3499 = vmul.f32 %v3483, 0.044715
        %v3500 = vmul.f32 %v3484, 0.044715
        %v3501 = vadd.f32 %v3405, %v3485
        %v3502 = vadd.f32 %v3434, %v3486
        %v3503 = vadd.f32 %v3407, %v3487
        %v3504 = vadd.f32 %v3436, %v3488
        %v3505 = vadd.f32 %v3410, %v3489
        %v3506 = vadd.f32 %v3439, %v3490
        %v3507 = vadd.f32 %v3412, %v3491
        %v3508 = vadd.f32 %v3441, %v3492
        %v3509 = vadd.f32 %v3415, %v3493
        %v3510 = vadd.f32 %v3444, %v3494
        %v3511 = vadd.f32 %v3417, %v3495
        %v3512 = vadd.f32 %v3446, %v3496
        %v3513 = vadd.f32 %v3420, %v3497
        %v3514 = vadd.f32 %v3449, %v3498
        %v3515 = vadd.f32 %v3422, %v3499
        %v3516 = vadd.f32 %v3451, %v3500
        %v3517 = vmul.f32 %v3501, 0.7978846
        %v3518 = vmul.f32 %v3502, 0.7978846
        %v3519 = vmul.f32 %v3503, 0.7978846
        %v3520 = vmul.f32 %v3504, 0.7978846
        %v3521 = vmul.f32 %v3505, 0.7978846
        %v3522 = vmul.f32 %v3506, 0.7978846
        %v3523 = vmul.f32 %v3507, 0.7978846
        %v3524 = vmul.f32 %v3508, 0.7978846
        %v3525 = vmul.f32 %v3509, 0.7978846
        %v3526 = vmul.f32 %v3510, 0.7978846
        %v3527 = vmul.f32 %v3511, 0.7978846
        %v3528 = vmul.f32 %v3512, 0.7978846
        %v3529 = vmul.f32 %v3513, 0.7978846
        %v3530 = vmul.f32 %v3514, 0.7978846
        %v3531 = vmul.f32 %v3515, 0.7978846
        %v3532 = vmul.f32 %v3516, 0.7978846
        %v3533 = vtanh.pop %v3517
        %v3534 = vtanh.pop %v3518
        %v3535 = vtanh.pop %v3519
        %v3536 = vtanh.pop %v3520
        %v3537 = vtanh.pop %v3521
        %v3538 = vtanh.pop %v3522
        %v3539 = vtanh.pop %v3523
        %v3540 = vtanh.pop %v3524
        %v3541 = vtanh.pop %v3525
        %v3542 = vtanh.pop %v3526
        %v3543 = vtanh.pop %v3527
        %v3544 = vtanh.pop %v3528
        %v3545 = vtanh.pop %v3529
        %v3546 = vtanh.pop %v3530
        %v3547 = vtanh.pop %v3531
        %v3548 = vtanh.pop %v3532
        %v3549 = vadd.f32 %v3533, 1.0
        %v3550 = vadd.f32 %v3534, 1.0
        %v3551 = vadd.f32 %v3535, 1.0
        %v3552 = vadd.f32 %v3536, 1.0
        %v3553 = vadd.f32 %v3537, 1.0
        %v3554 = vadd.f32 %v3538, 1.0
        %v3555 = vadd.f32 %v3539, 1.0
        %v3556 = vadd.f32 %v3540, 1.0
        %v3557 = vadd.f32 %v3541, 1.0
        %v3558 = vadd.f32 %v3542, 1.0
        %v3559 = vadd.f32 %v3543, 1.0
        %v3560 = vadd.f32 %v3544, 1.0
        %v3561 = vadd.f32 %v3545, 1.0
        %v3562 = vadd.f32 %v3546, 1.0
        %v3563 = vadd.f32 %v3547, 1.0
        %v3564 = vadd.f32 %v3548, 1.0
        %v3565 = vmul.f32 %v3549, 0.5
        %v3566 = vmul.f32 %v3550, 0.5
        %v3567 = vmul.f32 %v3551, 0.5
        %v3568 = vmul.f32 %v3552, 0.5
        %v3569 = vmul.f32 %v3553, 0.5
        %v3570 = vmul.f32 %v3554, 0.5
        %v3571 = vmul.f32 %v3555, 0.5
        %v3572 = vmul.f32 %v3556, 0.5
        %v3573 = vmul.f32 %v3557, 0.5
        %v3574 = vmul.f32 %v3558, 0.5
        %v3575 = vmul.f32 %v3559, 0.5
        %v3576 = vmul.f32 %v3560, 0.5
        %v3577 = vmul.f32 %v3561, 0.5
        %v3578 = vmul.f32 %v3562, 0.5
        %v3579 = vmul.f32 %v3563, 0.5
        %v3580 = vmul.f32 %v3564, 0.5
        %v3581 = vmul.f32 %v3405, %v3565
        %v3582 = vmul.f32 %v3434, %v3566
        %v3583 = vmul.f32 %v3407, %v3567
        %v3584 = vmul.f32 %v3436, %v3568
        %v3585 = vmul.f32 %v3410, %v3569
        %v3586 = vmul.f32 %v3439, %v3570
        %v3587 = vmul.f32 %v3412, %v3571
        %v3588 = vmul.f32 %v3441, %v3572
        %v3589 = vmul.f32 %v3415, %v3573
        %v3590 = vmul.f32 %v3444, %v3574
        %v3591 = vmul.f32 %v3417, %v3575
        %v3592 = vmul.f32 %v3446, %v3576
        %v3593 = vmul.f32 %v3420, %v3577
        %v3594 = vmul.f32 %v3449, %v3578
        %v3595 = vmul.f32 %v3422, %v3579
        %v3596 = vmul.f32 %v3451, %v3580
        %v3597 = vpack.c.bf16 %v3583, %v3581
        %v3598 = vpack.c.bf16 %v3584, %v3582
        %v3599 = vpack.c.bf16 %v3587, %v3585
        %v3600 = vpack.c.bf16 %v3588, %v3586
        %v3601 = vpack.c.bf16 %v3591, %v3589
        %v3602 = vpack.c.bf16 %v3592, %v3590
        %v3603 = vpack.c.bf16 %v3595, %v3593
        %v3604 = vpack.c.bf16 %v3596, %v3594
        %v3605 = vld [vmem:[#allocation13] sm:$0xf]
        %v3606 = vld [vmem:[#allocation13 + $0x4] sm:$0xf]
        %v3607 = vld [vmem:[#allocation13 + $0x8] sm:$0xf]
        %v3608 = vld [vmem:[#allocation13 + $0xc] sm:$0xf]
        %v3609 = vld [vmem:[#allocation13 + $0x10] sm:$0xf]
        %v3610 = vld [vmem:[#allocation13 + $0x14] sm:$0xf]
        %v3611 = vld [vmem:[#allocation13 + $0x18] sm:$0xf]
        %v3612 = vld [vmem:[#allocation13 + $0x1c] sm:$0xf]
        %v3613 = vld [vmem:[#allocation13 + $0x20] sm:$0xf]
        %v3614 = vld [vmem:[#allocation13 + $0x24] sm:$0xf]
        %v3615 = vld [vmem:[#allocation13 + $0x28] sm:$0xf]
        %v3616 = vld [vmem:[#allocation13 + $0x2c] sm:$0xf]
        %v3617 = vld [vmem:[#allocation13 + $0x30] sm:$0xf]
        %v3618 = vld [vmem:[#allocation13 + $0x34] sm:$0xf]
        %v3619 = vld [vmem:[#allocation13 + $0x38] sm:$0xf]
        %v3620 = vld [vmem:[#allocation13 + $0x3c] sm:$0xf]
        %v3621 = vld [vmem:[#allocation13 + $0x40] sm:$0xf]
        %v3622 = vld [vmem:[#allocation13 + $0x44] sm:$0xf]
        %v3623 = vld [vmem:[#allocation13 + $0x48] sm:$0xf]
        %v3624 = vld [vmem:[#allocation13 + $0x4c] sm:$0xf]
        %v3625 = vld [vmem:[#allocation13 + $0x50] sm:$0xf]
        %v3626 = vld [vmem:[#allocation13 + $0x54] sm:$0xf]
        %v3627 = vld [vmem:[#allocation13 + $0x58] sm:$0xf]
        %v3628 = vld [vmem:[#allocation13 + $0x5c] sm:$0xf]
        %v3629 = vld [vmem:[#allocation13 + $0x60] sm:$0xf]
        %v3630 = vld [vmem:[#allocation13 + $0x64] sm:$0xf]
        %v3631 = vld [vmem:[#allocation13 + $0x68] sm:$0xf]
        %v3632 = vld [vmem:[#allocation13 + $0x6c] sm:$0xf]
        %v3633 = vld [vmem:[#allocation13 + $0x70] sm:$0xf]
        %v3634 = vld [vmem:[#allocation13 + $0x74] sm:$0xf]
        %v3635 = vld [vmem:[#allocation13 + $0x78] sm:$0xf]
        %v3636 = vld [vmem:[#allocation13 + $0x7c] sm:$0xf]
        %v3637 = vld [vmem:[%s12] sm:$0x1]
        %v3639 = vperm.slane %v3637, 0
        %v3673 = vunpack.c.l.b16 %v3605
        %v3674 = vunpack.c.l.b16 %v3606
        %v3675 = vunpack.c.l.b16 %v3607
        %v3676 = vunpack.c.l.b16 %v3608
        %v3677 = vunpack.c.l.b16 %v3609
        %v3678 = vunpack.c.l.b16 %v3610
        %v3679 = vunpack.c.l.b16 %v3611
        %v3680 = vunpack.c.l.b16 %v3612
        %v3681 = vunpack.c.l.b16 %v3613
        %v3682 = vunpack.c.l.b16 %v3614
        %v3683 = vunpack.c.l.b16 %v3615
        %v3684 = vunpack.c.l.b16 %v3616
        %v3685 = vunpack.c.l.b16 %v3617
        %v3686 = vunpack.c.l.b16 %v3618
        %v3687 = vunpack.c.l.b16 %v3619
        %v3688 = vunpack.c.l.b16 %v3620
        %v3689 = vunpack.c.l.b16 %v3621
        %v3690 = vunpack.c.l.b16 %v3622
        %v3691 = vunpack.c.l.b16 %v3623
        %v3692 = vunpack.c.l.b16 %v3624
        %v3693 = vunpack.c.l.b16 %v3625
        %v3694 = vunpack.c.l.b16 %v3626
        %v3695 = vunpack.c.l.b16 %v3627
        %v3696 = vunpack.c.l.b16 %v3628
        %v3697 = vunpack.c.l.b16 %v3629
        %v3698 = vunpack.c.l.b16 %v3630
        %v3699 = vunpack.c.l.b16 %v3631
        %v3700 = vunpack.c.l.b16 %v3632
        %v3701 = vunpack.c.l.b16 %v3633
        %v3702 = vunpack.c.l.b16 %v3634
        %v3703 = vunpack.c.l.b16 %v3635
        %v3704 = vunpack.c.l.b16 %v3636
        %v3705 = vpack.c.b16 %v3674, %v3673
        %v3706 = vpack.c.b16 %v3676, %v3675
        %v3707 = vpack.c.b16 %v3678, %v3677
        %v3708 = vpack.c.b16 %v3680, %v3679
        %v3709 = vpack.c.b16 %v3682, %v3681
        %v3710 = vpack.c.b16 %v3684, %v3683
        %v3711 = vpack.c.b16 %v3686, %v3685
        %v3712 = vpack.c.b16 %v3688, %v3687
        %v3713 = vpack.c.b16 %v3690, %v3689
        %v3714 = vpack.c.b16 %v3692, %v3691
        %v3715 = vpack.c.b16 %v3694, %v3693
        %v3716 = vpack.c.b16 %v3696, %v3695
        %v3717 = vpack.c.b16 %v3698, %v3697
        %v3718 = vpack.c.b16 %v3700, %v3699
        %v3719 = vpack.c.b16 %v3702, %v3701
        %v3720 = vpack.c.b16 %v3704, %v3703
        %3737 = vmatpush.bf16.msra.mxu0 %v3712
        %3738 = vmatpush.bf16.msra.mxu0 %v3711
        %3739 = vmatpush.bf16.msra.mxu0 %v3710
        %3740 = vmatpush.bf16.msra.mxu0 %v3709
        %3741 = vmatpush.bf16.msra.mxu0 %v3708
        %3742 = vmatpush.bf16.msra.mxu0 %v3707
        %3743 = vmatpush.bf16.msra.mxu0 %v3706
        %3744 = vmatpush.bf16.msra.mxu0 %v3705
        %3745 = vmatmul.bf16.gmra.mxu0 %v3597
        %v3746 = vpop.f32.mrf.mxu0
        %v3747 = vadd.f32 %v3639, %v3746
        %v3748 = vpop.f32.mrf.mxu0
        %v3749 = vadd.f32 %v3639, %v3748
        %3750 = vmatmul.bf16.gmra.mxu0 %v3599
        %v3751 = vpop.f32.mrf.mxu0
        %v3752 = vadd.f32 %v3639, %v3751
        %v3753 = vpop.f32.mrf.mxu0
        %v3754 = vadd.f32 %v3639, %v3753
        %3755 = vmatmul.bf16.gmra.mxu0 %v3601
        %v3756 = vpop.f32.mrf.mxu0
        %v3757 = vadd.f32 %v3639, %v3756
        %v3758 = vpop.f32.mrf.mxu0
        %v3759 = vadd.f32 %v3639, %v3758
        %3760 = vmatmul.bf16.gmra.mxu0 %v3603
        %v3761 = vpop.f32.mrf.mxu0
        %v3762 = vadd.f32 %v3639, %v3761
        %v3763 = vpop.f32.mrf.mxu0
        %v3764 = vadd.f32 %v3639, %v3763
        %3765 = vdwg.mxu0
        %3766 = vmatpush.bf16.msra.mxu0 %v3720
        %3767 = vmatpush.bf16.msra.mxu0 %v3719
        %3768 = vmatpush.bf16.msra.mxu0 %v3718
        %3769 = vmatpush.bf16.msra.mxu0 %v3717
        %3770 = vmatpush.bf16.msra.mxu0 %v3716
        %3771 = vmatpush.bf16.msra.mxu0 %v3715
        %3772 = vmatpush.bf16.msra.mxu0 %v3714
        %3773 = vmatpush.bf16.msra.mxu0 %v3713
        %3774 = vmatmul.bf16.gmra.mxu0 %v3598
        %v3775 = vpop.f32.mrf.mxu0
        %v3776 = vadd.f32 %v3747, %v3775
        %v3777 = vpop.f32.mrf.mxu0
        %v3778 = vadd.f32 %v3749, %v3777
        %3779 = vmatmul.bf16.gmra.mxu0 %v3600
        %v3780 = vpop.f32.mrf.mxu0
        %v3781 = vadd.f32 %v3752, %v3780
        %v3782 = vpop.f32.mrf.mxu0
        %v3783 = vadd.f32 %v3754, %v3782
        %3784 = vmatmul.bf16.gmra.mxu0 %v3602
        %v3785 = vpop.f32.mrf.mxu0
        %v3786 = vadd.f32 %v3757, %v3785
        %v3787 = vpop.f32.mrf.mxu0
        %v3788 = vadd.f32 %v3759, %v3787
        %3789 = vmatmul.bf16.gmra.mxu0 %v3604
        %v3790 = vpop.f32.mrf.mxu0
        %v3791 = vadd.f32 %v3762, %v3790
        %v3792 = vpop.f32.mrf.mxu0
        %v3793 = vadd.f32 %v3764, %v3792
        %3794 = vdwg.mxu0
        %v3795 = vadd.f32 %v3081, %v3776
        %v3796 = vadd.f32 %v3082, %v3778
        %v3797 = vadd.f32 %v3083, %v3781
        %v3798 = vadd.f32 %v3084, %v3783
        %v3799 = vadd.f32 %v3085, %v3786
        %v3800 = vadd.f32 %v3086, %v3788
        %v3801 = vadd.f32 %v3087, %v3791
        %v3802 = vadd.f32 %v3088, %v3793
        %3803 = vst [vmem:[%s555] sm:$0xff] %v3795
        %3804 = vst [vmem:[%s555 + $0x8] sm:$0xff] %v3796
        %3805 = vst [vmem:[%s555 + $0x10] sm:$0xff] %v3797
        %3806 = vst [vmem:[%s555 + $0x18] sm:$0xff] %v3798
        %3807 = vst [vmem:[%s555 + $0x20] sm:$0xff] %v3799
        %3808 = vst [vmem:[%s555 + $0x28] sm:$0xff] %v3800
        %3809 = vst [vmem:[%s555 + $0x30] sm:$0xff] %v3801
        %3810 = vst [vmem:[%s555 + $0x38] sm:$0xff] %v3802
        %s3811 = sand.u32 %s320, 1
        %s3812 = scalar_lea.sflag [#allocation4], %s3811
        %s3813 = sand.u32 %s320, 1
        %s3814 = smul.addr %s3813, 64
        %s3815 = scalar_lea.vmem [#allocation15], %s3814
        // Predicated region
        $region101: #{tpu_custom_call.1} parent=71 // pred_check
          %p3816 = pneg %p330
        $region102: #{tpu_custom_call.1} parent=71 // pred_check_branch
          %3818 = sbr.rel (%p3816) target = $region104
        $region103: #{tpu_custom_call.1} parent=71 // pred_region
          %3820 = vsyncadd %s3812, 0
          %s3821 = smul.addr %s34, 8
          %s3822 = smul.addr %s3821, 8
          %s3823 = scalar_lea.hbm %s13, %s3822
          %s3824 = sshll.u32 %s3815, 4
          %s3825 = int_to_ptr.vmem [resolvable:$true] %s3824
          %s3826 = sshll.u32 %s3823, 4
          %s3827 = int_to_ptr.hbm [resolvable:$true] %s3826
          %3832 = dma.vmem_to_hbm [thread:$0]  %s3825, 1024, %s3827, %s3812, 128, 128, 8
        $region104: #{tpu_custom_call.1} parent=71 // pred_fallthru
          _
      $region72: #{tpu_custom_call.1} parent=5 // pred_fallthru
        _
      %p3833 = scmp.le.s32.totalorder 2, %s29
      // Predicated region
      $region105: #{tpu_custom_call.1} parent=5 // pred_check
        %p3834 = pneg %p3833
      $region106: #{tpu_custom_call.1} parent=5 // pred_check_branch
        %3836 = sbr.rel (%p3834) target = $region108
      $region107: #{tpu_custom_call.1} parent=5 // pred_region
        %s3837 = ssub.s32 %s29, 2
        // Predicated region
        $region109: #{tpu_custom_call.1} parent=107 // pred_check
          %p3838 = pneg %p336
        $region110: #{tpu_custom_call.1} parent=107 // pred_check_branch
          %3840 = sbr.rel (%p3838) target = $region112
        $region111: #{tpu_custom_call.1} parent=107 // pred_region
          %s3841 = sand.u32 %s321, 1
          %s3842 = scalar_lea.sflag [#allocation4], %s3841
          %s3843 = sand.u32 %s321, 1
          %s3844 = smul.addr %s3843, 64
          %s3845 = scalar_lea.vmem [#allocation15], %s3844
          %3847 = dma.done %s3842, 1024
        $region112: #{tpu_custom_call.1} parent=107 // pred_fallthru
          _
      $region108: #{tpu_custom_call.1} parent=5 // pred_fallthru
        _
    $region6: #{tpu_custom_call.1} parent=1 // loop_footer
      %s33 = sadd.s32 1, %s29
    $region7: #{tpu_custom_call.1} parent=1 // loop_footer_branch
      %28 = sbr.rel target = $region3
    $region8: #{tpu_custom_call.1} parent=1 // loop_exit
      _
    %3848 = vsyncpa [#allocation3], 1
    %s3849 = scalar_lea.sflag [#allocation3], 1
    %3850 = vsyncpa %s3849, 1
    %3851 = vsyncpa [#allocation7], 1
    %3852 = vsyncpa [#allocation10], 1
    %3853 = vsyncpa [#allocation14], 1
    %3854 = vsyncpa [#allocation4], 1
    %s3855 = scalar_lea.sflag [#allocation4], 1
    %3856 = vsyncpa %s3855, 1
    %3857 = vsyncpa [#allocation5], 1
    %s3858 = scalar_lea.sflag [#allocation5], 1
    %3859 = vsyncpa %s3858, 1

</llo_original>
